<compile_context>
chip_gen: v7x
topology: tpu7x:2x2x1
jax: 0.10.0
libtpu: 0.0.40
codegen_flags: <defaults>
</compile_context>

<pallas_src>
import jax
import jax.numpy as jnp
from jax.experimental import pallas as pl
from jax.experimental.pallas import tpu as pltpu


def _round_up(v, m):
    return (v + m - 1) // m * m


def _coboundary_kernel(theta_ref, bias_ref, d_t_ref, x_ref, o_ref):
    # theta_ref : SMEM (C_out, C_in) f32
    # bias_ref  : SMEM (C_out,)      f32
    # d_t_ref   : VMEM (M, N) bf16   -- constant index_map: loaded once, resident
    # x_ref     : VMEM (tb, C_in, M) f32  (native layout; bf16 cast in-kernel)
    # o_ref     : VMEM (tb, C_out, N) f32 (native (B, C_out, N) output layout)
    c_in = x_ref.shape[1]
    c_out = o_ref.shape[1]

    xv = x_ref[...]                       # (tb, C_in, M) f32
    d_t = d_t_ref[...]                    # (M, N) bf16

    # Per-input-channel MXU matmul against the resident D^T.  Every push
    # streams `tb` LHS rows (tb is sized towards 256 rows), same RHS each time.
    Xs = []
    for i in range(c_in):
        xi = xv[:, i, :].astype(jnp.bfloat16)                    # (tb, M)
        Xs.append(jnp.dot(xi, d_t, preferred_element_type=jnp.float32))  # (tb, N)

    # Channel mix (theta) + bias: C_out*C_in broadcast FMAs on the VPU with
    # scalars from SMEM; each output channel slab is stored straight into the
    # (tb, C_out, N) block so the HBM result is already (B, C_out, N).
    for o in range(c_out):
        acc = Xs[0] * theta_ref[o, 0]
        for i in range(1, c_in):
            acc = acc + Xs[i] * theta_ref[o, i]
        o_ref[:, o, :] = (acc + bias_ref[o]).astype(o_ref.dtype)


def coboundary(D, x, theta, bias=None):
    """Pallas implementation of Coboundary.forward.

    D:     (N, M) float32
    x:     (B, C_in, M) float32
    theta: (C_out, C_in) float32
    bias:  (1, C_out, 1) / (C_out, 1) / (C_out,) / scalar / None
    returns (B, C_out, N) float32
    """
    N, M = D.shape
    B, C_in, M2 = x.shape
    assert M2 == M
    C_out, C_in2 = theta.shape
    assert C_in2 == C_in

    if bias is None:
        bias_vec = jnp.zeros((C_out,), jnp.float32)
    else:
        b = jnp.asarray(bias, dtype=jnp.float32)
        bias_vec = (jnp.full((C_out,), b.reshape(()), dtype=jnp.float32)
                    if b.size == 1 else b.reshape((C_out,)))

    theta_f32 = jnp.asarray(theta, jnp.float32)
    x_f32 = jnp.asarray(x, jnp.float32)
    # D is a read-once operand: one wrapper pass (transpose+cast fuse) to get a
    # bf16 D^T that the kernel keeps resident.
    d_t = jnp.asarray(D, jnp.float32).T.astype(jnp.bfloat16)     # (M, N)

    # ---- per-generation VMEM budget -----------------------------------------
    try:
        vmem_cap = int(pltpu.get_tpu_info().vmem_capacity_bytes)
    except Exception:
        vmem_cap = 64 * 1024 * 1024   # conservative (v7x-sized) fallback
    budget = int(min(vmem_cap * 0.85, vmem_cap - 8 * 1024 * 1024))
    budget = max(budget, 32 * 1024 * 1024)

    # ---- tile sizing (padding-aware VMEM accounting) ------------------------
    M_l = _round_up(M, 128)
    N_l = _round_up(N, 128)
    c_in_s = _round_up(C_in, 8)
    c_out_s = _round_up(C_out, 8)

    d_t_bytes = _round_up(M, 16) * N_l * 2                         # bf16, 1x resident
    per_row = (2 * c_in_s * M_l * 4          # x tile f32, double-buffered
               + 2 * c_out_s * N_l * 4       # out tile f32, double-buffered
               + (C_in + 2) * N_l * 4)       # live f32 X_i + accumulator
    avail = budget - d_t_bytes - 4 * 1024 * 1024
    tb_cap = max(8, avail // max(per_row, 1))

    tb = min(256, tb_cap)                    # ~256 MXU rows per per-channel push
    tb = max(16, (tb // 16) * 16)            # bf16 sublane packing: tb % 16 == 0
    tb = min(tb, _round_up(B, 16))
    # v7x has 2 TensorCores: give the "parallel" batch axis >=2 steps when
    # there is enough real work to split.
    if B >= 32 and pl.cdiv(B, tb) < 2:
        tb = max(16, _round_up(pl.cdiv(B, 2), 16))
    grid_b = pl.cdiv(B, tb)

    est_vmem = 2 * d_t_bytes + tb * per_row + 4 * 1024 * 1024
    vmem_limit = int(min(budget, max(est_vmem, 16 * 1024 * 1024)))

    flops = 2 * B * C_in * M * N + 2 * B * C_out * C_in * N
    bytes_accessed = (B * C_in * M * 4 + d_t_bytes + B * C_out * N * 4
                      + C_out * C_in * 4 + C_out * 4)

    smem = pltpu.MemorySpace.SMEM
    x_spec = pl.BlockSpec((tb, C_in, M), lambda b: (b, 0, 0))
    out_spec = pl.BlockSpec((tb, C_out, N), lambda b: (b, 0, 0))

    def _run(single_buffer_d):
        if single_buffer_d:
            d_spec = pl.BlockSpec((M, N), lambda b: (0, 0),
                                  pipeline_mode=pl.Buffered(1))
        else:
            d_spec = pl.BlockSpec((M, N), lambda b: (0, 0))
        return pl.pallas_call(
            _coboundary_kernel,
            out_shape=jax.ShapeDtypeStruct((B, C_out, N), jnp.float32),
            grid_spec=pltpu.PrefetchScalarGridSpec(
                num_scalar_prefetch=0,
                grid=(grid_b,),
                in_specs=[
                    pl.BlockSpec(memory_space=smem),   # theta
                    pl.BlockSpec(memory_space=smem),   # bias
                    d_spec,                            # D^T, resident
                    x_spec,                            # x, native layout
                ],
                out_specs=out_spec,
            ),
            compiler_params=pltpu.CompilerParams(
                dimension_semantics=("parallel",),
                vmem_limit_bytes=vmem_limit,
            ),
            cost_estimate=pl.CostEstimate(
                flops=flops, transcendentals=0, bytes_accessed=bytes_accessed),
        )(theta_f32, bias_vec, d_t, x_f32)

    try:
        return _run(True)
    except Exception:
        # pipeline_mode=pl.Buffered(1) not supported on this JAX version:
        # fall back to default (double-buffered) pipelining for D^T.
        return _run(False)


def coboundary_reference(D, x, theta, bias, *, mxu_dtype=None):
    # Pure-JAX reference matching the PyTorch forward; optionally mirrors the
    # kernel's bf16 MXU inputs (f32 accumulation) for a tight comparison.
    if mxu_dtype is not None:
        D = D.astype(mxu_dtype)
        x = x.astype(mxu_dtype)
    X = jnp.einsum("nm,bim->bin", D, x, preferred_element_type=jnp.float32)
    y = jnp.einsum("oi,bin->bon", theta.astype(jnp.float32), X,
                   preferred_element_type=jnp.float32)
    return y + jnp.asarray(bias, jnp.float32)


if __name__ == "__main__":
    # Small shapes consistent with the module's forward.
    B, C_in, C_out = 2, 4, 8
    M, N = 16, 12
    variance = 1.0

    key = jax.random.PRNGKey(0)
    k_theta, k_D, k_x = jax.random.split(key, 3)

    # Deterministic init mirroring __init__: theta ~ variance*randn, bias = 0.
    theta = variance * jax.random.normal(k_theta, (C_out, C_in), dtype=jnp.float32)
    bias = jnp.zeros((1, C_out, 1), dtype=jnp.float32)

    D = jax.random.normal(k_D, (N, M), dtype=jnp.float32)
    x = jax.random.normal(k_x, (B, C_in, M), dtype=jnp.float32)

    out = jax.block_until_ready(coboundary(D, x, theta, bias))

    ref = coboundary_reference(D, x, theta, bias, mxu_dtype=jnp.bfloat16)
    assert out.shape == (B, C_out, N)
    assert jnp.allclose(out, ref, atol=2e-3, rtol=2e-3), "mismatch vs reference"

    print("KERNEL_OK")
</pallas_src>

<mosaic_0001>
module attributes {stable_mosaic.version = 11 : i64} {
  func.func @_coboundary_kernel(%arg0: i32, %arg1: memref<8x4xf32, #tpu.memory_space<smem>>, %arg2: memref<8xf32, #tpu.memory_space<smem>>, %arg3: memref<16x12xbf16, #tpu.memory_space<vmem>>, %arg4: memref<16x4x16xf32, #tpu.memory_space<vmem>>, %arg5: memref<16x8x12xf32, #tpu.memory_space<vmem>>) attributes {dimension_semantics = [#tpu.dimension_semantics<parallel>], iteration_bounds = array<i64: 1>, scalar_prefetch = 0 : i64, scratch_operands = 0 : i64, tpu.core_type = #tpu.core_type<tc>, window_params = [{transform_indices = @transform_0, window_bounds = array<i64: 8, 4>}, {transform_indices = @transform_1, window_bounds = array<i64: 8>}, {pipeline_mode = #tpu.pipeline_mode<synchronous>, transform_indices = @transform_2, window_bounds = array<i64: 16, 12>}, {transform_indices = @transform_3, window_bounds = array<i64: 16, 4, 16>}, {transform_indices = @transform_4, window_bounds = array<i64: 16, 8, 12>}]} {
    %c0 = arith.constant 0 : index
    %c0_0 = arith.constant 0 : index
    %c0_1 = arith.constant 0 : index
    %0 = vector.load %arg4[%c0, %c0_0, %c0_1] : memref<16x4x16xf32, #tpu.memory_space<vmem>>, vector<16x4x16xf32>
    %c0_2 = arith.constant 0 : index
    %c0_3 = arith.constant 0 : index
    %1 = vector.load %arg3[%c0_2, %c0_3] : memref<16x12xbf16, #tpu.memory_space<vmem>>, vector<16x12xbf16>
    %2 = vector.extract_strided_slice %0 {offsets = [0, 0, 0], sizes = [16, 1, 16], strides = [1, 1, 1]} : vector<16x4x16xf32> to vector<16x1x16xf32>
    %3 = vector.shape_cast %2 : vector<16x1x16xf32> to vector<16x16xf32>
    %4 = arith.truncf %3 : vector<16x16xf32> to vector<16x16xbf16>
    %cst = arith.constant dense<0.000000e+00> : vector<16x12xf32>
    %5 = tpu.matmul %4, %1, %cst {dimension_numbers = #tpu.dot_dimension_numbers<[1], [0], [0], [1], [0, 0, 1, 1], [], []>} : vector<16x16xbf16>, vector<16x12xbf16>, vector<16x12xf32> -> vector<16x12xf32>
    %6 = vector.extract_strided_slice %0 {offsets = [0, 1, 0], sizes = [16, 1, 16], strides = [1, 1, 1]} : vector<16x4x16xf32> to vector<16x1x16xf32>
    %7 = vector.shape_cast %6 : vector<16x1x16xf32> to vector<16x16xf32>
    %8 = arith.truncf %7 : vector<16x16xf32> to vector<16x16xbf16>
    %cst_4 = arith.constant dense<0.000000e+00> : vector<16x12xf32>
    %9 = tpu.matmul %8, %1, %cst_4 {dimension_numbers = #tpu.dot_dimension_numbers<[1], [0], [0], [1], [0, 0, 1, 1], [], []>} : vector<16x16xbf16>, vector<16x12xbf16>, vector<16x12xf32> -> vector<16x12xf32>
    %10 = vector.extract_strided_slice %0 {offsets = [0, 2, 0], sizes = [16, 1, 16], strides = [1, 1, 1]} : vector<16x4x16xf32> to vector<16x1x16xf32>
    %11 = vector.shape_cast %10 : vector<16x1x16xf32> to vector<16x16xf32>
    %12 = arith.truncf %11 : vector<16x16xf32> to vector<16x16xbf16>
    %cst_5 = arith.constant dense<0.000000e+00> : vector<16x12xf32>
    %13 = tpu.matmul %12, %1, %cst_5 {dimension_numbers = #tpu.dot_dimension_numbers<[1], [0], [0], [1], [0, 0, 1, 1], [], []>} : vector<16x16xbf16>, vector<16x12xbf16>, vector<16x12xf32> -> vector<16x12xf32>
    %14 = vector.extract_strided_slice %0 {offsets = [0, 3, 0], sizes = [16, 1, 16], strides = [1, 1, 1]} : vector<16x4x16xf32> to vector<16x1x16xf32>
    %15 = vector.shape_cast %14 : vector<16x1x16xf32> to vector<16x16xf32>
    %16 = arith.truncf %15 : vector<16x16xf32> to vector<16x16xbf16>
    %cst_6 = arith.constant dense<0.000000e+00> : vector<16x12xf32>
    %17 = tpu.matmul %16, %1, %cst_6 {dimension_numbers = #tpu.dot_dimension_numbers<[1], [0], [0], [1], [0, 0, 1, 1], [], []>} : vector<16x16xbf16>, vector<16x12xbf16>, vector<16x12xf32> -> vector<16x12xf32>
    %c0_7 = arith.constant 0 : index
    %c0_8 = arith.constant 0 : index
    %18 = memref.load %arg1[%c0_7, %c0_8] : memref<8x4xf32, #tpu.memory_space<smem>>
    %19 = vector.broadcast %18 : f32 to vector<16x12xf32>
    %20 = arith.mulf %5, %19 : vector<16x12xf32>
    %c0_9 = arith.constant 0 : index
    %c1 = arith.constant 1 : index
    %21 = memref.load %arg1[%c0_9, %c1] : memref<8x4xf32, #tpu.memory_space<smem>>
    %22 = vector.broadcast %21 : f32 to vector<16x12xf32>
    %23 = arith.mulf %9, %22 : vector<16x12xf32>
    %24 = arith.addf %20, %23 : vector<16x12xf32>
    %c0_10 = arith.constant 0 : index
    %c2 = arith.constant 2 : index
    %25 = memref.load %arg1[%c0_10, %c2] : memref<8x4xf32, #tpu.memory_space<smem>>
    %26 = vector.broadcast %25 : f32 to vector<16x12xf32>
    %27 = arith.mulf %13, %26 : vector<16x12xf32>
    %28 = arith.addf %24, %27 : vector<16x12xf32>
    %c0_11 = arith.constant 0 : index
    %c3 = arith.constant 3 : index
    %29 = memref.load %arg1[%c0_11, %c3] : memref<8x4xf32, #tpu.memory_space<smem>>
    %30 = vector.broadcast %29 : f32 to vector<16x12xf32>
    %31 = arith.mulf %17, %30 : vector<16x12xf32>
    %32 = arith.addf %28, %31 : vector<16x12xf32>
    %c0_12 = arith.constant 0 : index
    %33 = memref.load %arg2[%c0_12] : memref<8xf32, #tpu.memory_space<smem>>
    %34 = vector.broadcast %33 : f32 to vector<16x12xf32>
    %35 = arith.addf %32, %34 : vector<16x12xf32>
    %c0_13 = arith.constant 0 : index
    %c0_14 = arith.constant 0 : index
    %c0_15 = arith.constant 0 : index
    %36 = vector.load %arg5[%c0_13, %c0_14, %c0_15] : memref<16x8x12xf32, #tpu.memory_space<vmem>>, vector<16x1x12xf32>
    %37 = vector.shape_cast %36 : vector<16x1x12xf32> to vector<16x12xf32>
    %38 = vector.shape_cast %35 : vector<16x12xf32> to vector<16x1x12xf32>
    tpu.vector_store %arg5[%c0_13, %c0_14, %c0_15], %38 {strides = array<i32>} : memref<16x8x12xf32, #tpu.memory_space<vmem>>, vector<16x1x12xf32>,
    %c1_16 = arith.constant 1 : index
    %c0_17 = arith.constant 0 : index
    %39 = memref.load %arg1[%c1_16, %c0_17] : memref<8x4xf32, #tpu.memory_space<smem>>
    %40 = vector.broadcast %39 : f32 to vector<16x12xf32>
    %41 = arith.mulf %5, %40 : vector<16x12xf32>
    %c1_18 = arith.constant 1 : index
    %c1_19 = arith.constant 1 : index
    %42 = memref.load %arg1[%c1_18, %c1_19] : memref<8x4xf32, #tpu.memory_space<smem>>
    %43 = vector.broadcast %42 : f32 to vector<16x12xf32>
    %44 = arith.mulf %9, %43 : vector<16x12xf32>
    %45 = arith.addf %41, %44 : vector<16x12xf32>
    %c1_20 = arith.constant 1 : index
    %c2_21 = arith.constant 2 : index
    %46 = memref.load %arg1[%c1_20, %c2_21] : memref<8x4xf32, #tpu.memory_space<smem>>
    %47 = vector.broadcast %46 : f32 to vector<16x12xf32>
    %48 = arith.mulf %13, %47 : vector<16x12xf32>
    %49 = arith.addf %45, %48 : vector<16x12xf32>
    %c1_22 = arith.constant 1 : index
    %c3_23 = arith.constant 3 : index
    %50 = memref.load %arg1[%c1_22, %c3_23] : memref<8x4xf32, #tpu.memory_space<smem>>
    %51 = vector.broadcast %50 : f32 to vector<16x12xf32>
    %52 = arith.mulf %17, %51 : vector<16x12xf32>
    %53 = arith.addf %49, %52 : vector<16x12xf32>
    %c1_24 = arith.constant 1 : index
    %54 = memref.load %arg2[%c1_24] : memref<8xf32, #tpu.memory_space<smem>>
    %55 = vector.broadcast %54 : f32 to vector<16x12xf32>
    %56 = arith.addf %53, %55 : vector<16x12xf32>
    %c0_25 = arith.constant 0 : index
    %c1_26 = arith.constant 1 : index
    %c0_27 = arith.constant 0 : index
    %57 = vector.load %arg5[%c0_25, %c1_26, %c0_27] : memref<16x8x12xf32, #tpu.memory_space<vmem>>, vector<16x1x12xf32>
    %58 = vector.shape_cast %57 : vector<16x1x12xf32> to vector<16x12xf32>
    %59 = vector.shape_cast %56 : vector<16x12xf32> to vector<16x1x12xf32>
    tpu.vector_store %arg5[%c0_25, %c1_26, %c0_27], %59 {strides = array<i32>} : memref<16x8x12xf32, #tpu.memory_space<vmem>>, vector<16x1x12xf32>,
    %c2_28 = arith.constant 2 : index
    %c0_29 = arith.constant 0 : index
    %60 = memref.load %arg1[%c2_28, %c0_29] : memref<8x4xf32, #tpu.memory_space<smem>>
    %61 = vector.broadcast %60 : f32 to vector<16x12xf32>
    %62 = arith.mulf %5, %61 : vector<16x12xf32>
    %c2_30 = arith.constant 2 : index
    %c1_31 = arith.constant 1 : index
    %63 = memref.load %arg1[%c2_30, %c1_31] : memref<8x4xf32, #tpu.memory_space<smem>>
    %64 = vector.broadcast %63 : f32 to vector<16x12xf32>
    %65 = arith.mulf %9, %64 : vector<16x12xf32>
    %66 = arith.addf %62, %65 : vector<16x12xf32>
    %c2_32 = arith.constant 2 : index
    %c2_33 = arith.constant 2 : index
    %67 = memref.load %arg1[%c2_32, %c2_33] : memref<8x4xf32, #tpu.memory_space<smem>>
    %68 = vector.broadcast %67 : f32 to vector<16x12xf32>
    %69 = arith.mulf %13, %68 : vector<16x12xf32>
    %70 = arith.addf %66, %69 : vector<16x12xf32>
    %c2_34 = arith.constant 2 : index
    %c3_35 = arith.constant 3 : index
    %71 = memref.load %arg1[%c2_34, %c3_35] : memref<8x4xf32, #tpu.memory_space<smem>>
    %72 = vector.broadcast %71 : f32 to vector<16x12xf32>
    %73 = arith.mulf %17, %72 : vector<16x12xf32>
    %74 = arith.addf %70, %73 : vector<16x12xf32>
    %c2_36 = arith.constant 2 : index
    %75 = memref.load %arg2[%c2_36] : memref<8xf32, #tpu.memory_space<smem>>
    %76 = vector.broadcast %75 : f32 to vector<16x12xf32>
    %77 = arith.addf %74, %76 : vector<16x12xf32>
    %c0_37 = arith.constant 0 : index
    %c2_38 = arith.constant 2 : index
    %c0_39 = arith.constant 0 : index
    %78 = vector.load %arg5[%c0_37, %c2_38, %c0_39] : memref<16x8x12xf32, #tpu.memory_space<vmem>>, vector<16x1x12xf32>
    %79 = vector.shape_cast %78 : vector<16x1x12xf32> to vector<16x12xf32>
    %80 = vector.shape_cast %77 : vector<16x12xf32> to vector<16x1x12xf32>
    tpu.vector_store %arg5[%c0_37, %c2_38, %c0_39], %80 {strides = array<i32>} : memref<16x8x12xf32, #tpu.memory_space<vmem>>, vector<16x1x12xf32>,
    %c3_40 = arith.constant 3 : index
    %c0_41 = arith.constant 0 : index
    %81 = memref.load %arg1[%c3_40, %c0_41] : memref<8x4xf32, #tpu.memory_space<smem>>
    %82 = vector.broadcast %81 : f32 to vector<16x12xf32>
    %83 = arith.mulf %5, %82 : vector<16x12xf32>
    %c3_42 = arith.constant 3 : index
    %c1_43 = arith.constant 1 : index
    %84 = memref.load %arg1[%c3_42, %c1_43] : memref<8x4xf32, #tpu.memory_space<smem>>
    %85 = vector.broadcast %84 : f32 to vector<16x12xf32>
    %86 = arith.mulf %9, %85 : vector<16x12xf32>
    %87 = arith.addf %83, %86 : vector<16x12xf32>
    %c3_44 = arith.constant 3 : index
    %c2_45 = arith.constant 2 : index
    %88 = memref.load %arg1[%c3_44, %c2_45] : memref<8x4xf32, #tpu.memory_space<smem>>
    %89 = vector.broadcast %88 : f32 to vector<16x12xf32>
    %90 = arith.mulf %13, %89 : vector<16x12xf32>
    %91 = arith.addf %87, %90 : vector<16x12xf32>
    %c3_46 = arith.constant 3 : index
    %c3_47 = arith.constant 3 : index
    %92 = memref.load %arg1[%c3_46, %c3_47] : memref<8x4xf32, #tpu.memory_space<smem>>
    %93 = vector.broadcast %92 : f32 to vector<16x12xf32>
    %94 = arith.mulf %17, %93 : vector<16x12xf32>
    %95 = arith.addf %91, %94 : vector<16x12xf32>
    %c3_48 = arith.constant 3 : index
    %96 = memref.load %arg2[%c3_48] : memref<8xf32, #tpu.memory_space<smem>>
    %97 = vector.broadcast %96 : f32 to vector<16x12xf32>
    %98 = arith.addf %95, %97 : vector<16x12xf32>
    %c0_49 = arith.constant 0 : index
    %c3_50 = arith.constant 3 : index
    %c0_51 = arith.constant 0 : index
    %99 = vector.load %arg5[%c0_49, %c3_50, %c0_51] : memref<16x8x12xf32, #tpu.memory_space<vmem>>, vector<16x1x12xf32>
    %100 = vector.shape_cast %99 : vector<16x1x12xf32> to vector<16x12xf32>
    %101 = vector.shape_cast %98 : vector<16x12xf32> to vector<16x1x12xf32>
    tpu.vector_store %arg5[%c0_49, %c3_50, %c0_51], %101 {strides = array<i32>} : memref<16x8x12xf32, #tpu.memory_space<vmem>>, vector<16x1x12xf32>,
    %c4 = arith.constant 4 : index
    %c0_52 = arith.constant 0 : index
    %102 = memref.load %arg1[%c4, %c0_52] : memref<8x4xf32, #tpu.memory_space<smem>>
    %103 = vector.broadcast %102 : f32 to vector<16x12xf32>
    %104 = arith.mulf %5, %103 : vector<16x12xf32>
    %c4_53 = arith.constant 4 : index
    %c1_54 = arith.constant 1 : index
    %105 = memref.load %arg1[%c4_53, %c1_54] : memref<8x4xf32, #tpu.memory_space<smem>>
    %106 = vector.broadcast %105 : f32 to vector<16x12xf32>
    %107 = arith.mulf %9, %106 : vector<16x12xf32>
    %108 = arith.addf %104, %107 : vector<16x12xf32>
    %c4_55 = arith.constant 4 : index
    %c2_56 = arith.constant 2 : index
    %109 = memref.load %arg1[%c4_55, %c2_56] : memref<8x4xf32, #tpu.memory_space<smem>>
    %110 = vector.broadcast %109 : f32 to vector<16x12xf32>
    %111 = arith.mulf %13, %110 : vector<16x12xf32>
    %112 = arith.addf %108, %111 : vector<16x12xf32>
    %c4_57 = arith.constant 4 : index
    %c3_58 = arith.constant 3 : index
    %113 = memref.load %arg1[%c4_57, %c3_58] : memref<8x4xf32, #tpu.memory_space<smem>>
    %114 = vector.broadcast %113 : f32 to vector<16x12xf32>
    %115 = arith.mulf %17, %114 : vector<16x12xf32>
    %116 = arith.addf %112, %115 : vector<16x12xf32>
    %c4_59 = arith.constant 4 : index
    %117 = memref.load %arg2[%c4_59] : memref<8xf32, #tpu.memory_space<smem>>
    %118 = vector.broadcast %117 : f32 to vector<16x12xf32>
    %119 = arith.addf %116, %118 : vector<16x12xf32>
    %c0_60 = arith.constant 0 : index
    %c4_61 = arith.constant 4 : index
    %c0_62 = arith.constant 0 : index
    %120 = vector.load %arg5[%c0_60, %c4_61, %c0_62] : memref<16x8x12xf32, #tpu.memory_space<vmem>>, vector<16x1x12xf32>
    %121 = vector.shape_cast %120 : vector<16x1x12xf32> to vector<16x12xf32>
    %122 = vector.shape_cast %119 : vector<16x12xf32> to vector<16x1x12xf32>
    tpu.vector_store %arg5[%c0_60, %c4_61, %c0_62], %122 {strides = array<i32>} : memref<16x8x12xf32, #tpu.memory_space<vmem>>, vector<16x1x12xf32>,
    %c5 = arith.constant 5 : index
    %c0_63 = arith.constant 0 : index
    %123 = memref.load %arg1[%c5, %c0_63] : memref<8x4xf32, #tpu.memory_space<smem>>
    %124 = vector.broadcast %123 : f32 to vector<16x12xf32>
    %125 = arith.mulf %5, %124 : vector<16x12xf32>
    %c5_64 = arith.constant 5 : index
    %c1_65 = arith.constant 1 : index
    %126 = memref.load %arg1[%c5_64, %c1_65] : memref<8x4xf32, #tpu.memory_space<smem>>
    %127 = vector.broadcast %126 : f32 to vector<16x12xf32>
    %128 = arith.mulf %9, %127 : vector<16x12xf32>
    %129 = arith.addf %125, %128 : vector<16x12xf32>
    %c5_66 = arith.constant 5 : index
    %c2_67 = arith.constant 2 : index
    %130 = memref.load %arg1[%c5_66, %c2_67] : memref<8x4xf32, #tpu.memory_space<smem>>
    %131 = vector.broadcast %130 : f32 to vector<16x12xf32>
    %132 = arith.mulf %13, %131 : vector<16x12xf32>
    %133 = arith.addf %129, %132 : vector<16x12xf32>
    %c5_68 = arith.constant 5 : index
    %c3_69 = arith.constant 3 : index
    %134 = memref.load %arg1[%c5_68, %c3_69] : memref<8x4xf32, #tpu.memory_space<smem>>
    %135 = vector.broadcast %134 : f32 to vector<16x12xf32>
    %136 = arith.mulf %17, %135 : vector<16x12xf32>
    %137 = arith.addf %133, %136 : vector<16x12xf32>
    %c5_70 = arith.constant 5 : index
    %138 = memref.load %arg2[%c5_70] : memref<8xf32, #tpu.memory_space<smem>>
    %139 = vector.broadcast %138 : f32 to vector<16x12xf32>
    %140 = arith.addf %137, %139 : vector<16x12xf32>
    %c0_71 = arith.constant 0 : index
    %c5_72 = arith.constant 5 : index
    %c0_73 = arith.constant 0 : index
    %141 = vector.load %arg5[%c0_71, %c5_72, %c0_73] : memref<16x8x12xf32, #tpu.memory_space<vmem>>, vector<16x1x12xf32>
    %142 = vector.shape_cast %141 : vector<16x1x12xf32> to vector<16x12xf32>
    %143 = vector.shape_cast %140 : vector<16x12xf32> to vector<16x1x12xf32>
    tpu.vector_store %arg5[%c0_71, %c5_72, %c0_73], %143 {strides = array<i32>} : memref<16x8x12xf32, #tpu.memory_space<vmem>>, vector<16x1x12xf32>,
    %c6 = arith.constant 6 : index
    %c0_74 = arith.constant 0 : index
    %144 = memref.load %arg1[%c6, %c0_74] : memref<8x4xf32, #tpu.memory_space<smem>>
    %145 = vector.broadcast %144 : f32 to vector<16x12xf32>
    %146 = arith.mulf %5, %145 : vector<16x12xf32>
    %c6_75 = arith.constant 6 : index
    %c1_76 = arith.constant 1 : index
    %147 = memref.load %arg1[%c6_75, %c1_76] : memref<8x4xf32, #tpu.memory_space<smem>>
    %148 = vector.broadcast %147 : f32 to vector<16x12xf32>
    %149 = arith.mulf %9, %148 : vector<16x12xf32>
    %150 = arith.addf %146, %149 : vector<16x12xf32>
    %c6_77 = arith.constant 6 : index
    %c2_78 = arith.constant 2 : index
    %151 = memref.load %arg1[%c6_77, %c2_78] : memref<8x4xf32, #tpu.memory_space<smem>>
    %152 = vector.broadcast %151 : f32 to vector<16x12xf32>
    %153 = arith.mulf %13, %152 : vector<16x12xf32>
    %154 = arith.addf %150, %153 : vector<16x12xf32>
    %c6_79 = arith.constant 6 : index
    %c3_80 = arith.constant 3 : index
    %155 = memref.load %arg1[%c6_79, %c3_80] : memref<8x4xf32, #tpu.memory_space<smem>>
    %156 = vector.broadcast %155 : f32 to vector<16x12xf32>
    %157 = arith.mulf %17, %156 : vector<16x12xf32>
    %158 = arith.addf %154, %157 : vector<16x12xf32>
    %c6_81 = arith.constant 6 : index
    %159 = memref.load %arg2[%c6_81] : memref<8xf32, #tpu.memory_space<smem>>
    %160 = vector.broadcast %159 : f32 to vector<16x12xf32>
    %161 = arith.addf %158, %160 : vector<16x12xf32>
    %c0_82 = arith.constant 0 : index
    %c6_83 = arith.constant 6 : index
    %c0_84 = arith.constant 0 : index
    %162 = vector.load %arg5[%c0_82, %c6_83, %c0_84] : memref<16x8x12xf32, #tpu.memory_space<vmem>>, vector<16x1x12xf32>
    %163 = vector.shape_cast %162 : vector<16x1x12xf32> to vector<16x12xf32>
    %164 = vector.shape_cast %161 : vector<16x12xf32> to vector<16x1x12xf32>
    tpu.vector_store %arg5[%c0_82, %c6_83, %c0_84], %164 {strides = array<i32>} : memref<16x8x12xf32, #tpu.memory_space<vmem>>, vector<16x1x12xf32>,
    %c7 = arith.constant 7 : index
    %c0_85 = arith.constant 0 : index
    %165 = memref.load %arg1[%c7, %c0_85] : memref<8x4xf32, #tpu.memory_space<smem>>
    %166 = vector.broadcast %165 : f32 to vector<16x12xf32>
    %167 = arith.mulf %5, %166 : vector<16x12xf32>
    %c7_86 = arith.constant 7 : index
    %c1_87 = arith.constant 1 : index
    %168 = memref.load %arg1[%c7_86, %c1_87] : memref<8x4xf32, #tpu.memory_space<smem>>
    %169 = vector.broadcast %168 : f32 to vector<16x12xf32>
    %170 = arith.mulf %9, %169 : vector<16x12xf32>
    %171 = arith.addf %167, %170 : vector<16x12xf32>
    %c7_88 = arith.constant 7 : index
    %c2_89 = arith.constant 2 : index
    %172 = memref.load %arg1[%c7_88, %c2_89] : memref<8x4xf32, #tpu.memory_space<smem>>
    %173 = vector.broadcast %172 : f32 to vector<16x12xf32>
    %174 = arith.mulf %13, %173 : vector<16x12xf32>
    %175 = arith.addf %171, %174 : vector<16x12xf32>
    %c7_90 = arith.constant 7 : index
    %c3_91 = arith.constant 3 : index
    %176 = memref.load %arg1[%c7_90, %c3_91] : memref<8x4xf32, #tpu.memory_space<smem>>
    %177 = vector.broadcast %176 : f32 to vector<16x12xf32>
    %178 = arith.mulf %17, %177 : vector<16x12xf32>
    %179 = arith.addf %175, %178 : vector<16x12xf32>
    %c7_92 = arith.constant 7 : index
    %180 = memref.load %arg2[%c7_92] : memref<8xf32, #tpu.memory_space<smem>>
    %181 = vector.broadcast %180 : f32 to vector<16x12xf32>
    %182 = arith.addf %179, %181 : vector<16x12xf32>
    %c0_93 = arith.constant 0 : index
    %c7_94 = arith.constant 7 : index
    %c0_95 = arith.constant 0 : index
    %183 = vector.load %arg5[%c0_93, %c7_94, %c0_95] : memref<16x8x12xf32, #tpu.memory_space<vmem>>, vector<16x1x12xf32>
    %184 = vector.shape_cast %183 : vector<16x1x12xf32> to vector<16x12xf32>
    %185 = vector.shape_cast %182 : vector<16x12xf32> to vector<16x1x12xf32>
    tpu.vector_store %arg5[%c0_93, %c7_94, %c0_95], %185 {strides = array<i32>} : memref<16x8x12xf32, #tpu.memory_space<vmem>>, vector<16x1x12xf32>,
    return
  }
  func.func @transform_0(%arg0: i32) -> (i32, i32) {
    %c0_i32 = arith.constant 0 : i32
    %c0_i32_0 = arith.constant 0 : i32
    %c0_i32_1 = arith.constant 0 : i32
    return %c0_i32, %c0_i32_0 : i32, i32
  }
  func.func @transform_1(%arg0: i32) -> i32 {
    %c0_i32 = arith.constant 0 : i32
    %c0_i32_0 = arith.constant 0 : i32
    return %c0_i32 : i32
  }
  func.func @transform_2(%arg0: i32) -> (i32, i32) {
    %c0_i32 = arith.constant 0 : i32
    %c0_i32_0 = arith.constant 0 : i32
    %c0_i32_1 = arith.constant 0 : i32
    return %c0_i32, %c0_i32_0 : i32, i32
  }
  func.func @transform_3(%arg0: i32) -> (i32, i32, i32) {
    %c0_i32 = arith.constant 0 : i32
    %c0_i32_0 = arith.constant 0 : i32
    %c0_i32_1 = arith.constant 0 : i32
    return %arg0, %c0_i32, %c0_i32_0 : i32, i32, i32
  }
  func.func @transform_4(%arg0: i32) -> (i32, i32, i32) {
    %c0_i32 = arith.constant 0 : i32
    %c0_i32_0 = arith.constant 0 : i32
    %c0_i32_1 = arith.constant 0 : i32
    return %arg0, %c0_i32, %c0_i32_0 : i32, i32, i32
  }
}

module attributes {stable_mosaic.version = 11 : i64} {
  func.func @_coboundary_kernel(%arg0: i32, %arg1: memref<8x4xf32, #tpu.memory_space<smem>>, %arg2: memref<8xf32, #tpu.memory_space<smem>>, %arg3: memref<16x12xbf16, #tpu.memory_space<vmem>>, %arg4: memref<16x4x16xf32, #tpu.memory_space<vmem>>, %arg5: memref<16x8x12xf32, #tpu.memory_space<vmem>>) attributes {dimension_semantics = [#tpu.dimension_semantics<parallel>], iteration_bounds = array<i64: 1>, scalar_prefetch = 0 : i64, scratch_operands = 0 : i64, tpu.core_type = #tpu.core_type<tc>, window_params = [{transform_indices = @transform_0, window_bounds = array<i64: 8, 4>}, {transform_indices = @transform_1, window_bounds = array<i64: 8>}, {pipeline_mode = #tpu.pipeline_mode<synchronous>, transform_indices = @transform_2, window_bounds = array<i64: 16, 12>}, {transform_indices = @transform_3, window_bounds = array<i64: 16, 4, 16>}, {transform_indices = @transform_4, window_bounds = array<i64: 16, 8, 12>}]} {
    %c0 = arith.constant 0 : index
    %c0_0 = arith.constant 0 : index
    %c0_1 = arith.constant 0 : index
    %0 = vector.load %arg4[%c0, %c0_0, %c0_1] : memref<16x4x16xf32, #tpu.memory_space<vmem>>, vector<16x4x16xf32>
    %c0_2 = arith.constant 0 : index
    %c0_3 = arith.constant 0 : index
    %1 = vector.load %arg3[%c0_2, %c0_3] : memref<16x12xbf16, #tpu.memory_space<vmem>>, vector<16x12xbf16>
    %2 = vector.extract_strided_slice %0 {offsets = [0, 0, 0], sizes = [16, 1, 16], strides = [1, 1, 1]} : vector<16x4x16xf32> to vector<16x1x16xf32>
    %3 = vector.shape_cast %2 : vector<16x1x16xf32> to vector<16x16xf32>
    %4 = arith.truncf %3 : vector<16x16xf32> to vector<16x16xbf16>
    %cst = arith.constant dense<0.000000e+00> : vector<16x12xf32>
    %5 = tpu.matmul %4, %1, %cst {dimension_numbers = #tpu.dot_dimension_numbers<[1], [0], [0], [1], [0, 0, 1, 1], [], []>} : vector<16x16xbf16>, vector<16x12xbf16>, vector<16x12xf32> -> vector<16x12xf32>
    %6 = vector.extract_strided_slice %0 {offsets = [0, 1, 0], sizes = [16, 1, 16], strides = [1, 1, 1]} : vector<16x4x16xf32> to vector<16x1x16xf32>
    %7 = vector.shape_cast %6 : vector<16x1x16xf32> to vector<16x16xf32>
    %8 = arith.truncf %7 : vector<16x16xf32> to vector<16x16xbf16>
    %cst_4 = arith.constant dense<0.000000e+00> : vector<16x12xf32>
    %9 = tpu.matmul %8, %1, %cst_4 {dimension_numbers = #tpu.dot_dimension_numbers<[1], [0], [0], [1], [0, 0, 1, 1], [], []>} : vector<16x16xbf16>, vector<16x12xbf16>, vector<16x12xf32> -> vector<16x12xf32>
    %10 = vector.extract_strided_slice %0 {offsets = [0, 2, 0], sizes = [16, 1, 16], strides = [1, 1, 1]} : vector<16x4x16xf32> to vector<16x1x16xf32>
    %11 = vector.shape_cast %10 : vector<16x1x16xf32> to vector<16x16xf32>
    %12 = arith.truncf %11 : vector<16x16xf32> to vector<16x16xbf16>
    %cst_5 = arith.constant dense<0.000000e+00> : vector<16x12xf32>
    %13 = tpu.matmul %12, %1, %cst_5 {dimension_numbers = #tpu.dot_dimension_numbers<[1], [0], [0], [1], [0, 0, 1, 1], [], []>} : vector<16x16xbf16>, vector<16x12xbf16>, vector<16x12xf32> -> vector<16x12xf32>
    %14 = vector.extract_strided_slice %0 {offsets = [0, 3, 0], sizes = [16, 1, 16], strides = [1, 1, 1]} : vector<16x4x16xf32> to vector<16x1x16xf32>
    %15 = vector.shape_cast %14 : vector<16x1x16xf32> to vector<16x16xf32>
    %16 = arith.truncf %15 : vector<16x16xf32> to vector<16x16xbf16>
    %cst_6 = arith.constant dense<0.000000e+00> : vector<16x12xf32>
    %17 = tpu.matmul %16, %1, %cst_6 {dimension_numbers = #tpu.dot_dimension_numbers<[1], [0], [0], [1], [0, 0, 1, 1], [], []>} : vector<16x16xbf16>, vector<16x12xbf16>, vector<16x12xf32> -> vector<16x12xf32>
    %c0_7 = arith.constant 0 : index
    %c0_8 = arith.constant 0 : index
    %18 = memref.load %arg1[%c0_7, %c0_8] : memref<8x4xf32, #tpu.memory_space<smem>>
    %19 = vector.broadcast %18 : f32 to vector<16x12xf32>
    %20 = arith.mulf %5, %19 : vector<16x12xf32>
    %c0_9 = arith.constant 0 : index
    %c1 = arith.constant 1 : index
    %21 = memref.load %arg1[%c0_9, %c1] : memref<8x4xf32, #tpu.memory_space<smem>>
    %22 = vector.broadcast %21 : f32 to vector<16x12xf32>
    %23 = arith.mulf %9, %22 : vector<16x12xf32>
    %24 = arith.addf %20, %23 : vector<16x12xf32>
    %c0_10 = arith.constant 0 : index
    %c2 = arith.constant 2 : index
    %25 = memref.load %arg1[%c0_10, %c2] : memref<8x4xf32, #tpu.memory_space<smem>>
    %26 = vector.broadcast %25 : f32 to vector<16x12xf32>
    %27 = arith.mulf %13, %26 : vector<16x12xf32>
    %28 = arith.addf %24, %27 : vector<16x12xf32>
    %c0_11 = arith.constant 0 : index
    %c3 = arith.constant 3 : index
    %29 = memref.load %arg1[%c0_11, %c3] : memref<8x4xf32, #tpu.memory_space<smem>>
    %30 = vector.broadcast %29 : f32 to vector<16x12xf32>
    %31 = arith.mulf %17, %30 : vector<16x12xf32>
    %32 = arith.addf %28, %31 : vector<16x12xf32>
    %c0_12 = arith.constant 0 : index
    %33 = memref.load %arg2[%c0_12] : memref<8xf32, #tpu.memory_space<smem>>
    %34 = vector.broadcast %33 : f32 to vector<16x12xf32>
    %35 = arith.addf %32, %34 : vector<16x12xf32>
    %c0_13 = arith.constant 0 : index
    %c0_14 = arith.constant 0 : index
    %c0_15 = arith.constant 0 : index
    %36 = vector.load %arg5[%c0_13, %c0_14, %c0_15] : memref<16x8x12xf32, #tpu.memory_space<vmem>>, vector<16x1x12xf32>
    %37 = vector.shape_cast %36 : vector<16x1x12xf32> to vector<16x12xf32>
    %38 = vector.shape_cast %35 : vector<16x12xf32> to vector<16x1x12xf32>
    tpu.vector_store %arg5[%c0_13, %c0_14, %c0_15], %38 {strides = array<i32>} : memref<16x8x12xf32, #tpu.memory_space<vmem>>, vector<16x1x12xf32>,
    %c1_16 = arith.constant 1 : index
    %c0_17 = arith.constant 0 : index
    %39 = memref.load %arg1[%c1_16, %c0_17] : memref<8x4xf32, #tpu.memory_space<smem>>
    %40 = vector.broadcast %39 : f32 to vector<16x12xf32>
    %41 = arith.mulf %5, %40 : vector<16x12xf32>
    %c1_18 = arith.constant 1 : index
    %c1_19 = arith.constant 1 : index
    %42 = memref.load %arg1[%c1_18, %c1_19] : memref<8x4xf32, #tpu.memory_space<smem>>
    %43 = vector.broadcast %42 : f32 to vector<16x12xf32>
    %44 = arith.mulf %9, %43 : vector<16x12xf32>
    %45 = arith.addf %41, %44 : vector<16x12xf32>
    %c1_20 = arith.constant 1 : index
    %c2_21 = arith.constant 2 : index
    %46 = memref.load %arg1[%c1_20, %c2_21] : memref<8x4xf32, #tpu.memory_space<smem>>
    %47 = vector.broadcast %46 : f32 to vector<16x12xf32>
    %48 = arith.mulf %13, %47 : vector<16x12xf32>
    %49 = arith.addf %45, %48 : vector<16x12xf32>
    %c1_22 = arith.constant 1 : index
    %c3_23 = arith.constant 3 : index
    %50 = memref.load %arg1[%c1_22, %c3_23] : memref<8x4xf32, #tpu.memory_space<smem>>
    %51 = vector.broadcast %50 : f32 to vector<16x12xf32>
    %52 = arith.mulf %17, %51 : vector<16x12xf32>
    %53 = arith.addf %49, %52 : vector<16x12xf32>
    %c1_24 = arith.constant 1 : index
    %54 = memref.load %arg2[%c1_24] : memref<8xf32, #tpu.memory_space<smem>>
    %55 = vector.broadcast %54 : f32 to vector<16x12xf32>
    %56 = arith.addf %53, %55 : vector<16x12xf32>
    %c0_25 = arith.constant 0 : index
    %c1_26 = arith.constant 1 : index
    %c0_27 = arith.constant 0 : index
    %57 = vector.load %arg5[%c0_25, %c1_26, %c0_27] : memref<16x8x12xf32, #tpu.memory_space<vmem>>, vector<16x1x12xf32>
    %58 = vector.shape_cast %57 : vector<16x1x12xf32> to vector<16x12xf32>
    %59 = vector.shape_cast %56 : vector<16x12xf32> to vector<16x1x12xf32>
    tpu.vector_store %arg5[%c0_25, %c1_26, %c0_27], %59 {strides = array<i32>} : memref<16x8x12xf32, #tpu.memory_space<vmem>>, vector<16x1x12xf32>,
    %c2_28 = arith.constant 2 : index
    %c0_29 = arith.constant 0 : index
    %60 = memref.load %arg1[%c2_28, %c0_29] : memref<8x4xf32, #tpu.memory_space<smem>>
    %61 = vector.broadcast %60 : f32 to vector<16x12xf32>
    %62 = arith.mulf %5, %61 : vector<16x12xf32>
    %c2_30 = arith.constant 2 : index
    %c1_31 = arith.constant 1 : index
    %63 = memref.load %arg1[%c2_30, %c1_31] : memref<8x4xf32, #tpu.memory_space<smem>>
    %64 = vector.broadcast %63 : f32 to vector<16x12xf32>
    %65 = arith.mulf %9, %64 : vector<16x12xf32>
    %66 = arith.addf %62, %65 : vector<16x12xf32>
    %c2_32 = arith.constant 2 : index
    %c2_33 = arith.constant 2 : index
    %67 = memref.load %arg1[%c2_32, %c2_33] : memref<8x4xf32, #tpu.memory_space<smem>>
    %68 = vector.broadcast %67 : f32 to vector<16x12xf32>
    %69 = arith.mulf %13, %68 : vector<16x12xf32>
    %70 = arith.addf %66, %69 : vector<16x12xf32>
    %c2_34 = arith.constant 2 : index
    %c3_35 = arith.constant 3 : index
    %71 = memref.load %arg1[%c2_34, %c3_35] : memref<8x4xf32, #tpu.memory_space<smem>>
    %72 = vector.broadcast %71 : f32 to vector<16x12xf32>
    %73 = arith.mulf %17, %72 : vector<16x12xf32>
    %74 = arith.addf %70, %73 : vector<16x12xf32>
    %c2_36 = arith.constant 2 : index
    %75 = memref.load %arg2[%c2_36] : memref<8xf32, #tpu.memory_space<smem>>
    %76 = vector.broadcast %75 : f32 to vector<16x12xf32>
    %77 = arith.addf %74, %76 : vector<16x12xf32>
    %c0_37 = arith.constant 0 : index
    %c2_38 = arith.constant 2 : index
    %c0_39 = arith.constant 0 : index
    %78 = vector.load %arg5[%c0_37, %c2_38, %c0_39] : memref<16x8x12xf32, #tpu.memory_space<vmem>>, vector<16x1x12xf32>
    %79 = vector.shape_cast %78 : vector<16x1x12xf32> to vector<16x12xf32>
    %80 = vector.shape_cast %77 : vector<16x12xf32> to vector<16x1x12xf32>
    tpu.vector_store %arg5[%c0_37, %c2_38, %c0_39], %80 {strides = array<i32>} : memref<16x8x12xf32, #tpu.memory_space<vmem>>, vector<16x1x12xf32>,
    %c3_40 = arith.constant 3 : index
    %c0_41 = arith.constant 0 : index
    %81 = memref.load %arg1[%c3_40, %c0_41] : memref<8x4xf32, #tpu.memory_space<smem>>
    %82 = vector.broadcast %81 : f32 to vector<16x12xf32>
    %83 = arith.mulf %5, %82 : vector<16x12xf32>
    %c3_42 = arith.constant 3 : index
    %c1_43 = arith.constant 1 : index
    %84 = memref.load %arg1[%c3_42, %c1_43] : memref<8x4xf32, #tpu.memory_space<smem>>
    %85 = vector.broadcast %84 : f32 to vector<16x12xf32>
    %86 = arith.mulf %9, %85 : vector<16x12xf32>
    %87 = arith.addf %83, %86 : vector<16x12xf32>
    %c3_44 = arith.constant 3 : index
    %c2_45 = arith.constant 2 : index
    %88 = memref.load %arg1[%c3_44, %c2_45] : memref<8x4xf32, #tpu.memory_space<smem>>
    %89 = vector.broadcast %88 : f32 to vector<16x12xf32>
    %90 = arith.mulf %13, %89 : vector<16x12xf32>
    %91 = arith.addf %87, %90 : vector<16x12xf32>
    %c3_46 = arith.constant 3 : index
    %c3_47 = arith.constant 3 : index
    %92 = memref.load %arg1[%c3_46, %c3_47] : memref<8x4xf32, #tpu.memory_space<smem>>
    %93 = vector.broadcast %92 : f32 to vector<16x12xf32>
    %94 = arith.mulf %17, %93 : vector<16x12xf32>
    %95 = arith.addf %91, %94 : vector<16x12xf32>
    %c3_48 = arith.constant 3 : index
    %96 = memref.load %arg2[%c3_48] : memref<8xf32, #tpu.memory_space<smem>>
    %97 = vector.broadcast %96 : f32 to vector<16x12xf32>
    %98 = arith.addf %95, %97 : vector<16x12xf32>
    %c0_49 = arith.constant 0 : index
    %c3_50 = arith.constant 3 : index
    %c0_51 = arith.constant 0 : index
    %99 = vector.load %arg5[%c0_49, %c3_50, %c0_51] : memref<16x8x12xf32, #tpu.memory_space<vmem>>, vector<16x1x12xf32>
    %100 = vector.shape_cast %99 : vector<16x1x12xf32> to vector<16x12xf32>
    %101 = vector.shape_cast %98 : vector<16x12xf32> to vector<16x1x12xf32>
    tpu.vector_store %arg5[%c0_49, %c3_50, %c0_51], %101 {strides = array<i32>} : memref<16x8x12xf32, #tpu.memory_space<vmem>>, vector<16x1x12xf32>,
    %c4 = arith.constant 4 : index
    %c0_52 = arith.constant 0 : index
    %102 = memref.load %arg1[%c4, %c0_52] : memref<8x4xf32, #tpu.memory_space<smem>>
    %103 = vector.broadcast %102 : f32 to vector<16x12xf32>
    %104 = arith.mulf %5, %103 : vector<16x12xf32>
    %c4_53 = arith.constant 4 : index
    %c1_54 = arith.constant 1 : index
    %105 = memref.load %arg1[%c4_53, %c1_54] : memref<8x4xf32, #tpu.memory_space<smem>>
    %106 = vector.broadcast %105 : f32 to vector<16x12xf32>
    %107 = arith.mulf %9, %106 : vector<16x12xf32>
    %108 = arith.addf %104, %107 : vector<16x12xf32>
    %c4_55 = arith.constant 4 : index
    %c2_56 = arith.constant 2 : index
    %109 = memref.load %arg1[%c4_55, %c2_56] : memref<8x4xf32, #tpu.memory_space<smem>>
    %110 = vector.broadcast %109 : f32 to vector<16x12xf32>
    %111 = arith.mulf %13, %110 : vector<16x12xf32>
    %112 = arith.addf %108, %111 : vector<16x12xf32>
    %c4_57 = arith.constant 4 : index
    %c3_58 = arith.constant 3 : index
    %113 = memref.load %arg1[%c4_57, %c3_58] : memref<8x4xf32, #tpu.memory_space<smem>>
    %114 = vector.broadcast %113 : f32 to vector<16x12xf32>
    %115 = arith.mulf %17, %114 : vector<16x12xf32>
    %116 = arith.addf %112, %115 : vector<16x12xf32>
    %c4_59 = arith.constant 4 : index
    %117 = memref.load %arg2[%c4_59] : memref<8xf32, #tpu.memory_space<smem>>
    %118 = vector.broadcast %117 : f32 to vector<16x12xf32>
    %119 = arith.addf %116, %118 : vector<16x12xf32>
    %c0_60 = arith.constant 0 : index
    %c4_61 = arith.constant 4 : index
    %c0_62 = arith.constant 0 : index
    %120 = vector.load %arg5[%c0_60, %c4_61, %c0_62] : memref<16x8x12xf32, #tpu.memory_space<vmem>>, vector<16x1x12xf32>
    %121 = vector.shape_cast %120 : vector<16x1x12xf32> to vector<16x12xf32>
    %122 = vector.shape_cast %119 : vector<16x12xf32> to vector<16x1x12xf32>
    tpu.vector_store %arg5[%c0_60, %c4_61, %c0_62], %122 {strides = array<i32>} : memref<16x8x12xf32, #tpu.memory_space<vmem>>, vector<16x1x12xf32>,
    %c5 = arith.constant 5 : index
    %c0_63 = arith.constant 0 : index
    %123 = memref.load %arg1[%c5, %c0_63] : memref<8x4xf32, #tpu.memory_space<smem>>
    %124 = vector.broadcast %123 : f32 to vector<16x12xf32>
    %125 = arith.mulf %5, %124 : vector<16x12xf32>
    %c5_64 = arith.constant 5 : index
    %c1_65 = arith.constant 1 : index
    %126 = memref.load %arg1[%c5_64, %c1_65] : memref<8x4xf32, #tpu.memory_space<smem>>
    %127 = vector.broadcast %126 : f32 to vector<16x12xf32>
    %128 = arith.mulf %9, %127 : vector<16x12xf32>
    %129 = arith.addf %125, %128 : vector<16x12xf32>
    %c5_66 = arith.constant 5 : index
    %c2_67 = arith.constant 2 : index
    %130 = memref.load %arg1[%c5_66, %c2_67] : memref<8x4xf32, #tpu.memory_space<smem>>
    %131 = vector.broadcast %130 : f32 to vector<16x12xf32>
    %132 = arith.mulf %13, %131 : vector<16x12xf32>
    %133 = arith.addf %129, %132 : vector<16x12xf32>
    %c5_68 = arith.constant 5 : index
    %c3_69 = arith.constant 3 : index
    %134 = memref.load %arg1[%c5_68, %c3_69] : memref<8x4xf32, #tpu.memory_space<smem>>
    %135 = vector.broadcast %134 : f32 to vector<16x12xf32>
    %136 = arith.mulf %17, %135 : vector<16x12xf32>
    %137 = arith.addf %133, %136 : vector<16x12xf32>
    %c5_70 = arith.constant 5 : index
    %138 = memref.load %arg2[%c5_70] : memref<8xf32, #tpu.memory_space<smem>>
    %139 = vector.broadcast %138 : f32 to vector<16x12xf32>
    %140 = arith.addf %137, %139 : vector<16x12xf32>
    %c0_71 = arith.constant 0 : index
    %c5_72 = arith.constant 5 : index
    %c0_73 = arith.constant 0 : index
    %141 = vector.load %arg5[%c0_71, %c5_72, %c0_73] : memref<16x8x12xf32, #tpu.memory_space<vmem>>, vector<16x1x12xf32>
    %142 = vector.shape_cast %141 : vector<16x1x12xf32> to vector<16x12xf32>
    %143 = vector.shape_cast %140 : vector<16x12xf32> to vector<16x1x12xf32>
    tpu.vector_store %arg5[%c0_71, %c5_72, %c0_73], %143 {strides = array<i32>} : memref<16x8x12xf32, #tpu.memory_space<vmem>>, vector<16x1x12xf32>,
    %c6 = arith.constant 6 : index
    %c0_74 = arith.constant 0 : index
    %144 = memref.load %arg1[%c6, %c0_74] : memref<8x4xf32, #tpu.memory_space<smem>>
    %145 = vector.broadcast %144 : f32 to vector<16x12xf32>
    %146 = arith.mulf %5, %145 : vector<16x12xf32>
    %c6_75 = arith.constant 6 : index
    %c1_76 = arith.constant 1 : index
    %147 = memref.load %arg1[%c6_75, %c1_76] : memref<8x4xf32, #tpu.memory_space<smem>>
    %148 = vector.broadcast %147 : f32 to vector<16x12xf32>
    %149 = arith.mulf %9, %148 : vector<16x12xf32>
    %150 = arith.addf %146, %149 : vector<16x12xf32>
    %c6_77 = arith.constant 6 : index
    %c2_78 = arith.constant 2 : index
    %151 = memref.load %arg1[%c6_77, %c2_78] : memref<8x4xf32, #tpu.memory_space<smem>>
    %152 = vector.broadcast %151 : f32 to vector<16x12xf32>
    %153 = arith.mulf %13, %152 : vector<16x12xf32>
    %154 = arith.addf %150, %153 : vector<16x12xf32>
    %c6_79 = arith.constant 6 : index
    %c3_80 = arith.constant 3 : index
    %155 = memref.load %arg1[%c6_79, %c3_80] : memref<8x4xf32, #tpu.memory_space<smem>>
    %156 = vector.broadcast %155 : f32 to vector<16x12xf32>
    %157 = arith.mulf %17, %156 : vector<16x12xf32>
    %158 = arith.addf %154, %157 : vector<16x12xf32>
    %c6_81 = arith.constant 6 : index
    %159 = memref.load %arg2[%c6_81] : memref<8xf32, #tpu.memory_space<smem>>
    %160 = vector.broadcast %159 : f32 to vector<16x12xf32>
    %161 = arith.addf %158, %160 : vector<16x12xf32>
    %c0_82 = arith.constant 0 : index
    %c6_83 = arith.constant 6 : index
    %c0_84 = arith.constant 0 : index
    %162 = vector.load %arg5[%c0_82, %c6_83, %c0_84] : memref<16x8x12xf32, #tpu.memory_space<vmem>>, vector<16x1x12xf32>
    %163 = vector.shape_cast %162 : vector<16x1x12xf32> to vector<16x12xf32>
    %164 = vector.shape_cast %161 : vector<16x12xf32> to vector<16x1x12xf32>
    tpu.vector_store %arg5[%c0_82, %c6_83, %c0_84], %164 {strides = array<i32>} : memref<16x8x12xf32, #tpu.memory_space<vmem>>, vector<16x1x12xf32>,
    %c7 = arith.constant 7 : index
    %c0_85 = arith.constant 0 : index
    %165 = memref.load %arg1[%c7, %c0_85] : memref<8x4xf32, #tpu.memory_space<smem>>
    %166 = vector.broadcast %165 : f32 to vector<16x12xf32>
    %167 = arith.mulf %5, %166 : vector<16x12xf32>
    %c7_86 = arith.constant 7 : index
    %c1_87 = arith.constant 1 : index
    %168 = memref.load %arg1[%c7_86, %c1_87] : memref<8x4xf32, #tpu.memory_space<smem>>
    %169 = vector.broadcast %168 : f32 to vector<16x12xf32>
    %170 = arith.mulf %9, %169 : vector<16x12xf32>
    %171 = arith.addf %167, %170 : vector<16x12xf32>
    %c7_88 = arith.constant 7 : index
    %c2_89 = arith.constant 2 : index
    %172 = memref.load %arg1[%c7_88, %c2_89] : memref<8x4xf32, #tpu.memory_space<smem>>
    %173 = vector.broadcast %172 : f32 to vector<16x12xf32>
    %174 = arith.mulf %13, %173 : vector<16x12xf32>
    %175 = arith.addf %171, %174 : vector<16x12xf32>
    %c7_90 = arith.constant 7 : index
    %c3_91 = arith.constant 3 : index
    %176 = memref.load %arg1[%c7_90, %c3_91] : memref<8x4xf32, #tpu.memory_space<smem>>
    %177 = vector.broadcast %176 : f32 to vector<16x12xf32>
    %178 = arith.mulf %17, %177 : vector<16x12xf32>
    %179 = arith.addf %175, %178 : vector<16x12xf32>
    %c7_92 = arith.constant 7 : index
    %180 = memref.load %arg2[%c7_92] : memref<8xf32, #tpu.memory_space<smem>>
    %181 = vector.broadcast %180 : f32 to vector<16x12xf32>
    %182 = arith.addf %179, %181 : vector<16x12xf32>
    %c0_93 = arith.constant 0 : index
    %c7_94 = arith.constant 7 : index
    %c0_95 = arith.constant 0 : index
    %183 = vector.load %arg5[%c0_93, %c7_94, %c0_95] : memref<16x8x12xf32, #tpu.memory_space<vmem>>, vector<16x1x12xf32>
    %184 = vector.shape_cast %183 : vector<16x1x12xf32> to vector<16x12xf32>
    %185 = vector.shape_cast %182 : vector<16x12xf32> to vector<16x1x12xf32>
    tpu.vector_store %arg5[%c0_93, %c7_94, %c0_95], %185 {strides = array<i32>} : memref<16x8x12xf32, #tpu.memory_space<vmem>>, vector<16x1x12xf32>,
    return
  }
  func.func @transform_0(%arg0: i32) -> (i32, i32) {
    %c0_i32 = arith.constant 0 : i32
    %c0_i32_0 = arith.constant 0 : i32
    %c0_i32_1 = arith.constant 0 : i32
    return %c0_i32, %c0_i32_0 : i32, i32
  }
  func.func @transform_1(%arg0: i32) -> i32 {
    %c0_i32 = arith.constant 0 : i32
    %c0_i32_0 = arith.constant 0 : i32
    return %c0_i32 : i32
  }
  func.func @transform_2(%arg0: i32) -> (i32, i32) {
    %c0_i32 = arith.constant 0 : i32
    %c0_i32_0 = arith.constant 0 : i32
    %c0_i32_1 = arith.constant 0 : i32
    return %c0_i32, %c0_i32_0 : i32, i32
  }
  func.func @transform_3(%arg0: i32) -> (i32, i32, i32) {
    %c0_i32 = arith.constant 0 : i32
    %c0_i32_0 = arith.constant 0 : i32
    %c0_i32_1 = arith.constant 0 : i32
    return %arg0, %c0_i32, %c0_i32_0 : i32, i32, i32
  }
  func.func @transform_4(%arg0: i32) -> (i32, i32, i32) {
    %c0_i32 = arith.constant 0 : i32
    %c0_i32_0 = arith.constant 0 : i32
    %c0_i32_1 = arith.constant 0 : i32
    return %arg0, %c0_i32, %c0_i32_0 : i32, i32, i32
  }
}

</mosaic_0001>

<llo_original>
// kernel: tpu_custom_call.1
$region0: #{tpu_custom_call.1}
  #allocation0 [shape = 'u32[]', space=smem, size = 0x4, offset = 0x4, fixed_abs, tag = 'smem constant byte address 0x4 - core index']
  #allocation1 [shape = 'u32[144,128]{1,0:T(1,128)}', space=vmem, size = 0x12000, scoped, tag = 'internal scratch']
  %s0 = inlined_call_operand.vmem [shape: f32[8,4], index: 0, kind: input, shape index: {}]
  %s1 = inlined_call_operand.vmem [shape: f32[8], index: 1, kind: input, shape index: {}]
  %s2 = inlined_call_operand.vmem [shape: bf16[16,12], index: 2, kind: input, shape index: {}]
  %s3 = inlined_call_operand.vmem [shape: f32[2,4,16], index: 3, kind: input, shape index: {}]
  %s4 = inlined_call_operand.hbm [shape: f32[2,8,12], index: 4, kind: output, shape index: {}]
  %s5 = sld [smem:[#allocation0]]
  $region34: #{tpu_custom_call.1} parent=0
    _
  %s7 = ssub.s32 1, %s5
  %s8 = scalar_select 0, %s7, %s5
  $region1: #{tpu_custom_call.1} parent=0
    #allocation2 [shape = 'u8[4096]{0}', space=smem, size = 0x1000, scoped, tag = 'input window, operand 0, single buffered']
    #allocation3 [shape = 's32[1]{0}', space=sflag, size = 0x4, scoped, tag = 'scoped memory for tpu_custom_call.1']
    #allocation4 [shape = 's32[1]{0}', space=sflag, size = 0x4, scoped, tag = 'scoped memory for tpu_custom_call.1']
    #allocation5 [shape = 'u8[512]{0}', space=smem, size = 0x200, scoped, tag = 'input window, operand 1, single buffered']
    #allocation6 [shape = 's32[1]{0}', space=sflag, size = 0x4, scoped, tag = 'scoped memory for tpu_custom_call.1']
    #allocation7 [shape = 'u8[65536]{0}', space=vmem, size = 0x10000, scoped, tag = 'output window, operand 0, single buffered']
    %9 = vsyncpa [#allocation4], 0
    %10 = vsyncpa [#allocation6], 0
    %11 = vsyncpa [#allocation3], 0
    // Predicated region
    $region2: #{tpu_custom_call.1} parent=1 // pred_check
      _
    $region3: #{tpu_custom_call.1} parent=1 // pred_check_branch
      %13 = sbr.rel (0) target = $region5
    $region4: #{tpu_custom_call.1} parent=1 // pred_region
      %s15 = ssub.s32 128, 128
      %16 = vsyncadd [#allocation4], %s15
      %s18 = sshll.u32 %s0, 4
      %s19 = int_to_ptr.vmem [resolvable:$true] %s18
      %21 = dma.vmem_to_smem %s19, 128, [#allocation2], [#allocation4]
    $region5: #{tpu_custom_call.1} parent=1 // pred_fallthru
      _
    // Predicated region
    $region6: #{tpu_custom_call.1} parent=1 // pred_check
      _
    $region7: #{tpu_custom_call.1} parent=1 // pred_check_branch
      %23 = sbr.rel (0) target = $region9
    $region8: #{tpu_custom_call.1} parent=1 // pred_region
      %s25 = ssub.s32 16, 16
      %26 = vsyncadd [#allocation6], %s25
      %s28 = sshll.u32 %s1, 4
      %s29 = int_to_ptr.vmem [resolvable:$true] %s28
      %31 = dma.vmem_to_smem %s29, 16, [#allocation5], [#allocation6]
    $region9: #{tpu_custom_call.1} parent=1 // pred_fallthru
      _
    // Predicated region
    $region10: #{tpu_custom_call.1} parent=1 // pred_check
      _
    $region11: #{tpu_custom_call.1} parent=1 // pred_check_branch
      %33 = sbr.rel (0) target = $region13
    $region12: #{tpu_custom_call.1} parent=1 // pred_region
      _
    $region13: #{tpu_custom_call.1} parent=1 // pred_fallthru
      _
    // Predicated region
    $region14: #{tpu_custom_call.1} parent=1 // pred_check
      _
    $region15: #{tpu_custom_call.1} parent=1 // pred_check_branch
      %35 = sbr.rel (0) target = $region17
    $region16: #{tpu_custom_call.1} parent=1 // pred_region
      _
    $region17: #{tpu_custom_call.1} parent=1 // pred_fallthru
      _
    // Predicated region
    $region18: #{tpu_custom_call.1} parent=1 // pred_check
      _
    $region19: #{tpu_custom_call.1} parent=1 // pred_check_branch
      %37 = sbr.rel (0) target = $region21
    $region20: #{tpu_custom_call.1} parent=1 // pred_region
      %38 = dma.done [#allocation4], 128
    $region21: #{tpu_custom_call.1} parent=1 // pred_fallthru
      _
    // Predicated region
    $region22: #{tpu_custom_call.1} parent=1 // pred_check
      _
    $region23: #{tpu_custom_call.1} parent=1 // pred_check_branch
      %40 = sbr.rel (0) target = $region25
    $region24: #{tpu_custom_call.1} parent=1 // pred_region
      %41 = dma.done [#allocation6], 16
    $region25: #{tpu_custom_call.1} parent=1 // pred_fallthru
      _
    %42 = sfence
    %v44 = vld [vmem:[%s3] sm:$0xf]
    %v45 = vld [vmem:[%s3 + $0x4] sm:$0xf]
    %v46 = vld [vmem:[%s3 + $0x8] sm:$0xf]
    %v47 = vld [vmem:[%s3 + $0xc] sm:$0xf]
    %v48 = vld [vmem:[%s3 + $0x10] sm:$0xf]
    %v49 = vld [vmem:[%s3 + $0x14] sm:$0xf]
    %v50 = vld [vmem:[%s3 + $0x18] sm:$0xf]
    %v51 = vld [vmem:[%s3 + $0x1c] sm:$0xf]
    %v52 = vld [vmem:[%s3 + $0x20] sm:$0xf]
    %v53 = vld [vmem:[%s3 + $0x24] sm:$0xf]
    %v54 = vld [vmem:[%s3 + $0x28] sm:$0xf]
    %v55 = vld [vmem:[%s3 + $0x2c] sm:$0xf]
    %v56 = vld [vmem:[%s3 + $0x30] sm:$0xf]
    %v57 = vld [vmem:[%s3 + $0x34] sm:$0xf]
    %v58 = vld [vmem:[%s3 + $0x38] sm:$0xf]
    %v59 = vld [vmem:[%s3 + $0x3c] sm:$0xf]
    %v60 = vld [vmem:[%s2] sm:$0xf]
    %v61 = vld [vmem:[%s2 + $0x4] sm:$0xf]
    %v62 = vpack.c.bf16 %v44, %v44
    %v63 = vpack.c.bf16 %v45, %v45
    %v64 = vpack.c.bf16 %v46, %v46
    %v65 = vpack.c.bf16 %v47, %v47
    %v66 = vpack.c.bf16 %v48, %v48
    %v67 = vpack.c.bf16 %v49, %v49
    %v68 = vpack.c.bf16 %v50, %v50
    %v69 = vpack.c.bf16 %v51, %v51
    %v70 = vpack.c.bf16 %v52, %v52
    %v71 = vpack.c.bf16 %v53, %v53
    %v72 = vpack.c.bf16 %v54, %v54
    %v73 = vpack.c.bf16 %v55, %v55
    %v74 = vpack.c.bf16 %v56, %v56
    %v75 = vpack.c.bf16 %v57, %v57
    %v76 = vpack.c.bf16 %v58, %v58
    %v77 = vpack.c.bf16 %v59, %v59
    %v94 = vunpack.c.l.b16 %v62
    %v95 = vunpack.c.l.b16 %v63
    %v96 = vunpack.c.l.b16 %v64
    %v97 = vunpack.c.l.b16 %v65
    %v98 = vunpack.c.l.b16 %v66
    %v99 = vunpack.c.l.b16 %v67
    %v100 = vunpack.c.l.b16 %v68
    %v101 = vunpack.c.l.b16 %v69
    %v102 = vunpack.c.l.b16 %v70
    %v103 = vunpack.c.l.b16 %v71
    %v104 = vunpack.c.l.b16 %v72
    %v105 = vunpack.c.l.b16 %v73
    %v106 = vunpack.c.l.b16 %v74
    %v107 = vunpack.c.l.b16 %v75
    %v108 = vunpack.c.l.b16 %v76
    %v109 = vunpack.c.l.b16 %v77
    %v110 = vrot.slane %v95, 7
    %vm111 = vcmask 1041409
    %v112 = vsel %vm111, %v110, %v94
    %v113 = vrot.slane %v96, 6
    %vm114 = vcmask 1042434
    %v115 = vsel %vm114, %v113, %v112
    %v116 = vrot.slane %v97, 5
    %vm117 = vcmask 1043459
    %v118 = vsel %vm117, %v116, %v115
    %v119 = vrot.slane %v98, 4
    %vm120 = vcmask 1044484
    %v121 = vsel %vm120, %v119, %v118
    %v122 = vrot.slane %v99, 3
    %vm123 = vcmask 1045509
    %v124 = vsel %vm123, %v122, %v121
    %v125 = vrot.slane %v100, 2
    %vm126 = vcmask 1046534
    %v127 = vsel %vm126, %v125, %v124
    %v128 = vrot.slane %v101, 1
    %vm129 = vcmask 1047559
    %v130 = vsel %vm129, %v128, %v127
    %v131 = vrot.slane %v103, 7
    %v132 = vsel %vm111, %v131, %v102
    %v133 = vrot.slane %v104, 6
    %v134 = vsel %vm114, %v133, %v132
    %v135 = vrot.slane %v105, 5
    %v136 = vsel %vm117, %v135, %v134
    %v137 = vrot.slane %v106, 4
    %v138 = vsel %vm120, %v137, %v136
    %v139 = vrot.slane %v107, 3
    %v140 = vsel %vm123, %v139, %v138
    %v141 = vrot.slane %v108, 2
    %v142 = vsel %vm126, %v141, %v140
    %v143 = vrot.slane %v109, 1
    %v144 = vsel %vm129, %v143, %v142
    %v145 = vpack.c.b16 %v144, %v130
    %v148 = vunpack.c.l.b16 %v60
    %v149 = vunpack.c.l.b16 %v61
    %v150 = vpack.c.b16 %v149, %v148
    %vm152 = vcmask 130048
    %v154 = vsel %vm152, %v145, 0
    %156 = vmatprep.subr.bf16.mxu0 0
    %157 = vmatpush1.bf16.msra.mxu0 %v150
    %158 = vmatprep.subr.bf16.mxu0 0
    %159 = vmatpush1.bf16.msra.mxu0 0
    %160 = vmatprep.subr.bf16.mxu0 0
    %161 = vmatpush1.bf16.msra.mxu0 0
    %162 = vmatprep.subr.bf16.mxu0 0
    %163 = vmatpush1.bf16.msra.mxu0 0
    %164 = vmatprep.subr.bf16.mxu0 0
    %165 = vmatpush1.bf16.msra.mxu0 0
    %166 = vmatprep.subr.bf16.mxu0 0
    %167 = vmatpush1.bf16.msra.mxu0 0
    %168 = vmatprep.subr.bf16.mxu0 0
    %169 = vmatpush1.bf16.msra.mxu0 0
    %170 = vmatprep.subr.bf16.mxu0 0
    %171 = vmatpush1.bf16.msra.mxu0 0
    %172 = vmatprep.subr.bf16.mxu0 0
    %173 = vmatpush1.bf16.msra.mxu0 0
    %174 = vmatprep.subr.bf16.mxu0 0
    %175 = vmatpush1.bf16.msra.mxu0 0
    %176 = vmatprep.subr.bf16.mxu0 0
    %177 = vmatpush1.bf16.msra.mxu0 0
    %178 = vmatprep.subr.bf16.mxu0 0
    %179 = vmatpush1.bf16.msra.mxu0 0
    %180 = vmatprep.subr.bf16.mxu0 0
    %181 = vmatpush1.bf16.msra.mxu0 0
    %182 = vmatprep.subr.bf16.mxu0 0
    %183 = vmatpush1.bf16.msra.mxu0 0
    %184 = vmatprep.subr.bf16.mxu0 0
    %185 = vmatpush1.bf16.msra.mxu0 0
    %186 = vmatprep.subr.bf16.mxu0 0
    %187 = vmatpush1.bf16.msra.mxu0 0
    %188 = vmatprep.mubr.bf16.mxu0 0
    %189 = vmatmul.mubr.bf16.gmra.mrb[0].mxu0 %v154
    %v190 = vpop.f32.mrb[0].mxu0
    %v191 = vadd.f32 0.0, %v190
    %v192 = vpop.f32.mrb[0].mxu0
    %v193 = vpop.f32.mrb[0].mxu0
    %v194 = vadd.f32 0.0, %v193
    %v195 = vpop.f32.mrb[0].mxu0
    %196 = vdwg.mxu0
    %v197 = vrot.slane %v94, 1
    %v198 = vsel %vm111, %v95, %v197
    %v199 = vrot.slane %v96, 7
    %v200 = vsel %vm114, %v199, %v198
    %v201 = vrot.slane %v97, 6
    %v202 = vsel %vm117, %v201, %v200
    %v203 = vrot.slane %v98, 5
    %v204 = vsel %vm120, %v203, %v202
    %v205 = vrot.slane %v99, 4
    %v206 = vsel %vm123, %v205, %v204
    %v207 = vrot.slane %v100, 3
    %v208 = vsel %vm126, %v207, %v206
    %v209 = vrot.slane %v101, 2
    %v210 = vsel %vm129, %v209, %v208
    %v211 = vrot.slane %v102, 1
    %v212 = vsel %vm111, %v103, %v211
    %v213 = vrot.slane %v104, 7
    %v214 = vsel %vm114, %v213, %v212
    %v215 = vrot.slane %v105, 6
    %v216 = vsel %vm117, %v215, %v214
    %v217 = vrot.slane %v106, 5
    %v218 = vsel %vm120, %v217, %v216
    %v219 = vrot.slane %v107, 4
    %v220 = vsel %vm123, %v219, %v218
    %v221 = vrot.slane %v108, 3
    %v222 = vsel %vm126, %v221, %v220
    %v223 = vrot.slane %v109, 2
    %v224 = vsel %vm129, %v223, %v222
    %v225 = vpack.c.b16 %v224, %v210
    %v227 = vsel %vm152, %v225, 0
    %229 = vmatprep.subr.bf16.mxu0 0
    %230 = vmatpush1.bf16.msra.mxu0 %v150
    %231 = vmatprep.subr.bf16.mxu0 0
    %232 = vmatpush1.bf16.msra.mxu0 0
    %233 = vmatprep.subr.bf16.mxu0 0
    %234 = vmatpush1.bf16.msra.mxu0 0
    %235 = vmatprep.subr.bf16.mxu0 0
    %236 = vmatpush1.bf16.msra.mxu0 0
    %237 = vmatprep.subr.bf16.mxu0 0
    %238 = vmatpush1.bf16.msra.mxu0 0
    %239 = vmatprep.subr.bf16.mxu0 0
    %240 = vmatpush1.bf16.msra.mxu0 0
    %241 = vmatprep.subr.bf16.mxu0 0
    %242 = vmatpush1.bf16.msra.mxu0 0
    %243 = vmatprep.subr.bf16.mxu0 0
    %244 = vmatpush1.bf16.msra.mxu0 0
    %245 = vmatprep.subr.bf16.mxu0 0
    %246 = vmatpush1.bf16.msra.mxu0 0
    %247 = vmatprep.subr.bf16.mxu0 0
    %248 = vmatpush1.bf16.msra.mxu0 0
    %249 = vmatprep.subr.bf16.mxu0 0
    %250 = vmatpush1.bf16.msra.mxu0 0
    %251 = vmatprep.subr.bf16.mxu0 0
    %252 = vmatpush1.bf16.msra.mxu0 0
    %253 = vmatprep.subr.bf16.mxu0 0
    %254 = vmatpush1.bf16.msra.mxu0 0
    %255 = vmatprep.subr.bf16.mxu0 0
    %256 = vmatpush1.bf16.msra.mxu0 0
    %257 = vmatprep.subr.bf16.mxu0 0
    %258 = vmatpush1.bf16.msra.mxu0 0
    %259 = vmatprep.subr.bf16.mxu0 0
    %260 = vmatpush1.bf16.msra.mxu0 0
    %261 = vmatprep.mubr.bf16.mxu0 0
    %262 = vmatmul.mubr.bf16.gmra.mrb[0].mxu0 %v227
    %v263 = vpop.f32.mrb[0].mxu0
    %v264 = vadd.f32 0.0, %v263
    %v265 = vpop.f32.mrb[0].mxu0
    %v266 = vpop.f32.mrb[0].mxu0
    %v267 = vadd.f32 0.0, %v266
    %v268 = vpop.f32.mrb[0].mxu0
    %269 = vdwg.mxu0
    %v270 = vrot.slane %v94, 2
    %v271 = vrot.slane %v95, 1
    %v272 = vsel %vm111, %v271, %v270
    %v273 = vsel %vm114, %v96, %v272
    %v274 = vrot.slane %v97, 7
    %v275 = vsel %vm117, %v274, %v273
    %v276 = vrot.slane %v98, 6
    %v277 = vsel %vm120, %v276, %v275
    %v278 = vrot.slane %v99, 5
    %v279 = vsel %vm123, %v278, %v277
    %v280 = vrot.slane %v100, 4
    %v281 = vsel %vm126, %v280, %v279
    %v282 = vrot.slane %v101, 3
    %v283 = vsel %vm129, %v282, %v281
    %v284 = vrot.slane %v102, 2
    %v285 = vrot.slane %v103, 1
    %v286 = vsel %vm111, %v285, %v284
    %v287 = vsel %vm114, %v104, %v286
    %v288 = vrot.slane %v105, 7
    %v289 = vsel %vm117, %v288, %v287
    %v290 = vrot.slane %v106, 6
    %v291 = vsel %vm120, %v290, %v289
    %v292 = vrot.slane %v107, 5
    %v293 = vsel %vm123, %v292, %v291
    %v294 = vrot.slane %v108, 4
    %v295 = vsel %vm126, %v294, %v293
    %v296 = vrot.slane %v109, 3
    %v297 = vsel %vm129, %v296, %v295
    %v298 = vpack.c.b16 %v297, %v283
    %v300 = vsel %vm152, %v298, 0
    %302 = vmatprep.subr.bf16.mxu0 0
    %303 = vmatpush1.bf16.msra.mxu0 %v150
    %304 = vmatprep.subr.bf16.mxu0 0
    %305 = vmatpush1.bf16.msra.mxu0 0
    %306 = vmatprep.subr.bf16.mxu0 0
    %307 = vmatpush1.bf16.msra.mxu0 0
    %308 = vmatprep.subr.bf16.mxu0 0
    %309 = vmatpush1.bf16.msra.mxu0 0
    %310 = vmatprep.subr.bf16.mxu0 0
    %311 = vmatpush1.bf16.msra.mxu0 0
    %312 = vmatprep.subr.bf16.mxu0 0
    %313 = vmatpush1.bf16.msra.mxu0 0
    %314 = vmatprep.subr.bf16.mxu0 0
    %315 = vmatpush1.bf16.msra.mxu0 0
    %316 = vmatprep.subr.bf16.mxu0 0
    %317 = vmatpush1.bf16.msra.mxu0 0
    %318 = vmatprep.subr.bf16.mxu0 0
    %319 = vmatpush1.bf16.msra.mxu0 0
    %320 = vmatprep.subr.bf16.mxu0 0
    %321 = vmatpush1.bf16.msra.mxu0 0
    %322 = vmatprep.subr.bf16.mxu0 0
    %323 = vmatpush1.bf16.msra.mxu0 0
    %324 = vmatprep.subr.bf16.mxu0 0
    %325 = vmatpush1.bf16.msra.mxu0 0
    %326 = vmatprep.subr.bf16.mxu0 0
    %327 = vmatpush1.bf16.msra.mxu0 0
    %328 = vmatprep.subr.bf16.mxu0 0
    %329 = vmatpush1.bf16.msra.mxu0 0
    %330 = vmatprep.subr.bf16.mxu0 0
    %331 = vmatpush1.bf16.msra.mxu0 0
    %332 = vmatprep.subr.bf16.mxu0 0
    %333 = vmatpush1.bf16.msra.mxu0 0
    %334 = vmatprep.mubr.bf16.mxu0 0
    %335 = vmatmul.mubr.bf16.gmra.mrb[0].mxu0 %v300
    %v336 = vpop.f32.mrb[0].mxu0
    %v337 = vadd.f32 0.0, %v336
    %v338 = vpop.f32.mrb[0].mxu0
    %v339 = vpop.f32.mrb[0].mxu0
    %v340 = vadd.f32 0.0, %v339
    %v341 = vpop.f32.mrb[0].mxu0
    %342 = vdwg.mxu0
    %v343 = vrot.slane %v94, 3
    %v344 = vrot.slane %v95, 2
    %v345 = vsel %vm111, %v344, %v343
    %v346 = vrot.slane %v96, 1
    %v347 = vsel %vm114, %v346, %v345
    %v348 = vsel %vm117, %v97, %v347
    %v349 = vrot.slane %v98, 7
    %v350 = vsel %vm120, %v349, %v348
    %v351 = vrot.slane %v99, 6
    %v352 = vsel %vm123, %v351, %v350
    %v353 = vrot.slane %v100, 5
    %v354 = vsel %vm126, %v353, %v352
    %v355 = vrot.slane %v101, 4
    %v356 = vsel %vm129, %v355, %v354
    %v357 = vrot.slane %v102, 3
    %v358 = vrot.slane %v103, 2
    %v359 = vsel %vm111, %v358, %v357
    %v360 = vrot.slane %v104, 1
    %v361 = vsel %vm114, %v360, %v359
    %v362 = vsel %vm117, %v105, %v361
    %v363 = vrot.slane %v106, 7
    %v364 = vsel %vm120, %v363, %v362
    %v365 = vrot.slane %v107, 6
    %v366 = vsel %vm123, %v365, %v364
    %v367 = vrot.slane %v108, 5
    %v368 = vsel %vm126, %v367, %v366
    %v369 = vrot.slane %v109, 4
    %v370 = vsel %vm129, %v369, %v368
    %v371 = vpack.c.b16 %v370, %v356
    %v373 = vsel %vm152, %v371, 0
    %375 = vmatprep.subr.bf16.mxu0 0
    %376 = vmatpush1.bf16.msra.mxu0 %v150
    %377 = vmatprep.subr.bf16.mxu0 0
    %378 = vmatpush1.bf16.msra.mxu0 0
    %379 = vmatprep.subr.bf16.mxu0 0
    %380 = vmatpush1.bf16.msra.mxu0 0
    %381 = vmatprep.subr.bf16.mxu0 0
    %382 = vmatpush1.bf16.msra.mxu0 0
    %383 = vmatprep.subr.bf16.mxu0 0
    %384 = vmatpush1.bf16.msra.mxu0 0
    %385 = vmatprep.subr.bf16.mxu0 0
    %386 = vmatpush1.bf16.msra.mxu0 0
    %387 = vmatprep.subr.bf16.mxu0 0
    %388 = vmatpush1.bf16.msra.mxu0 0
    %389 = vmatprep.subr.bf16.mxu0 0
    %390 = vmatpush1.bf16.msra.mxu0 0
    %391 = vmatprep.subr.bf16.mxu0 0
    %392 = vmatpush1.bf16.msra.mxu0 0
    %393 = vmatprep.subr.bf16.mxu0 0
    %394 = vmatpush1.bf16.msra.mxu0 0
    %395 = vmatprep.subr.bf16.mxu0 0
    %396 = vmatpush1.bf16.msra.mxu0 0
    %397 = vmatprep.subr.bf16.mxu0 0
    %398 = vmatpush1.bf16.msra.mxu0 0
    %399 = vmatprep.subr.bf16.mxu0 0
    %400 = vmatpush1.bf16.msra.mxu0 0
    %401 = vmatprep.subr.bf16.mxu0 0
    %402 = vmatpush1.bf16.msra.mxu0 0
    %403 = vmatprep.subr.bf16.mxu0 0
    %404 = vmatpush1.bf16.msra.mxu0 0
    %405 = vmatprep.subr.bf16.mxu0 0
    %406 = vmatpush1.bf16.msra.mxu0 0
    %407 = vmatprep.mubr.bf16.mxu0 0
    %408 = vmatmul.mubr.bf16.gmra.mrb[0].mxu0 %v373
    %v409 = vpop.f32.mrb[0].mxu0
    %v410 = vadd.f32 0.0, %v409
    %v411 = vpop.f32.mrb[0].mxu0
    %v412 = vpop.f32.mrb[0].mxu0
    %v413 = vadd.f32 0.0, %v412
    %v414 = vpop.f32.mrb[0].mxu0
    %415 = vdwg.mxu0
    %s416 = sld [smem:[#allocation2]]
    %v417 = vstv %s416
    %v418 = vmul.f32 %v191, %v417
    %v419 = vmul.f32 %v194, %v417
    %s420 = sld [smem:[#allocation2 + $0x1]]
    %v421 = vstv %s420
    %v422 = vmul.f32 %v264, %v421
    %v423 = vmul.f32 %v267, %v421
    %v424 = vadd.f32 %v418, %v422
    %v425 = vadd.f32 %v419, %v423
    %s426 = sld [smem:[#allocation2 + $0x2]]
    %v427 = vstv %s426
    %v428 = vmul.f32 %v337, %v427
    %v429 = vmul.f32 %v340, %v427
    %v430 = vadd.f32 %v424, %v428
    %v431 = vadd.f32 %v425, %v429
    %s432 = sld [smem:[#allocation2 + $0x3]]
    %v433 = vstv %s432
    %v434 = vmul.f32 %v410, %v433
    %v435 = vmul.f32 %v413, %v433
    %v436 = vadd.f32 %v430, %v434
    %v437 = vadd.f32 %v431, %v435
    %s438 = sld [smem:[#allocation5]]
    %v439 = vstv %s438
    %v440 = vadd.f32 %v436, %v439
    %v441 = vadd.f32 %v437, %v439
    %v444 = vcombine.high %v440, %v440
    %v446 = vunpack.c.l.s4 1966171168
    %v447 = vunpack.c.0.s8 %v446
    %v448 = vlaneseq
    %v449 = vshrl.u32 %v448, 7
    %v450 = vsub.s32 %v447, %v449
    %v451 = vrot.slane %v440, %v450
    %v453 = vunpack.c.l.s4 1966171168
    %v454 = vunpack.c.0.s8 %v453
    %v455 = vlaneseq
    %v456 = vshrl.u32 %v455, 7
    %v457 = vsub.s32 %v454, %v456
    %v458 = vrot.slane %v444, %v457
    %v459 = vcombine.high %v451, %v451
    %v460 = vcombine.high %v458, %v458
    %v462 = vunpack.c.l.s4 1966171168
    %v463 = vunpack.c.0.s8 %v462
    %v464 = vlaneseq
    %v465 = vshrl.u32 %v464, 7
    %v466 = vsub.s32 %v463, %v465
    %v467 = vrot.slane %v451, %v466
    %v469 = vunpack.c.l.s4 1966171168
    %v470 = vunpack.c.0.s8 %v469
    %v471 = vlaneseq
    %v472 = vshrl.u32 %v471, 7
    %v473 = vsub.s32 %v470, %v472
    %v474 = vrot.slane %v458, %v473
    %v476 = vunpack.c.l.s4 1966171168
    %v477 = vunpack.c.0.s8 %v476
    %v478 = vlaneseq
    %v479 = vshrl.u32 %v478, 7
    %v480 = vsub.s32 %v477, %v479
    %v481 = vrot.slane %v459, %v480
    %v483 = vunpack.c.l.s4 1966171168
    %v484 = vunpack.c.0.s8 %v483
    %v485 = vlaneseq
    %v486 = vshrl.u32 %v485, 7
    %v487 = vsub.s32 %v484, %v486
    %v488 = vrot.slane %v460, %v487
    %v489 = vcombine.high %v467, %v467
    %v490 = vcombine.high %v474, %v474
    %v491 = vcombine.high %v481, %v481
    %v492 = vcombine.high %v488, %v488
    %v493 = vcombine.high %v441, %v441
    %v495 = vunpack.c.l.s4 1966171168
    %v496 = vunpack.c.0.s8 %v495
    %v497 = vlaneseq
    %v498 = vshrl.u32 %v497, 7
    %v499 = vsub.s32 %v496, %v498
    %v500 = vrot.slane %v441, %v499
    %v502 = vunpack.c.l.s4 1966171168
    %v503 = vunpack.c.0.s8 %v502
    %v504 = vlaneseq
    %v505 = vshrl.u32 %v504, 7
    %v506 = vsub.s32 %v503, %v505
    %v507 = vrot.slane %v493, %v506
    %v508 = vcombine.high %v500, %v500
    %v509 = vcombine.high %v507, %v507
    %v511 = vunpack.c.l.s4 1966171168
    %v512 = vunpack.c.0.s8 %v511
    %v513 = vlaneseq
    %v514 = vshrl.u32 %v513, 7
    %v515 = vsub.s32 %v512, %v514
    %v516 = vrot.slane %v500, %v515
    %v518 = vunpack.c.l.s4 1966171168
    %v519 = vunpack.c.0.s8 %v518
    %v520 = vlaneseq
    %v521 = vshrl.u32 %v520, 7
    %v522 = vsub.s32 %v519, %v521
    %v523 = vrot.slane %v507, %v522
    %v525 = vunpack.c.l.s4 1966171168
    %v526 = vunpack.c.0.s8 %v525
    %v527 = vlaneseq
    %v528 = vshrl.u32 %v527, 7
    %v529 = vsub.s32 %v526, %v528
    %v530 = vrot.slane %v508, %v529
    %v532 = vunpack.c.l.s4 1966171168
    %v533 = vunpack.c.0.s8 %v532
    %v534 = vlaneseq
    %v535 = vshrl.u32 %v534, 7
    %v536 = vsub.s32 %v533, %v535
    %v537 = vrot.slane %v509, %v536
    %v538 = vcombine.high %v516, %v516
    %v539 = vcombine.high %v523, %v523
    %v540 = vcombine.high %v530, %v530
    %v541 = vcombine.high %v537, %v537
    %vm558 = vcmask 90112
    %559 = vst.msk [vmem:[#allocation7] sm:$0x1] %vm558, %v467
    %560 = vst.msk [vmem:[#allocation7 + $0x8] sm:$0x1] %vm558, %v481
    %561 = vst.msk [vmem:[#allocation7 + $0x10] sm:$0x1] %vm558, %v489
    %562 = vst.msk [vmem:[#allocation7 + $0x18] sm:$0x1] %vm558, %v491
    %563 = vst.msk [vmem:[#allocation7 + $0x20] sm:$0x1] %vm558, %v474
    %564 = vst.msk [vmem:[#allocation7 + $0x28] sm:$0x1] %vm558, %v488
    %565 = vst.msk [vmem:[#allocation7 + $0x30] sm:$0x1] %vm558, %v490
    %566 = vst.msk [vmem:[#allocation7 + $0x38] sm:$0x1] %vm558, %v492
    %567 = vst.msk [vmem:[#allocation7 + $0x40] sm:$0x1] %vm558, %v516
    %568 = vst.msk [vmem:[#allocation7 + $0x48] sm:$0x1] %vm558, %v530
    %569 = vst.msk [vmem:[#allocation7 + $0x50] sm:$0x1] %vm558, %v538
    %570 = vst.msk [vmem:[#allocation7 + $0x58] sm:$0x1] %vm558, %v540
    %571 = vst.msk [vmem:[#allocation7 + $0x60] sm:$0x1] %vm558, %v523
    %572 = vst.msk [vmem:[#allocation7 + $0x68] sm:$0x1] %vm558, %v537
    %573 = vst.msk [vmem:[#allocation7 + $0x70] sm:$0x1] %vm558, %v539
    %574 = vst.msk [vmem:[#allocation7 + $0x78] sm:$0x1] %vm558, %v541
    %s575 = sld [smem:[#allocation2 + $0x80]]
    %v576 = vstv %s575
    %v577 = vmul.f32 %v191, %v576
    %v578 = vmul.f32 %v194, %v576
    %s579 = sld [smem:[#allocation2 + $0x81]]
    %v580 = vstv %s579
    %v581 = vmul.f32 %v264, %v580
    %v582 = vmul.f32 %v267, %v580
    %v583 = vadd.f32 %v577, %v581
    %v584 = vadd.f32 %v578, %v582
    %s585 = sld [smem:[#allocation2 + $0x82]]
    %v586 = vstv %s585
    %v587 = vmul.f32 %v337, %v586
    %v588 = vmul.f32 %v340, %v586
    %v589 = vadd.f32 %v583, %v587
    %v590 = vadd.f32 %v584, %v588
    %s591 = sld [smem:[#allocation2 + $0x83]]
    %v592 = vstv %s591
    %v593 = vmul.f32 %v410, %v592
    %v594 = vmul.f32 %v413, %v592
    %v595 = vadd.f32 %v589, %v593
    %v596 = vadd.f32 %v590, %v594
    %s597 = sld [smem:[#allocation5 + $0x1]]
    %v598 = vstv %s597
    %v599 = vadd.f32 %v595, %v598
    %v600 = vadd.f32 %v596, %v598
    %v603 = vcombine.high %v599, %v599
    %v605 = vunpack.c.l.s4 1966171168
    %v606 = vunpack.c.0.s8 %v605
    %v607 = vlaneseq
    %v608 = vshrl.u32 %v607, 7
    %v609 = vsub.s32 %v606, %v608
    %v610 = vrot.slane %v599, %v609
    %v612 = vunpack.c.l.s4 1966171168
    %v613 = vunpack.c.0.s8 %v612
    %v614 = vlaneseq
    %v615 = vshrl.u32 %v614, 7
    %v616 = vsub.s32 %v613, %v615
    %v617 = vrot.slane %v603, %v616
    %v618 = vcombine.high %v610, %v610
    %v619 = vcombine.high %v617, %v617
    %v621 = vunpack.c.l.s4 1966171168
    %v622 = vunpack.c.0.s8 %v621
    %v623 = vlaneseq
    %v624 = vshrl.u32 %v623, 7
    %v625 = vsub.s32 %v622, %v624
    %v626 = vrot.slane %v610, %v625
    %v628 = vunpack.c.l.s4 1966171168
    %v629 = vunpack.c.0.s8 %v628
    %v630 = vlaneseq
    %v631 = vshrl.u32 %v630, 7
    %v632 = vsub.s32 %v629, %v631
    %v633 = vrot.slane %v617, %v632
    %v635 = vunpack.c.l.s4 1966171168
    %v636 = vunpack.c.0.s8 %v635
    %v637 = vlaneseq
    %v638 = vshrl.u32 %v637, 7
    %v639 = vsub.s32 %v636, %v638
    %v640 = vrot.slane %v618, %v639
    %v642 = vunpack.c.l.s4 1966171168
    %v643 = vunpack.c.0.s8 %v642
    %v644 = vlaneseq
    %v645 = vshrl.u32 %v644, 7
    %v646 = vsub.s32 %v643, %v645
    %v647 = vrot.slane %v619, %v646
    %v648 = vcombine.high %v626, %v626
    %v649 = vcombine.high %v633, %v633
    %v650 = vcombine.high %v640, %v640
    %v651 = vcombine.high %v647, %v647
    %v652 = vcombine.high %v600, %v600
    %v654 = vunpack.c.l.s4 1966171168
    %v655 = vunpack.c.0.s8 %v654
    %v656 = vlaneseq
    %v657 = vshrl.u32 %v656, 7
    %v658 = vsub.s32 %v655, %v657
    %v659 = vrot.slane %v600, %v658
    %v661 = vunpack.c.l.s4 1966171168
    %v662 = vunpack.c.0.s8 %v661
    %v663 = vlaneseq
    %v664 = vshrl.u32 %v663, 7
    %v665 = vsub.s32 %v662, %v664
    %v666 = vrot.slane %v652, %v665
    %v667 = vcombine.high %v659, %v659
    %v668 = vcombine.high %v666, %v666
    %v670 = vunpack.c.l.s4 1966171168
    %v671 = vunpack.c.0.s8 %v670
    %v672 = vlaneseq
    %v673 = vshrl.u32 %v672, 7
    %v674 = vsub.s32 %v671, %v673
    %v675 = vrot.slane %v659, %v674
    %v677 = vunpack.c.l.s4 1966171168
    %v678 = vunpack.c.0.s8 %v677
    %v679 = vlaneseq
    %v680 = vshrl.u32 %v679, 7
    %v681 = vsub.s32 %v678, %v680
    %v682 = vrot.slane %v666, %v681
    %v684 = vunpack.c.l.s4 1966171168
    %v685 = vunpack.c.0.s8 %v684
    %v686 = vlaneseq
    %v687 = vshrl.u32 %v686, 7
    %v688 = vsub.s32 %v685, %v687
    %v689 = vrot.slane %v667, %v688
    %v691 = vunpack.c.l.s4 1966171168
    %v692 = vunpack.c.0.s8 %v691
    %v693 = vlaneseq
    %v694 = vshrl.u32 %v693, 7
    %v695 = vsub.s32 %v692, %v694
    %v696 = vrot.slane %v668, %v695
    %v697 = vcombine.high %v675, %v675
    %v698 = vcombine.high %v682, %v682
    %v699 = vcombine.high %v689, %v689
    %v700 = vcombine.high %v696, %v696
    %717 = vst.msk [vmem:[#allocation7 + $0x1] sm:$0x1] %vm558, %v626
    %718 = vst.msk [vmem:[#allocation7 + $0x9] sm:$0x1] %vm558, %v640
    %719 = vst.msk [vmem:[#allocation7 + $0x11] sm:$0x1] %vm558, %v648
    %720 = vst.msk [vmem:[#allocation7 + $0x19] sm:$0x1] %vm558, %v650
    %721 = vst.msk [vmem:[#allocation7 + $0x21] sm:$0x1] %vm558, %v633
    %722 = vst.msk [vmem:[#allocation7 + $0x29] sm:$0x1] %vm558, %v647
    %723 = vst.msk [vmem:[#allocation7 + $0x31] sm:$0x1] %vm558, %v649
    %724 = vst.msk [vmem:[#allocation7 + $0x39] sm:$0x1] %vm558, %v651
    %725 = vst.msk [vmem:[#allocation7 + $0x41] sm:$0x1] %vm558, %v675
    %726 = vst.msk [vmem:[#allocation7 + $0x49] sm:$0x1] %vm558, %v689
    %727 = vst.msk [vmem:[#allocation7 + $0x51] sm:$0x1] %vm558, %v697
    %728 = vst.msk [vmem:[#allocation7 + $0x59] sm:$0x1] %vm558, %v699
    %729 = vst.msk [vmem:[#allocation7 + $0x61] sm:$0x1] %vm558, %v682
    %730 = vst.msk [vmem:[#allocation7 + $0x69] sm:$0x1] %vm558, %v696
    %731 = vst.msk [vmem:[#allocation7 + $0x71] sm:$0x1] %vm558, %v698
    %732 = vst.msk [vmem:[#allocation7 + $0x79] sm:$0x1] %vm558, %v700
    %s733 = sld [smem:[#allocation2 + $0x100]]
    %v734 = vstv %s733
    %v735 = vmul.f32 %v191, %v734
    %v736 = vmul.f32 %v194, %v734
    %s737 = sld [smem:[#allocation2 + $0x101]]
    %v738 = vstv %s737
    %v739 = vmul.f32 %v264, %v738
    %v740 = vmul.f32 %v267, %v738
    %v741 = vadd.f32 %v735, %v739
    %v742 = vadd.f32 %v736, %v740
    %s743 = sld [smem:[#allocation2 + $0x102]]
    %v744 = vstv %s743
    %v745 = vmul.f32 %v337, %v744
    %v746 = vmul.f32 %v340, %v744
    %v747 = vadd.f32 %v741, %v745
    %v748 = vadd.f32 %v742, %v746
    %s749 = sld [smem:[#allocation2 + $0x103]]
    %v750 = vstv %s749
    %v751 = vmul.f32 %v410, %v750
    %v752 = vmul.f32 %v413, %v750
    %v753 = vadd.f32 %v747, %v751
    %v754 = vadd.f32 %v748, %v752
    %s755 = sld [smem:[#allocation5 + $0x2]]
    %v756 = vstv %s755
    %v757 = vadd.f32 %v753, %v756
    %v758 = vadd.f32 %v754, %v756
    %v761 = vcombine.high %v757, %v757
    %v763 = vunpack.c.l.s4 1966171168
    %v764 = vunpack.c.0.s8 %v763
    %v765 = vlaneseq
    %v766 = vshrl.u32 %v765, 7
    %v767 = vsub.s32 %v764, %v766
    %v768 = vrot.slane %v757, %v767
    %v770 = vunpack.c.l.s4 1966171168
    %v771 = vunpack.c.0.s8 %v770
    %v772 = vlaneseq
    %v773 = vshrl.u32 %v772, 7
    %v774 = vsub.s32 %v771, %v773
    %v775 = vrot.slane %v761, %v774
    %v776 = vcombine.high %v768, %v768
    %v777 = vcombine.high %v775, %v775
    %v779 = vunpack.c.l.s4 1966171168
    %v780 = vunpack.c.0.s8 %v779
    %v781 = vlaneseq
    %v782 = vshrl.u32 %v781, 7
    %v783 = vsub.s32 %v780, %v782
    %v784 = vrot.slane %v768, %v783
    %v786 = vunpack.c.l.s4 1966171168
    %v787 = vunpack.c.0.s8 %v786
    %v788 = vlaneseq
    %v789 = vshrl.u32 %v788, 7
    %v790 = vsub.s32 %v787, %v789
    %v791 = vrot.slane %v775, %v790
    %v793 = vunpack.c.l.s4 1966171168
    %v794 = vunpack.c.0.s8 %v793
    %v795 = vlaneseq
    %v796 = vshrl.u32 %v795, 7
    %v797 = vsub.s32 %v794, %v796
    %v798 = vrot.slane %v776, %v797
    %v800 = vunpack.c.l.s4 1966171168
    %v801 = vunpack.c.0.s8 %v800
    %v802 = vlaneseq
    %v803 = vshrl.u32 %v802, 7
    %v804 = vsub.s32 %v801, %v803
    %v805 = vrot.slane %v777, %v804
    %v806 = vcombine.high %v784, %v784
    %v807 = vcombine.high %v791, %v791
    %v808 = vcombine.high %v798, %v798
    %v809 = vcombine.high %v805, %v805
    %v810 = vcombine.high %v758, %v758
    %v812 = vunpack.c.l.s4 1966171168
    %v813 = vunpack.c.0.s8 %v812
    %v814 = vlaneseq
    %v815 = vshrl.u32 %v814, 7
    %v816 = vsub.s32 %v813, %v815
    %v817 = vrot.slane %v758, %v816
    %v819 = vunpack.c.l.s4 1966171168
    %v820 = vunpack.c.0.s8 %v819
    %v821 = vlaneseq
    %v822 = vshrl.u32 %v821, 7
    %v823 = vsub.s32 %v820, %v822
    %v824 = vrot.slane %v810, %v823
    %v825 = vcombine.high %v817, %v817
    %v826 = vcombine.high %v824, %v824
    %v828 = vunpack.c.l.s4 1966171168
    %v829 = vunpack.c.0.s8 %v828
    %v830 = vlaneseq
    %v831 = vshrl.u32 %v830, 7
    %v832 = vsub.s32 %v829, %v831
    %v833 = vrot.slane %v817, %v832
    %v835 = vunpack.c.l.s4 1966171168
    %v836 = vunpack.c.0.s8 %v835
    %v837 = vlaneseq
    %v838 = vshrl.u32 %v837, 7
    %v839 = vsub.s32 %v836, %v838
    %v840 = vrot.slane %v824, %v839
    %v842 = vunpack.c.l.s4 1966171168
    %v843 = vunpack.c.0.s8 %v842
    %v844 = vlaneseq
    %v845 = vshrl.u32 %v844, 7
    %v846 = vsub.s32 %v843, %v845
    %v847 = vrot.slane %v825, %v846
    %v849 = vunpack.c.l.s4 1966171168
    %v850 = vunpack.c.0.s8 %v849
    %v851 = vlaneseq
    %v852 = vshrl.u32 %v851, 7
    %v853 = vsub.s32 %v850, %v852
    %v854 = vrot.slane %v826, %v853
    %v855 = vcombine.high %v833, %v833
    %v856 = vcombine.high %v840, %v840
    %v857 = vcombine.high %v847, %v847
    %v858 = vcombine.high %v854, %v854
    %875 = vst.msk [vmem:[#allocation7 + $0x2] sm:$0x1] %vm558, %v784
    %876 = vst.msk [vmem:[#allocation7 + $0xa] sm:$0x1] %vm558, %v798
    %877 = vst.msk [vmem:[#allocation7 + $0x12] sm:$0x1] %vm558, %v806
    %878 = vst.msk [vmem:[#allocation7 + $0x1a] sm:$0x1] %vm558, %v808
    %879 = vst.msk [vmem:[#allocation7 + $0x22] sm:$0x1] %vm558, %v791
    %880 = vst.msk [vmem:[#allocation7 + $0x2a] sm:$0x1] %vm558, %v805
    %881 = vst.msk [vmem:[#allocation7 + $0x32] sm:$0x1] %vm558, %v807
    %882 = vst.msk [vmem:[#allocation7 + $0x3a] sm:$0x1] %vm558, %v809
    %883 = vst.msk [vmem:[#allocation7 + $0x42] sm:$0x1] %vm558, %v833
    %884 = vst.msk [vmem:[#allocation7 + $0x4a] sm:$0x1] %vm558, %v847
    %885 = vst.msk [vmem:[#allocation7 + $0x52] sm:$0x1] %vm558, %v855
    %886 = vst.msk [vmem:[#allocation7 + $0x5a] sm:$0x1] %vm558, %v857
    %887 = vst.msk [vmem:[#allocation7 + $0x62] sm:$0x1] %vm558, %v840
    %888 = vst.msk [vmem:[#allocation7 + $0x6a] sm:$0x1] %vm558, %v854
    %889 = vst.msk [vmem:[#allocation7 + $0x72] sm:$0x1] %vm558, %v856
    %890 = vst.msk [vmem:[#allocation7 + $0x7a] sm:$0x1] %vm558, %v858
    %s891 = sld [smem:[#allocation2 + $0x180]]
    %v892 = vstv %s891
    %v893 = vmul.f32 %v191, %v892
    %v894 = vmul.f32 %v194, %v892
    %s895 = sld [smem:[#allocation2 + $0x181]]
    %v896 = vstv %s895
    %v897 = vmul.f32 %v264, %v896
    %v898 = vmul.f32 %v267, %v896
    %v899 = vadd.f32 %v893, %v897
    %v900 = vadd.f32 %v894, %v898
    %s901 = sld [smem:[#allocation2 + $0x182]]
    %v902 = vstv %s901
    %v903 = vmul.f32 %v337, %v902
    %v904 = vmul.f32 %v340, %v902
    %v905 = vadd.f32 %v899, %v903
    %v906 = vadd.f32 %v900, %v904
    %s907 = sld [smem:[#allocation2 + $0x183]]
    %v908 = vstv %s907
    %v909 = vmul.f32 %v410, %v908
    %v910 = vmul.f32 %v413, %v908
    %v911 = vadd.f32 %v905, %v909
    %v912 = vadd.f32 %v906, %v910
    %s913 = sld [smem:[#allocation5 + $0x3]]
    %v914 = vstv %s913
    %v915 = vadd.f32 %v911, %v914
    %v916 = vadd.f32 %v912, %v914
    %v919 = vcombine.high %v915, %v915
    %v921 = vunpack.c.l.s4 1966171168
    %v922 = vunpack.c.0.s8 %v921
    %v923 = vlaneseq
    %v924 = vshrl.u32 %v923, 7
    %v925 = vsub.s32 %v922, %v924
    %v926 = vrot.slane %v915, %v925
    %v928 = vunpack.c.l.s4 1966171168
    %v929 = vunpack.c.0.s8 %v928
    %v930 = vlaneseq
    %v931 = vshrl.u32 %v930, 7
    %v932 = vsub.s32 %v929, %v931
    %v933 = vrot.slane %v919, %v932
    %v934 = vcombine.high %v926, %v926
    %v935 = vcombine.high %v933, %v933
    %v937 = vunpack.c.l.s4 1966171168
    %v938 = vunpack.c.0.s8 %v937
    %v939 = vlaneseq
    %v940 = vshrl.u32 %v939, 7
    %v941 = vsub.s32 %v938, %v940
    %v942 = vrot.slane %v926, %v941
    %v944 = vunpack.c.l.s4 1966171168
    %v945 = vunpack.c.0.s8 %v944
    %v946 = vlaneseq
    %v947 = vshrl.u32 %v946, 7
    %v948 = vsub.s32 %v945, %v947
    %v949 = vrot.slane %v933, %v948
    %v951 = vunpack.c.l.s4 1966171168
    %v952 = vunpack.c.0.s8 %v951
    %v953 = vlaneseq
    %v954 = vshrl.u32 %v953, 7
    %v955 = vsub.s32 %v952, %v954
    %v956 = vrot.slane %v934, %v955
    %v958 = vunpack.c.l.s4 1966171168
    %v959 = vunpack.c.0.s8 %v958
    %v960 = vlaneseq
    %v961 = vshrl.u32 %v960, 7
    %v962 = vsub.s32 %v959, %v961
    %v963 = vrot.slane %v935, %v962
    %v964 = vcombine.high %v942, %v942
    %v965 = vcombine.high %v949, %v949
    %v966 = vcombine.high %v956, %v956
    %v967 = vcombine.high %v963, %v963
    %v968 = vcombine.high %v916, %v916
    %v970 = vunpack.c.l.s4 1966171168
    %v971 = vunpack.c.0.s8 %v970
    %v972 = vlaneseq
    %v973 = vshrl.u32 %v972, 7
    %v974 = vsub.s32 %v971, %v973
    %v975 = vrot.slane %v916, %v974
    %v977 = vunpack.c.l.s4 1966171168
    %v978 = vunpack.c.0.s8 %v977
    %v979 = vlaneseq
    %v980 = vshrl.u32 %v979, 7
    %v981 = vsub.s32 %v978, %v980
    %v982 = vrot.slane %v968, %v981
    %v983 = vcombine.high %v975, %v975
    %v984 = vcombine.high %v982, %v982
    %v986 = vunpack.c.l.s4 1966171168
    %v987 = vunpack.c.0.s8 %v986
    %v988 = vlaneseq
    %v989 = vshrl.u32 %v988, 7
    %v990 = vsub.s32 %v987, %v989
    %v991 = vrot.slane %v975, %v990
    %v993 = vunpack.c.l.s4 1966171168
    %v994 = vunpack.c.0.s8 %v993
    %v995 = vlaneseq
    %v996 = vshrl.u32 %v995, 7
    %v997 = vsub.s32 %v994, %v996
    %v998 = vrot.slane %v982, %v997
    %v1000 = vunpack.c.l.s4 1966171168
    %v1001 = vunpack.c.0.s8 %v1000
    %v1002 = vlaneseq
    %v1003 = vshrl.u32 %v1002, 7
    %v1004 = vsub.s32 %v1001, %v1003
    %v1005 = vrot.slane %v983, %v1004
    %v1007 = vunpack.c.l.s4 1966171168
    %v1008 = vunpack.c.0.s8 %v1007
    %v1009 = vlaneseq
    %v1010 = vshrl.u32 %v1009, 7
    %v1011 = vsub.s32 %v1008, %v1010
    %v1012 = vrot.slane %v984, %v1011
    %v1013 = vcombine.high %v991, %v991
    %v1014 = vcombine.high %v998, %v998
    %v1015 = vcombine.high %v1005, %v1005
    %v1016 = vcombine.high %v1012, %v1012
    %1033 = vst.msk [vmem:[#allocation7 + $0x3] sm:$0x1] %vm558, %v942
    %1034 = vst.msk [vmem:[#allocation7 + $0xb] sm:$0x1] %vm558, %v956
    %1035 = vst.msk [vmem:[#allocation7 + $0x13] sm:$0x1] %vm558, %v964
    %1036 = vst.msk [vmem:[#allocation7 + $0x1b] sm:$0x1] %vm558, %v966
    %1037 = vst.msk [vmem:[#allocation7 + $0x23] sm:$0x1] %vm558, %v949
    %1038 = vst.msk [vmem:[#allocation7 + $0x2b] sm:$0x1] %vm558, %v963
    %1039 = vst.msk [vmem:[#allocation7 + $0x33] sm:$0x1] %vm558, %v965
    %1040 = vst.msk [vmem:[#allocation7 + $0x3b] sm:$0x1] %vm558, %v967
    %1041 = vst.msk [vmem:[#allocation7 + $0x43] sm:$0x1] %vm558, %v991
    %1042 = vst.msk [vmem:[#allocation7 + $0x4b] sm:$0x1] %vm558, %v1005
    %1043 = vst.msk [vmem:[#allocation7 + $0x53] sm:$0x1] %vm558, %v1013
    %1044 = vst.msk [vmem:[#allocation7 + $0x5b] sm:$0x1] %vm558, %v1015
    %1045 = vst.msk [vmem:[#allocation7 + $0x63] sm:$0x1] %vm558, %v998
    %1046 = vst.msk [vmem:[#allocation7 + $0x6b] sm:$0x1] %vm558, %v1012
    %1047 = vst.msk [vmem:[#allocation7 + $0x73] sm:$0x1] %vm558, %v1014
    %1048 = vst.msk [vmem:[#allocation7 + $0x7b] sm:$0x1] %vm558, %v1016
    %s1049 = sld [smem:[#allocation2 + $0x200]]
    %v1050 = vstv %s1049
    %v1051 = vmul.f32 %v191, %v1050
    %v1052 = vmul.f32 %v194, %v1050
    %s1053 = sld [smem:[#allocation2 + $0x201]]
    %v1054 = vstv %s1053
    %v1055 = vmul.f32 %v264, %v1054
    %v1056 = vmul.f32 %v267, %v1054
    %v1057 = vadd.f32 %v1051, %v1055
    %v1058 = vadd.f32 %v1052, %v1056
    %s1059 = sld [smem:[#allocation2 + $0x202]]
    %v1060 = vstv %s1059
    %v1061 = vmul.f32 %v337, %v1060
    %v1062 = vmul.f32 %v340, %v1060
    %v1063 = vadd.f32 %v1057, %v1061
    %v1064 = vadd.f32 %v1058, %v1062
    %s1065 = sld [smem:[#allocation2 + $0x203]]
    %v1066 = vstv %s1065
    %v1067 = vmul.f32 %v410, %v1066
    %v1068 = vmul.f32 %v413, %v1066
    %v1069 = vadd.f32 %v1063, %v1067
    %v1070 = vadd.f32 %v1064, %v1068
    %s1071 = sld [smem:[#allocation5 + $0x4]]
    %v1072 = vstv %s1071
    %v1073 = vadd.f32 %v1069, %v1072
    %v1074 = vadd.f32 %v1070, %v1072
    %v1077 = vcombine.high %v1073, %v1073
    %v1079 = vunpack.c.l.s4 1966171168
    %v1080 = vunpack.c.0.s8 %v1079
    %v1081 = vlaneseq
    %v1082 = vshrl.u32 %v1081, 7
    %v1083 = vsub.s32 %v1080, %v1082
    %v1084 = vrot.slane %v1073, %v1083
    %v1086 = vunpack.c.l.s4 1966171168
    %v1087 = vunpack.c.0.s8 %v1086
    %v1088 = vlaneseq
    %v1089 = vshrl.u32 %v1088, 7
    %v1090 = vsub.s32 %v1087, %v1089
    %v1091 = vrot.slane %v1077, %v1090
    %v1092 = vcombine.high %v1084, %v1084
    %v1093 = vcombine.high %v1091, %v1091
    %v1095 = vunpack.c.l.s4 1966171168
    %v1096 = vunpack.c.0.s8 %v1095
    %v1097 = vlaneseq
    %v1098 = vshrl.u32 %v1097, 7
    %v1099 = vsub.s32 %v1096, %v1098
    %v1100 = vrot.slane %v1084, %v1099
    %v1102 = vunpack.c.l.s4 1966171168
    %v1103 = vunpack.c.0.s8 %v1102
    %v1104 = vlaneseq
    %v1105 = vshrl.u32 %v1104, 7
    %v1106 = vsub.s32 %v1103, %v1105
    %v1107 = vrot.slane %v1091, %v1106
    %v1109 = vunpack.c.l.s4 1966171168
    %v1110 = vunpack.c.0.s8 %v1109
    %v1111 = vlaneseq
    %v1112 = vshrl.u32 %v1111, 7
    %v1113 = vsub.s32 %v1110, %v1112
    %v1114 = vrot.slane %v1092, %v1113
    %v1116 = vunpack.c.l.s4 1966171168
    %v1117 = vunpack.c.0.s8 %v1116
    %v1118 = vlaneseq
    %v1119 = vshrl.u32 %v1118, 7
    %v1120 = vsub.s32 %v1117, %v1119
    %v1121 = vrot.slane %v1093, %v1120
    %v1122 = vcombine.high %v1100, %v1100
    %v1123 = vcombine.high %v1107, %v1107
    %v1124 = vcombine.high %v1114, %v1114
    %v1125 = vcombine.high %v1121, %v1121
    %v1126 = vcombine.high %v1074, %v1074
    %v1128 = vunpack.c.l.s4 1966171168
    %v1129 = vunpack.c.0.s8 %v1128
    %v1130 = vlaneseq
    %v1131 = vshrl.u32 %v1130, 7
    %v1132 = vsub.s32 %v1129, %v1131
    %v1133 = vrot.slane %v1074, %v1132
    %v1135 = vunpack.c.l.s4 1966171168
    %v1136 = vunpack.c.0.s8 %v1135
    %v1137 = vlaneseq
    %v1138 = vshrl.u32 %v1137, 7
    %v1139 = vsub.s32 %v1136, %v1138
    %v1140 = vrot.slane %v1126, %v1139
    %v1141 = vcombine.high %v1133, %v1133
    %v1142 = vcombine.high %v1140, %v1140
    %v1144 = vunpack.c.l.s4 1966171168
    %v1145 = vunpack.c.0.s8 %v1144
    %v1146 = vlaneseq
    %v1147 = vshrl.u32 %v1146, 7
    %v1148 = vsub.s32 %v1145, %v1147
    %v1149 = vrot.slane %v1133, %v1148
    %v1151 = vunpack.c.l.s4 1966171168
    %v1152 = vunpack.c.0.s8 %v1151
    %v1153 = vlaneseq
    %v1154 = vshrl.u32 %v1153, 7
    %v1155 = vsub.s32 %v1152, %v1154
    %v1156 = vrot.slane %v1140, %v1155
    %v1158 = vunpack.c.l.s4 1966171168
    %v1159 = vunpack.c.0.s8 %v1158
    %v1160 = vlaneseq
    %v1161 = vshrl.u32 %v1160, 7
    %v1162 = vsub.s32 %v1159, %v1161
    %v1163 = vrot.slane %v1141, %v1162
    %v1165 = vunpack.c.l.s4 1966171168
    %v1166 = vunpack.c.0.s8 %v1165
    %v1167 = vlaneseq
    %v1168 = vshrl.u32 %v1167, 7
    %v1169 = vsub.s32 %v1166, %v1168
    %v1170 = vrot.slane %v1142, %v1169
    %v1171 = vcombine.high %v1149, %v1149
    %v1172 = vcombine.high %v1156, %v1156
    %v1173 = vcombine.high %v1163, %v1163
    %v1174 = vcombine.high %v1170, %v1170
    %1191 = vst.msk [vmem:[#allocation7 + $0x4] sm:$0x1] %vm558, %v1100
    %1192 = vst.msk [vmem:[#allocation7 + $0xc] sm:$0x1] %vm558, %v1114
    %1193 = vst.msk [vmem:[#allocation7 + $0x14] sm:$0x1] %vm558, %v1122
    %1194 = vst.msk [vmem:[#allocation7 + $0x1c] sm:$0x1] %vm558, %v1124
    %1195 = vst.msk [vmem:[#allocation7 + $0x24] sm:$0x1] %vm558, %v1107
    %1196 = vst.msk [vmem:[#allocation7 + $0x2c] sm:$0x1] %vm558, %v1121
    %1197 = vst.msk [vmem:[#allocation7 + $0x34] sm:$0x1] %vm558, %v1123
    %1198 = vst.msk [vmem:[#allocation7 + $0x3c] sm:$0x1] %vm558, %v1125
    %1199 = vst.msk [vmem:[#allocation7 + $0x44] sm:$0x1] %vm558, %v1149
    %1200 = vst.msk [vmem:[#allocation7 + $0x4c] sm:$0x1] %vm558, %v1163
    %1201 = vst.msk [vmem:[#allocation7 + $0x54] sm:$0x1] %vm558, %v1171
    %1202 = vst.msk [vmem:[#allocation7 + $0x5c] sm:$0x1] %vm558, %v1173
    %1203 = vst.msk [vmem:[#allocation7 + $0x64] sm:$0x1] %vm558, %v1156
    %1204 = vst.msk [vmem:[#allocation7 + $0x6c] sm:$0x1] %vm558, %v1170
    %1205 = vst.msk [vmem:[#allocation7 + $0x74] sm:$0x1] %vm558, %v1172
    %1206 = vst.msk [vmem:[#allocation7 + $0x7c] sm:$0x1] %vm558, %v1174
    %s1207 = sld [smem:[#allocation2 + $0x280]]
    %v1208 = vstv %s1207
    %v1209 = vmul.f32 %v191, %v1208
    %v1210 = vmul.f32 %v194, %v1208
    %s1211 = sld [smem:[#allocation2 + $0x281]]
    %v1212 = vstv %s1211
    %v1213 = vmul.f32 %v264, %v1212
    %v1214 = vmul.f32 %v267, %v1212
    %v1215 = vadd.f32 %v1209, %v1213
    %v1216 = vadd.f32 %v1210, %v1214
    %s1217 = sld [smem:[#allocation2 + $0x282]]
    %v1218 = vstv %s1217
    %v1219 = vmul.f32 %v337, %v1218
    %v1220 = vmul.f32 %v340, %v1218
    %v1221 = vadd.f32 %v1215, %v1219
    %v1222 = vadd.f32 %v1216, %v1220
    %s1223 = sld [smem:[#allocation2 + $0x283]]
    %v1224 = vstv %s1223
    %v1225 = vmul.f32 %v410, %v1224
    %v1226 = vmul.f32 %v413, %v1224
    %v1227 = vadd.f32 %v1221, %v1225
    %v1228 = vadd.f32 %v1222, %v1226
    %s1229 = sld [smem:[#allocation5 + $0x5]]
    %v1230 = vstv %s1229
    %v1231 = vadd.f32 %v1227, %v1230
    %v1232 = vadd.f32 %v1228, %v1230
    %v1235 = vcombine.high %v1231, %v1231
    %v1237 = vunpack.c.l.s4 1966171168
    %v1238 = vunpack.c.0.s8 %v1237
    %v1239 = vlaneseq
    %v1240 = vshrl.u32 %v1239, 7
    %v1241 = vsub.s32 %v1238, %v1240
    %v1242 = vrot.slane %v1231, %v1241
    %v1244 = vunpack.c.l.s4 1966171168
    %v1245 = vunpack.c.0.s8 %v1244
    %v1246 = vlaneseq
    %v1247 = vshrl.u32 %v1246, 7
    %v1248 = vsub.s32 %v1245, %v1247
    %v1249 = vrot.slane %v1235, %v1248
    %v1250 = vcombine.high %v1242, %v1242
    %v1251 = vcombine.high %v1249, %v1249
    %v1253 = vunpack.c.l.s4 1966171168
    %v1254 = vunpack.c.0.s8 %v1253
    %v1255 = vlaneseq
    %v1256 = vshrl.u32 %v1255, 7
    %v1257 = vsub.s32 %v1254, %v1256
    %v1258 = vrot.slane %v1242, %v1257
    %v1260 = vunpack.c.l.s4 1966171168
    %v1261 = vunpack.c.0.s8 %v1260
    %v1262 = vlaneseq
    %v1263 = vshrl.u32 %v1262, 7
    %v1264 = vsub.s32 %v1261, %v1263
    %v1265 = vrot.slane %v1249, %v1264
    %v1267 = vunpack.c.l.s4 1966171168
    %v1268 = vunpack.c.0.s8 %v1267
    %v1269 = vlaneseq
    %v1270 = vshrl.u32 %v1269, 7
    %v1271 = vsub.s32 %v1268, %v1270
    %v1272 = vrot.slane %v1250, %v1271
    %v1274 = vunpack.c.l.s4 1966171168
    %v1275 = vunpack.c.0.s8 %v1274
    %v1276 = vlaneseq
    %v1277 = vshrl.u32 %v1276, 7
    %v1278 = vsub.s32 %v1275, %v1277
    %v1279 = vrot.slane %v1251, %v1278
    %v1280 = vcombine.high %v1258, %v1258
    %v1281 = vcombine.high %v1265, %v1265
    %v1282 = vcombine.high %v1272, %v1272
    %v1283 = vcombine.high %v1279, %v1279
    %v1284 = vcombine.high %v1232, %v1232
    %v1286 = vunpack.c.l.s4 1966171168
    %v1287 = vunpack.c.0.s8 %v1286
    %v1288 = vlaneseq
    %v1289 = vshrl.u32 %v1288, 7
    %v1290 = vsub.s32 %v1287, %v1289
    %v1291 = vrot.slane %v1232, %v1290
    %v1293 = vunpack.c.l.s4 1966171168
    %v1294 = vunpack.c.0.s8 %v1293
    %v1295 = vlaneseq
    %v1296 = vshrl.u32 %v1295, 7
    %v1297 = vsub.s32 %v1294, %v1296
    %v1298 = vrot.slane %v1284, %v1297
    %v1299 = vcombine.high %v1291, %v1291
    %v1300 = vcombine.high %v1298, %v1298
    %v1302 = vunpack.c.l.s4 1966171168
    %v1303 = vunpack.c.0.s8 %v1302
    %v1304 = vlaneseq
    %v1305 = vshrl.u32 %v1304, 7
    %v1306 = vsub.s32 %v1303, %v1305
    %v1307 = vrot.slane %v1291, %v1306
    %v1309 = vunpack.c.l.s4 1966171168
    %v1310 = vunpack.c.0.s8 %v1309
    %v1311 = vlaneseq
    %v1312 = vshrl.u32 %v1311, 7
    %v1313 = vsub.s32 %v1310, %v1312
    %v1314 = vrot.slane %v1298, %v1313
    %v1316 = vunpack.c.l.s4 1966171168
    %v1317 = vunpack.c.0.s8 %v1316
    %v1318 = vlaneseq
    %v1319 = vshrl.u32 %v1318, 7
    %v1320 = vsub.s32 %v1317, %v1319
    %v1321 = vrot.slane %v1299, %v1320
    %v1323 = vunpack.c.l.s4 1966171168
    %v1324 = vunpack.c.0.s8 %v1323
    %v1325 = vlaneseq
    %v1326 = vshrl.u32 %v1325, 7
    %v1327 = vsub.s32 %v1324, %v1326
    %v1328 = vrot.slane %v1300, %v1327
    %v1329 = vcombine.high %v1307, %v1307
    %v1330 = vcombine.high %v1314, %v1314
    %v1331 = vcombine.high %v1321, %v1321
    %v1332 = vcombine.high %v1328, %v1328
    %1349 = vst.msk [vmem:[#allocation7 + $0x5] sm:$0x1] %vm558, %v1258
    %1350 = vst.msk [vmem:[#allocation7 + $0xd] sm:$0x1] %vm558, %v1272
    %1351 = vst.msk [vmem:[#allocation7 + $0x15] sm:$0x1] %vm558, %v1280
    %1352 = vst.msk [vmem:[#allocation7 + $0x1d] sm:$0x1] %vm558, %v1282
    %1353 = vst.msk [vmem:[#allocation7 + $0x25] sm:$0x1] %vm558, %v1265
    %1354 = vst.msk [vmem:[#allocation7 + $0x2d] sm:$0x1] %vm558, %v1279
    %1355 = vst.msk [vmem:[#allocation7 + $0x35] sm:$0x1] %vm558, %v1281
    %1356 = vst.msk [vmem:[#allocation7 + $0x3d] sm:$0x1] %vm558, %v1283
    %1357 = vst.msk [vmem:[#allocation7 + $0x45] sm:$0x1] %vm558, %v1307
    %1358 = vst.msk [vmem:[#allocation7 + $0x4d] sm:$0x1] %vm558, %v1321
    %1359 = vst.msk [vmem:[#allocation7 + $0x55] sm:$0x1] %vm558, %v1329
    %1360 = vst.msk [vmem:[#allocation7 + $0x5d] sm:$0x1] %vm558, %v1331
    %1361 = vst.msk [vmem:[#allocation7 + $0x65] sm:$0x1] %vm558, %v1314
    %1362 = vst.msk [vmem:[#allocation7 + $0x6d] sm:$0x1] %vm558, %v1328
    %1363 = vst.msk [vmem:[#allocation7 + $0x75] sm:$0x1] %vm558, %v1330
    %1364 = vst.msk [vmem:[#allocation7 + $0x7d] sm:$0x1] %vm558, %v1332
    %s1365 = sld [smem:[#allocation2 + $0x300]]
    %v1366 = vstv %s1365
    %v1367 = vmul.f32 %v191, %v1366
    %v1368 = vmul.f32 %v194, %v1366
    %s1369 = sld [smem:[#allocation2 + $0x301]]
    %v1370 = vstv %s1369
    %v1371 = vmul.f32 %v264, %v1370
    %v1372 = vmul.f32 %v267, %v1370
    %v1373 = vadd.f32 %v1367, %v1371
    %v1374 = vadd.f32 %v1368, %v1372
    %s1375 = sld [smem:[#allocation2 + $0x302]]
    %v1376 = vstv %s1375
    %v1377 = vmul.f32 %v337, %v1376
    %v1378 = vmul.f32 %v340, %v1376
    %v1379 = vadd.f32 %v1373, %v1377
    %v1380 = vadd.f32 %v1374, %v1378
    %s1381 = sld [smem:[#allocation2 + $0x303]]
    %v1382 = vstv %s1381
    %v1383 = vmul.f32 %v410, %v1382
    %v1384 = vmul.f32 %v413, %v1382
    %v1385 = vadd.f32 %v1379, %v1383
    %v1386 = vadd.f32 %v1380, %v1384
    %s1387 = sld [smem:[#allocation5 + $0x6]]
    %v1388 = vstv %s1387
    %v1389 = vadd.f32 %v1385, %v1388
    %v1390 = vadd.f32 %v1386, %v1388
    %v1393 = vcombine.high %v1389, %v1389
    %v1395 = vunpack.c.l.s4 1966171168
    %v1396 = vunpack.c.0.s8 %v1395
    %v1397 = vlaneseq
    %v1398 = vshrl.u32 %v1397, 7
    %v1399 = vsub.s32 %v1396, %v1398
    %v1400 = vrot.slane %v1389, %v1399
    %v1402 = vunpack.c.l.s4 1966171168
    %v1403 = vunpack.c.0.s8 %v1402
    %v1404 = vlaneseq
    %v1405 = vshrl.u32 %v1404, 7
    %v1406 = vsub.s32 %v1403, %v1405
    %v1407 = vrot.slane %v1393, %v1406
    %v1408 = vcombine.high %v1400, %v1400
    %v1409 = vcombine.high %v1407, %v1407
    %v1411 = vunpack.c.l.s4 1966171168
    %v1412 = vunpack.c.0.s8 %v1411
    %v1413 = vlaneseq
    %v1414 = vshrl.u32 %v1413, 7
    %v1415 = vsub.s32 %v1412, %v1414
    %v1416 = vrot.slane %v1400, %v1415
    %v1418 = vunpack.c.l.s4 1966171168
    %v1419 = vunpack.c.0.s8 %v1418
    %v1420 = vlaneseq
    %v1421 = vshrl.u32 %v1420, 7
    %v1422 = vsub.s32 %v1419, %v1421
    %v1423 = vrot.slane %v1407, %v1422
    %v1425 = vunpack.c.l.s4 1966171168
    %v1426 = vunpack.c.0.s8 %v1425
    %v1427 = vlaneseq
    %v1428 = vshrl.u32 %v1427, 7
    %v1429 = vsub.s32 %v1426, %v1428
    %v1430 = vrot.slane %v1408, %v1429
    %v1432 = vunpack.c.l.s4 1966171168
    %v1433 = vunpack.c.0.s8 %v1432
    %v1434 = vlaneseq
    %v1435 = vshrl.u32 %v1434, 7
    %v1436 = vsub.s32 %v1433, %v1435
    %v1437 = vrot.slane %v1409, %v1436
    %v1438 = vcombine.high %v1416, %v1416
    %v1439 = vcombine.high %v1423, %v1423
    %v1440 = vcombine.high %v1430, %v1430
    %v1441 = vcombine.high %v1437, %v1437
    %v1442 = vcombine.high %v1390, %v1390
    %v1444 = vunpack.c.l.s4 1966171168
    %v1445 = vunpack.c.0.s8 %v1444
    %v1446 = vlaneseq
    %v1447 = vshrl.u32 %v1446, 7
    %v1448 = vsub.s32 %v1445, %v1447
    %v1449 = vrot.slane %v1390, %v1448
    %v1451 = vunpack.c.l.s4 1966171168
    %v1452 = vunpack.c.0.s8 %v1451
    %v1453 = vlaneseq
    %v1454 = vshrl.u32 %v1453, 7
    %v1455 = vsub.s32 %v1452, %v1454
    %v1456 = vrot.slane %v1442, %v1455
    %v1457 = vcombine.high %v1449, %v1449
    %v1458 = vcombine.high %v1456, %v1456
    %v1460 = vunpack.c.l.s4 1966171168
    %v1461 = vunpack.c.0.s8 %v1460
    %v1462 = vlaneseq
    %v1463 = vshrl.u32 %v1462, 7
    %v1464 = vsub.s32 %v1461, %v1463
    %v1465 = vrot.slane %v1449, %v1464
    %v1467 = vunpack.c.l.s4 1966171168
    %v1468 = vunpack.c.0.s8 %v1467
    %v1469 = vlaneseq
    %v1470 = vshrl.u32 %v1469, 7
    %v1471 = vsub.s32 %v1468, %v1470
    %v1472 = vrot.slane %v1456, %v1471
    %v1474 = vunpack.c.l.s4 1966171168
    %v1475 = vunpack.c.0.s8 %v1474
    %v1476 = vlaneseq
    %v1477 = vshrl.u32 %v1476, 7
    %v1478 = vsub.s32 %v1475, %v1477
    %v1479 = vrot.slane %v1457, %v1478
    %v1481 = vunpack.c.l.s4 1966171168
    %v1482 = vunpack.c.0.s8 %v1481
    %v1483 = vlaneseq
    %v1484 = vshrl.u32 %v1483, 7
    %v1485 = vsub.s32 %v1482, %v1484
    %v1486 = vrot.slane %v1458, %v1485
    %v1487 = vcombine.high %v1465, %v1465
    %v1488 = vcombine.high %v1472, %v1472
    %v1489 = vcombine.high %v1479, %v1479
    %v1490 = vcombine.high %v1486, %v1486
    %1507 = vst.msk [vmem:[#allocation7 + $0x6] sm:$0x1] %vm558, %v1416
    %1508 = vst.msk [vmem:[#allocation7 + $0xe] sm:$0x1] %vm558, %v1430
    %1509 = vst.msk [vmem:[#allocation7 + $0x16] sm:$0x1] %vm558, %v1438
    %1510 = vst.msk [vmem:[#allocation7 + $0x1e] sm:$0x1] %vm558, %v1440
    %1511 = vst.msk [vmem:[#allocation7 + $0x26] sm:$0x1] %vm558, %v1423
    %1512 = vst.msk [vmem:[#allocation7 + $0x2e] sm:$0x1] %vm558, %v1437
    %1513 = vst.msk [vmem:[#allocation7 + $0x36] sm:$0x1] %vm558, %v1439
    %1514 = vst.msk [vmem:[#allocation7 + $0x3e] sm:$0x1] %vm558, %v1441
    %1515 = vst.msk [vmem:[#allocation7 + $0x46] sm:$0x1] %vm558, %v1465
    %1516 = vst.msk [vmem:[#allocation7 + $0x4e] sm:$0x1] %vm558, %v1479
    %1517 = vst.msk [vmem:[#allocation7 + $0x56] sm:$0x1] %vm558, %v1487
    %1518 = vst.msk [vmem:[#allocation7 + $0x5e] sm:$0x1] %vm558, %v1489
    %1519 = vst.msk [vmem:[#allocation7 + $0x66] sm:$0x1] %vm558, %v1472
    %1520 = vst.msk [vmem:[#allocation7 + $0x6e] sm:$0x1] %vm558, %v1486
    %1521 = vst.msk [vmem:[#allocation7 + $0x76] sm:$0x1] %vm558, %v1488
    %1522 = vst.msk [vmem:[#allocation7 + $0x7e] sm:$0x1] %vm558, %v1490
    %s1523 = sld [smem:[#allocation2 + $0x380]]
    %v1524 = vstv %s1523
    %v1525 = vmul.f32 %v191, %v1524
    %v1526 = vmul.f32 %v194, %v1524
    %s1527 = sld [smem:[#allocation2 + $0x381]]
    %v1528 = vstv %s1527
    %v1529 = vmul.f32 %v264, %v1528
    %v1530 = vmul.f32 %v267, %v1528
    %v1531 = vadd.f32 %v1525, %v1529
    %v1532 = vadd.f32 %v1526, %v1530
    %s1533 = sld [smem:[#allocation2 + $0x382]]
    %v1534 = vstv %s1533
    %v1535 = vmul.f32 %v337, %v1534
    %v1536 = vmul.f32 %v340, %v1534
    %v1537 = vadd.f32 %v1531, %v1535
    %v1538 = vadd.f32 %v1532, %v1536
    %s1539 = sld [smem:[#allocation2 + $0x383]]
    %v1540 = vstv %s1539
    %v1541 = vmul.f32 %v410, %v1540
    %v1542 = vmul.f32 %v413, %v1540
    %v1543 = vadd.f32 %v1537, %v1541
    %v1544 = vadd.f32 %v1538, %v1542
    %s1545 = sld [smem:[#allocation5 + $0x7]]
    %v1546 = vstv %s1545
    %v1547 = vadd.f32 %v1543, %v1546
    %v1548 = vadd.f32 %v1544, %v1546
    %v1551 = vcombine.high %v1547, %v1547
    %v1553 = vunpack.c.l.s4 1966171168
    %v1554 = vunpack.c.0.s8 %v1553
    %v1555 = vlaneseq
    %v1556 = vshrl.u32 %v1555, 7
    %v1557 = vsub.s32 %v1554, %v1556
    %v1558 = vrot.slane %v1547, %v1557
    %v1560 = vunpack.c.l.s4 1966171168
    %v1561 = vunpack.c.0.s8 %v1560
    %v1562 = vlaneseq
    %v1563 = vshrl.u32 %v1562, 7
    %v1564 = vsub.s32 %v1561, %v1563
    %v1565 = vrot.slane %v1551, %v1564
    %v1566 = vcombine.high %v1558, %v1558
    %v1567 = vcombine.high %v1565, %v1565
    %v1569 = vunpack.c.l.s4 1966171168
    %v1570 = vunpack.c.0.s8 %v1569
    %v1571 = vlaneseq
    %v1572 = vshrl.u32 %v1571, 7
    %v1573 = vsub.s32 %v1570, %v1572
    %v1574 = vrot.slane %v1558, %v1573
    %v1576 = vunpack.c.l.s4 1966171168
    %v1577 = vunpack.c.0.s8 %v1576
    %v1578 = vlaneseq
    %v1579 = vshrl.u32 %v1578, 7
    %v1580 = vsub.s32 %v1577, %v1579
    %v1581 = vrot.slane %v1565, %v1580
    %v1583 = vunpack.c.l.s4 1966171168
    %v1584 = vunpack.c.0.s8 %v1583
    %v1585 = vlaneseq
    %v1586 = vshrl.u32 %v1585, 7
    %v1587 = vsub.s32 %v1584, %v1586
    %v1588 = vrot.slane %v1566, %v1587
    %v1590 = vunpack.c.l.s4 1966171168
    %v1591 = vunpack.c.0.s8 %v1590
    %v1592 = vlaneseq
    %v1593 = vshrl.u32 %v1592, 7
    %v1594 = vsub.s32 %v1591, %v1593
    %v1595 = vrot.slane %v1567, %v1594
    %v1596 = vcombine.high %v1574, %v1574
    %v1597 = vcombine.high %v1581, %v1581
    %v1598 = vcombine.high %v1588, %v1588
    %v1599 = vcombine.high %v1595, %v1595
    %v1600 = vcombine.high %v1548, %v1548
    %v1602 = vunpack.c.l.s4 1966171168
    %v1603 = vunpack.c.0.s8 %v1602
    %v1604 = vlaneseq
    %v1605 = vshrl.u32 %v1604, 7
    %v1606 = vsub.s32 %v1603, %v1605
    %v1607 = vrot.slane %v1548, %v1606
    %v1609 = vunpack.c.l.s4 1966171168
    %v1610 = vunpack.c.0.s8 %v1609
    %v1611 = vlaneseq
    %v1612 = vshrl.u32 %v1611, 7
    %v1613 = vsub.s32 %v1610, %v1612
    %v1614 = vrot.slane %v1600, %v1613
    %v1615 = vcombine.high %v1607, %v1607
    %v1616 = vcombine.high %v1614, %v1614
    %v1618 = vunpack.c.l.s4 1966171168
    %v1619 = vunpack.c.0.s8 %v1618
    %v1620 = vlaneseq
    %v1621 = vshrl.u32 %v1620, 7
    %v1622 = vsub.s32 %v1619, %v1621
    %v1623 = vrot.slane %v1607, %v1622
    %v1625 = vunpack.c.l.s4 1966171168
    %v1626 = vunpack.c.0.s8 %v1625
    %v1627 = vlaneseq
    %v1628 = vshrl.u32 %v1627, 7
    %v1629 = vsub.s32 %v1626, %v1628
    %v1630 = vrot.slane %v1614, %v1629
    %v1632 = vunpack.c.l.s4 1966171168
    %v1633 = vunpack.c.0.s8 %v1632
    %v1634 = vlaneseq
    %v1635 = vshrl.u32 %v1634, 7
    %v1636 = vsub.s32 %v1633, %v1635
    %v1637 = vrot.slane %v1615, %v1636
    %v1639 = vunpack.c.l.s4 1966171168
    %v1640 = vunpack.c.0.s8 %v1639
    %v1641 = vlaneseq
    %v1642 = vshrl.u32 %v1641, 7
    %v1643 = vsub.s32 %v1640, %v1642
    %v1644 = vrot.slane %v1616, %v1643
    %v1645 = vcombine.high %v1623, %v1623
    %v1646 = vcombine.high %v1630, %v1630
    %v1647 = vcombine.high %v1637, %v1637
    %v1648 = vcombine.high %v1644, %v1644
    %1665 = vst.msk [vmem:[#allocation7 + $0x7] sm:$0x1] %vm558, %v1574
    %1666 = vst.msk [vmem:[#allocation7 + $0xf] sm:$0x1] %vm558, %v1588
    %1667 = vst.msk [vmem:[#allocation7 + $0x17] sm:$0x1] %vm558, %v1596
    %1668 = vst.msk [vmem:[#allocation7 + $0x1f] sm:$0x1] %vm558, %v1598
    %1669 = vst.msk [vmem:[#allocation7 + $0x27] sm:$0x1] %vm558, %v1581
    %1670 = vst.msk [vmem:[#allocation7 + $0x2f] sm:$0x1] %vm558, %v1595
    %1671 = vst.msk [vmem:[#allocation7 + $0x37] sm:$0x1] %vm558, %v1597
    %1672 = vst.msk [vmem:[#allocation7 + $0x3f] sm:$0x1] %vm558, %v1599
    %1673 = vst.msk [vmem:[#allocation7 + $0x47] sm:$0x1] %vm558, %v1623
    %1674 = vst.msk [vmem:[#allocation7 + $0x4f] sm:$0x1] %vm558, %v1637
    %1675 = vst.msk [vmem:[#allocation7 + $0x57] sm:$0x1] %vm558, %v1645
    %1676 = vst.msk [vmem:[#allocation7 + $0x5f] sm:$0x1] %vm558, %v1647
    %1677 = vst.msk [vmem:[#allocation7 + $0x67] sm:$0x1] %vm558, %v1630
    %1678 = vst.msk [vmem:[#allocation7 + $0x6f] sm:$0x1] %vm558, %v1644
    %1679 = vst.msk [vmem:[#allocation7 + $0x77] sm:$0x1] %vm558, %v1646
    %1680 = vst.msk [vmem:[#allocation7 + $0x7f] sm:$0x1] %vm558, %v1648
    // Predicated region
    $region26: #{tpu_custom_call.1} parent=1 // pred_check
      _
    $region27: #{tpu_custom_call.1} parent=1 // pred_check_branch
      %1682 = sbr.rel (0) target = $region29
    $region28: #{tpu_custom_call.1} parent=1 // pred_region
      %s1684 = ssub.s32 2048, 256
      %1685 = vsyncadd [#allocation3], %s1684
      %s1686 = sshll.u32 [#allocation7], 4
      %s1687 = int_to_ptr.vmem [resolvable:$true] %s1686
      %1692 = dma.vmem_to_hbm [thread:$0]  %s1687, 256, %s4, [#allocation3], 128, 128, 8
    $region29: #{tpu_custom_call.1} parent=1 // pred_fallthru
      _
    // Predicated region
    $region30: #{tpu_custom_call.1} parent=1 // pred_check
      _
    $region31: #{tpu_custom_call.1} parent=1 // pred_check_branch
      %1694 = sbr.rel (0) target = $region33
    $region32: #{tpu_custom_call.1} parent=1 // pred_region
      %1695 = dma.done [#allocation3], 2048
    $region33: #{tpu_custom_call.1} parent=1 // pred_fallthru
      _
    %1696 = vsyncpa [#allocation3], 1
    %1697 = vsyncpa [#allocation4], 1
    %1698 = vsyncpa [#allocation6], 1

// kernel: tpu_custom_call.1
$region0: #{tpu_custom_call.1}
  #allocation0 [shape = 'u32[]', space=smem, size = 0x4, offset = 0x4, fixed_abs, tag = 'smem constant byte address 0x4 - core index']
  #allocation1 [shape = 'u32[144,128]{1,0:T(1,128)}', space=vmem, size = 0x12000, scoped, tag = 'internal scratch']
  %s0 = inlined_call_operand.vmem [shape: f32[8,4], index: 0, kind: input, shape index: {}]
  %s1 = inlined_call_operand.vmem [shape: f32[8], index: 1, kind: input, shape index: {}]
  %s2 = inlined_call_operand.vmem [shape: bf16[16,12], index: 2, kind: input, shape index: {}]
  %s3 = inlined_call_operand.vmem [shape: f32[2,4,16], index: 3, kind: input, shape index: {}]
  %s4 = inlined_call_operand.hbm [shape: f32[2,8,12], index: 4, kind: output, shape index: {}]
  %s5 = sld [smem:[#allocation0]]
  $region34: #{tpu_custom_call.1} parent=0
    _
  %s7 = ssub.s32 1, %s5
  %s8 = scalar_select 0, %s7, %s5
  $region1: #{tpu_custom_call.1} parent=0
    #allocation2 [shape = 'u8[4096]{0}', space=smem, size = 0x1000, scoped, tag = 'input window, operand 0, single buffered']
    #allocation3 [shape = 's32[1]{0}', space=sflag, size = 0x4, scoped, tag = 'scoped memory for tpu_custom_call.1']
    #allocation4 [shape = 's32[1]{0}', space=sflag, size = 0x4, scoped, tag = 'scoped memory for tpu_custom_call.1']
    #allocation5 [shape = 'u8[512]{0}', space=smem, size = 0x200, scoped, tag = 'input window, operand 1, single buffered']
    #allocation6 [shape = 's32[1]{0}', space=sflag, size = 0x4, scoped, tag = 'scoped memory for tpu_custom_call.1']
    #allocation7 [shape = 'u8[65536]{0}', space=vmem, size = 0x10000, scoped, tag = 'output window, operand 0, single buffered']
    %9 = vsyncpa [#allocation4], 0
    %10 = vsyncpa [#allocation6], 0
    %11 = vsyncpa [#allocation3], 0
    // Predicated region
    $region2: #{tpu_custom_call.1} parent=1 // pred_check
      _
    $region3: #{tpu_custom_call.1} parent=1 // pred_check_branch
      %13 = sbr.rel (0) target = $region5
    $region4: #{tpu_custom_call.1} parent=1 // pred_region
      %s15 = ssub.s32 128, 128
      %16 = vsyncadd [#allocation4], %s15
      %s18 = sshll.u32 %s0, 4
      %s19 = int_to_ptr.vmem [resolvable:$true] %s18
      %21 = dma.vmem_to_smem %s19, 128, [#allocation2], [#allocation4]
    $region5: #{tpu_custom_call.1} parent=1 // pred_fallthru
      _
    // Predicated region
    $region6: #{tpu_custom_call.1} parent=1 // pred_check
      _
    $region7: #{tpu_custom_call.1} parent=1 // pred_check_branch
      %23 = sbr.rel (0) target = $region9
    $region8: #{tpu_custom_call.1} parent=1 // pred_region
      %s25 = ssub.s32 16, 16
      %26 = vsyncadd [#allocation6], %s25
      %s28 = sshll.u32 %s1, 4
      %s29 = int_to_ptr.vmem [resolvable:$true] %s28
      %31 = dma.vmem_to_smem %s29, 16, [#allocation5], [#allocation6]
    $region9: #{tpu_custom_call.1} parent=1 // pred_fallthru
      _
    // Predicated region
    $region10: #{tpu_custom_call.1} parent=1 // pred_check
      _
    $region11: #{tpu_custom_call.1} parent=1 // pred_check_branch
      %33 = sbr.rel (0) target = $region13
    $region12: #{tpu_custom_call.1} parent=1 // pred_region
      _
    $region13: #{tpu_custom_call.1} parent=1 // pred_fallthru
      _
    // Predicated region
    $region14: #{tpu_custom_call.1} parent=1 // pred_check
      _
    $region15: #{tpu_custom_call.1} parent=1 // pred_check_branch
      %35 = sbr.rel (0) target = $region17
    $region16: #{tpu_custom_call.1} parent=1 // pred_region
      _
    $region17: #{tpu_custom_call.1} parent=1 // pred_fallthru
      _
    // Predicated region
    $region18: #{tpu_custom_call.1} parent=1 // pred_check
      _
    $region19: #{tpu_custom_call.1} parent=1 // pred_check_branch
      %37 = sbr.rel (0) target = $region21
    $region20: #{tpu_custom_call.1} parent=1 // pred_region
      %38 = dma.done [#allocation4], 128
    $region21: #{tpu_custom_call.1} parent=1 // pred_fallthru
      _
    // Predicated region
    $region22: #{tpu_custom_call.1} parent=1 // pred_check
      _
    $region23: #{tpu_custom_call.1} parent=1 // pred_check_branch
      %40 = sbr.rel (0) target = $region25
    $region24: #{tpu_custom_call.1} parent=1 // pred_region
      %41 = dma.done [#allocation6], 16
    $region25: #{tpu_custom_call.1} parent=1 // pred_fallthru
      _
    %42 = sfence
    %v44 = vld [vmem:[%s3] sm:$0xf]
    %v45 = vld [vmem:[%s3 + $0x4] sm:$0xf]
    %v46 = vld [vmem:[%s3 + $0x8] sm:$0xf]
    %v47 = vld [vmem:[%s3 + $0xc] sm:$0xf]
    %v48 = vld [vmem:[%s3 + $0x10] sm:$0xf]
    %v49 = vld [vmem:[%s3 + $0x14] sm:$0xf]
    %v50 = vld [vmem:[%s3 + $0x18] sm:$0xf]
    %v51 = vld [vmem:[%s3 + $0x1c] sm:$0xf]
    %v52 = vld [vmem:[%s3 + $0x20] sm:$0xf]
    %v53 = vld [vmem:[%s3 + $0x24] sm:$0xf]
    %v54 = vld [vmem:[%s3 + $0x28] sm:$0xf]
    %v55 = vld [vmem:[%s3 + $0x2c] sm:$0xf]
    %v56 = vld [vmem:[%s3 + $0x30] sm:$0xf]
    %v57 = vld [vmem:[%s3 + $0x34] sm:$0xf]
    %v58 = vld [vmem:[%s3 + $0x38] sm:$0xf]
    %v59 = vld [vmem:[%s3 + $0x3c] sm:$0xf]
    %v60 = vld [vmem:[%s2] sm:$0xf]
    %v61 = vld [vmem:[%s2 + $0x4] sm:$0xf]
    %v62 = vpack.c.bf16 %v44, %v44
    %v63 = vpack.c.bf16 %v45, %v45
    %v64 = vpack.c.bf16 %v46, %v46
    %v65 = vpack.c.bf16 %v47, %v47
    %v66 = vpack.c.bf16 %v48, %v48
    %v67 = vpack.c.bf16 %v49, %v49
    %v68 = vpack.c.bf16 %v50, %v50
    %v69 = vpack.c.bf16 %v51, %v51
    %v70 = vpack.c.bf16 %v52, %v52
    %v71 = vpack.c.bf16 %v53, %v53
    %v72 = vpack.c.bf16 %v54, %v54
    %v73 = vpack.c.bf16 %v55, %v55
    %v74 = vpack.c.bf16 %v56, %v56
    %v75 = vpack.c.bf16 %v57, %v57
    %v76 = vpack.c.bf16 %v58, %v58
    %v77 = vpack.c.bf16 %v59, %v59
    %v94 = vunpack.c.l.b16 %v62
    %v95 = vunpack.c.l.b16 %v63
    %v96 = vunpack.c.l.b16 %v64
    %v97 = vunpack.c.l.b16 %v65
    %v98 = vunpack.c.l.b16 %v66
    %v99 = vunpack.c.l.b16 %v67
    %v100 = vunpack.c.l.b16 %v68
    %v101 = vunpack.c.l.b16 %v69
    %v102 = vunpack.c.l.b16 %v70
    %v103 = vunpack.c.l.b16 %v71
    %v104 = vunpack.c.l.b16 %v72
    %v105 = vunpack.c.l.b16 %v73
    %v106 = vunpack.c.l.b16 %v74
    %v107 = vunpack.c.l.b16 %v75
    %v108 = vunpack.c.l.b16 %v76
    %v109 = vunpack.c.l.b16 %v77
    %v110 = vrot.slane %v95, 7
    %vm111 = vcmask 1041409
    %v112 = vsel %vm111, %v110, %v94
    %v113 = vrot.slane %v96, 6
    %vm114 = vcmask 1042434
    %v115 = vsel %vm114, %v113, %v112
    %v116 = vrot.slane %v97, 5
    %vm117 = vcmask 1043459
    %v118 = vsel %vm117, %v116, %v115
    %v119 = vrot.slane %v98, 4
    %vm120 = vcmask 1044484
    %v121 = vsel %vm120, %v119, %v118
    %v122 = vrot.slane %v99, 3
    %vm123 = vcmask 1045509
    %v124 = vsel %vm123, %v122, %v121
    %v125 = vrot.slane %v100, 2
    %vm126 = vcmask 1046534
    %v127 = vsel %vm126, %v125, %v124
    %v128 = vrot.slane %v101, 1
    %vm129 = vcmask 1047559
    %v130 = vsel %vm129, %v128, %v127
    %v131 = vrot.slane %v103, 7
    %v132 = vsel %vm111, %v131, %v102
    %v133 = vrot.slane %v104, 6
    %v134 = vsel %vm114, %v133, %v132
    %v135 = vrot.slane %v105, 5
    %v136 = vsel %vm117, %v135, %v134
    %v137 = vrot.slane %v106, 4
    %v138 = vsel %vm120, %v137, %v136
    %v139 = vrot.slane %v107, 3
    %v140 = vsel %vm123, %v139, %v138
    %v141 = vrot.slane %v108, 2
    %v142 = vsel %vm126, %v141, %v140
    %v143 = vrot.slane %v109, 1
    %v144 = vsel %vm129, %v143, %v142
    %v145 = vpack.c.b16 %v144, %v130
    %v148 = vunpack.c.l.b16 %v60
    %v149 = vunpack.c.l.b16 %v61
    %v150 = vpack.c.b16 %v149, %v148
    %vm152 = vcmask 130048
    %v154 = vsel %vm152, %v145, 0
    %156 = vmatprep.subr.bf16.mxu0 0
    %157 = vmatpush1.bf16.msra.mxu0 %v150
    %158 = vmatprep.subr.bf16.mxu0 0
    %159 = vmatpush1.bf16.msra.mxu0 0
    %160 = vmatprep.subr.bf16.mxu0 0
    %161 = vmatpush1.bf16.msra.mxu0 0
    %162 = vmatprep.subr.bf16.mxu0 0
    %163 = vmatpush1.bf16.msra.mxu0 0
    %164 = vmatprep.subr.bf16.mxu0 0
    %165 = vmatpush1.bf16.msra.mxu0 0
    %166 = vmatprep.subr.bf16.mxu0 0
    %167 = vmatpush1.bf16.msra.mxu0 0
    %168 = vmatprep.subr.bf16.mxu0 0
    %169 = vmatpush1.bf16.msra.mxu0 0
    %170 = vmatprep.subr.bf16.mxu0 0
    %171 = vmatpush1.bf16.msra.mxu0 0
    %172 = vmatprep.subr.bf16.mxu0 0
    %173 = vmatpush1.bf16.msra.mxu0 0
    %174 = vmatprep.subr.bf16.mxu0 0
    %175 = vmatpush1.bf16.msra.mxu0 0
    %176 = vmatprep.subr.bf16.mxu0 0
    %177 = vmatpush1.bf16.msra.mxu0 0
    %178 = vmatprep.subr.bf16.mxu0 0
    %179 = vmatpush1.bf16.msra.mxu0 0
    %180 = vmatprep.subr.bf16.mxu0 0
    %181 = vmatpush1.bf16.msra.mxu0 0
    %182 = vmatprep.subr.bf16.mxu0 0
    %183 = vmatpush1.bf16.msra.mxu0 0
    %184 = vmatprep.subr.bf16.mxu0 0
    %185 = vmatpush1.bf16.msra.mxu0 0
    %186 = vmatprep.subr.bf16.mxu0 0
    %187 = vmatpush1.bf16.msra.mxu0 0
    %188 = vmatprep.mubr.bf16.mxu0 0
    %189 = vmatmul.mubr.bf16.gmra.mrb[0].mxu0 %v154
    %v190 = vpop.f32.mrb[0].mxu0
    %v191 = vadd.f32 0.0, %v190
    %v192 = vpop.f32.mrb[0].mxu0
    %v193 = vpop.f32.mrb[0].mxu0
    %v194 = vadd.f32 0.0, %v193
    %v195 = vpop.f32.mrb[0].mxu0
    %196 = vdwg.mxu0
    %v197 = vrot.slane %v94, 1
    %v198 = vsel %vm111, %v95, %v197
    %v199 = vrot.slane %v96, 7
    %v200 = vsel %vm114, %v199, %v198
    %v201 = vrot.slane %v97, 6
    %v202 = vsel %vm117, %v201, %v200
    %v203 = vrot.slane %v98, 5
    %v204 = vsel %vm120, %v203, %v202
    %v205 = vrot.slane %v99, 4
    %v206 = vsel %vm123, %v205, %v204
    %v207 = vrot.slane %v100, 3
    %v208 = vsel %vm126, %v207, %v206
    %v209 = vrot.slane %v101, 2
    %v210 = vsel %vm129, %v209, %v208
    %v211 = vrot.slane %v102, 1
    %v212 = vsel %vm111, %v103, %v211
    %v213 = vrot.slane %v104, 7
    %v214 = vsel %vm114, %v213, %v212
    %v215 = vrot.slane %v105, 6
    %v216 = vsel %vm117, %v215, %v214
    %v217 = vrot.slane %v106, 5
    %v218 = vsel %vm120, %v217, %v216
    %v219 = vrot.slane %v107, 4
    %v220 = vsel %vm123, %v219, %v218
    %v221 = vrot.slane %v108, 3
    %v222 = vsel %vm126, %v221, %v220
    %v223 = vrot.slane %v109, 2
    %v224 = vsel %vm129, %v223, %v222
    %v225 = vpack.c.b16 %v224, %v210
    %v227 = vsel %vm152, %v225, 0
    %229 = vmatprep.subr.bf16.mxu0 0
    %230 = vmatpush1.bf16.msra.mxu0 %v150
    %231 = vmatprep.subr.bf16.mxu0 0
    %232 = vmatpush1.bf16.msra.mxu0 0
    %233 = vmatprep.subr.bf16.mxu0 0
    %234 = vmatpush1.bf16.msra.mxu0 0
    %235 = vmatprep.subr.bf16.mxu0 0
    %236 = vmatpush1.bf16.msra.mxu0 0
    %237 = vmatprep.subr.bf16.mxu0 0
    %238 = vmatpush1.bf16.msra.mxu0 0
    %239 = vmatprep.subr.bf16.mxu0 0
    %240 = vmatpush1.bf16.msra.mxu0 0
    %241 = vmatprep.subr.bf16.mxu0 0
    %242 = vmatpush1.bf16.msra.mxu0 0
    %243 = vmatprep.subr.bf16.mxu0 0
    %244 = vmatpush1.bf16.msra.mxu0 0
    %245 = vmatprep.subr.bf16.mxu0 0
    %246 = vmatpush1.bf16.msra.mxu0 0
    %247 = vmatprep.subr.bf16.mxu0 0
    %248 = vmatpush1.bf16.msra.mxu0 0
    %249 = vmatprep.subr.bf16.mxu0 0
    %250 = vmatpush1.bf16.msra.mxu0 0
    %251 = vmatprep.subr.bf16.mxu0 0
    %252 = vmatpush1.bf16.msra.mxu0 0
    %253 = vmatprep.subr.bf16.mxu0 0
    %254 = vmatpush1.bf16.msra.mxu0 0
    %255 = vmatprep.subr.bf16.mxu0 0
    %256 = vmatpush1.bf16.msra.mxu0 0
    %257 = vmatprep.subr.bf16.mxu0 0
    %258 = vmatpush1.bf16.msra.mxu0 0
    %259 = vmatprep.subr.bf16.mxu0 0
    %260 = vmatpush1.bf16.msra.mxu0 0
    %261 = vmatprep.mubr.bf16.mxu0 0
    %262 = vmatmul.mubr.bf16.gmra.mrb[0].mxu0 %v227
    %v263 = vpop.f32.mrb[0].mxu0
    %v264 = vadd.f32 0.0, %v263
    %v265 = vpop.f32.mrb[0].mxu0
    %v266 = vpop.f32.mrb[0].mxu0
    %v267 = vadd.f32 0.0, %v266
    %v268 = vpop.f32.mrb[0].mxu0
    %269 = vdwg.mxu0
    %v270 = vrot.slane %v94, 2
    %v271 = vrot.slane %v95, 1
    %v272 = vsel %vm111, %v271, %v270
    %v273 = vsel %vm114, %v96, %v272
    %v274 = vrot.slane %v97, 7
    %v275 = vsel %vm117, %v274, %v273
    %v276 = vrot.slane %v98, 6
    %v277 = vsel %vm120, %v276, %v275
    %v278 = vrot.slane %v99, 5
    %v279 = vsel %vm123, %v278, %v277
    %v280 = vrot.slane %v100, 4
    %v281 = vsel %vm126, %v280, %v279
    %v282 = vrot.slane %v101, 3
    %v283 = vsel %vm129, %v282, %v281
    %v284 = vrot.slane %v102, 2
    %v285 = vrot.slane %v103, 1
    %v286 = vsel %vm111, %v285, %v284
    %v287 = vsel %vm114, %v104, %v286
    %v288 = vrot.slane %v105, 7
    %v289 = vsel %vm117, %v288, %v287
    %v290 = vrot.slane %v106, 6
    %v291 = vsel %vm120, %v290, %v289
    %v292 = vrot.slane %v107, 5
    %v293 = vsel %vm123, %v292, %v291
    %v294 = vrot.slane %v108, 4
    %v295 = vsel %vm126, %v294, %v293
    %v296 = vrot.slane %v109, 3
    %v297 = vsel %vm129, %v296, %v295
    %v298 = vpack.c.b16 %v297, %v283
    %v300 = vsel %vm152, %v298, 0
    %302 = vmatprep.subr.bf16.mxu0 0
    %303 = vmatpush1.bf16.msra.mxu0 %v150
    %304 = vmatprep.subr.bf16.mxu0 0
    %305 = vmatpush1.bf16.msra.mxu0 0
    %306 = vmatprep.subr.bf16.mxu0 0
    %307 = vmatpush1.bf16.msra.mxu0 0
    %308 = vmatprep.subr.bf16.mxu0 0
    %309 = vmatpush1.bf16.msra.mxu0 0
    %310 = vmatprep.subr.bf16.mxu0 0
    %311 = vmatpush1.bf16.msra.mxu0 0
    %312 = vmatprep.subr.bf16.mxu0 0
    %313 = vmatpush1.bf16.msra.mxu0 0
    %314 = vmatprep.subr.bf16.mxu0 0
    %315 = vmatpush1.bf16.msra.mxu0 0
    %316 = vmatprep.subr.bf16.mxu0 0
    %317 = vmatpush1.bf16.msra.mxu0 0
    %318 = vmatprep.subr.bf16.mxu0 0
    %319 = vmatpush1.bf16.msra.mxu0 0
    %320 = vmatprep.subr.bf16.mxu0 0
    %321 = vmatpush1.bf16.msra.mxu0 0
    %322 = vmatprep.subr.bf16.mxu0 0
    %323 = vmatpush1.bf16.msra.mxu0 0
    %324 = vmatprep.subr.bf16.mxu0 0
    %325 = vmatpush1.bf16.msra.mxu0 0
    %326 = vmatprep.subr.bf16.mxu0 0
    %327 = vmatpush1.bf16.msra.mxu0 0
    %328 = vmatprep.subr.bf16.mxu0 0
    %329 = vmatpush1.bf16.msra.mxu0 0
    %330 = vmatprep.subr.bf16.mxu0 0
    %331 = vmatpush1.bf16.msra.mxu0 0
    %332 = vmatprep.subr.bf16.mxu0 0
    %333 = vmatpush1.bf16.msra.mxu0 0
    %334 = vmatprep.mubr.bf16.mxu0 0
    %335 = vmatmul.mubr.bf16.gmra.mrb[0].mxu0 %v300
    %v336 = vpop.f32.mrb[0].mxu0
    %v337 = vadd.f32 0.0, %v336
    %v338 = vpop.f32.mrb[0].mxu0
    %v339 = vpop.f32.mrb[0].mxu0
    %v340 = vadd.f32 0.0, %v339
    %v341 = vpop.f32.mrb[0].mxu0
    %342 = vdwg.mxu0
    %v343 = vrot.slane %v94, 3
    %v344 = vrot.slane %v95, 2
    %v345 = vsel %vm111, %v344, %v343
    %v346 = vrot.slane %v96, 1
    %v347 = vsel %vm114, %v346, %v345
    %v348 = vsel %vm117, %v97, %v347
    %v349 = vrot.slane %v98, 7
    %v350 = vsel %vm120, %v349, %v348
    %v351 = vrot.slane %v99, 6
    %v352 = vsel %vm123, %v351, %v350
    %v353 = vrot.slane %v100, 5
    %v354 = vsel %vm126, %v353, %v352
    %v355 = vrot.slane %v101, 4
    %v356 = vsel %vm129, %v355, %v354
    %v357 = vrot.slane %v102, 3
    %v358 = vrot.slane %v103, 2
    %v359 = vsel %vm111, %v358, %v357
    %v360 = vrot.slane %v104, 1
    %v361 = vsel %vm114, %v360, %v359
    %v362 = vsel %vm117, %v105, %v361
    %v363 = vrot.slane %v106, 7
    %v364 = vsel %vm120, %v363, %v362
    %v365 = vrot.slane %v107, 6
    %v366 = vsel %vm123, %v365, %v364
    %v367 = vrot.slane %v108, 5
    %v368 = vsel %vm126, %v367, %v366
    %v369 = vrot.slane %v109, 4
    %v370 = vsel %vm129, %v369, %v368
    %v371 = vpack.c.b16 %v370, %v356
    %v373 = vsel %vm152, %v371, 0
    %375 = vmatprep.subr.bf16.mxu0 0
    %376 = vmatpush1.bf16.msra.mxu0 %v150
    %377 = vmatprep.subr.bf16.mxu0 0
    %378 = vmatpush1.bf16.msra.mxu0 0
    %379 = vmatprep.subr.bf16.mxu0 0
    %380 = vmatpush1.bf16.msra.mxu0 0
    %381 = vmatprep.subr.bf16.mxu0 0
    %382 = vmatpush1.bf16.msra.mxu0 0
    %383 = vmatprep.subr.bf16.mxu0 0
    %384 = vmatpush1.bf16.msra.mxu0 0
    %385 = vmatprep.subr.bf16.mxu0 0
    %386 = vmatpush1.bf16.msra.mxu0 0
    %387 = vmatprep.subr.bf16.mxu0 0
    %388 = vmatpush1.bf16.msra.mxu0 0
    %389 = vmatprep.subr.bf16.mxu0 0
    %390 = vmatpush1.bf16.msra.mxu0 0
    %391 = vmatprep.subr.bf16.mxu0 0
    %392 = vmatpush1.bf16.msra.mxu0 0
    %393 = vmatprep.subr.bf16.mxu0 0
    %394 = vmatpush1.bf16.msra.mxu0 0
    %395 = vmatprep.subr.bf16.mxu0 0
    %396 = vmatpush1.bf16.msra.mxu0 0
    %397 = vmatprep.subr.bf16.mxu0 0
    %398 = vmatpush1.bf16.msra.mxu0 0
    %399 = vmatprep.subr.bf16.mxu0 0
    %400 = vmatpush1.bf16.msra.mxu0 0
    %401 = vmatprep.subr.bf16.mxu0 0
    %402 = vmatpush1.bf16.msra.mxu0 0
    %403 = vmatprep.subr.bf16.mxu0 0
    %404 = vmatpush1.bf16.msra.mxu0 0
    %405 = vmatprep.subr.bf16.mxu0 0
    %406 = vmatpush1.bf16.msra.mxu0 0
    %407 = vmatprep.mubr.bf16.mxu0 0
    %408 = vmatmul.mubr.bf16.gmra.mrb[0].mxu0 %v373
    %v409 = vpop.f32.mrb[0].mxu0
    %v410 = vadd.f32 0.0, %v409
    %v411 = vpop.f32.mrb[0].mxu0
    %v412 = vpop.f32.mrb[0].mxu0
    %v413 = vadd.f32 0.0, %v412
    %v414 = vpop.f32.mrb[0].mxu0
    %415 = vdwg.mxu0
    %s416 = sld [smem:[#allocation2]]
    %v417 = vstv %s416
    %v418 = vmul.f32 %v191, %v417
    %v419 = vmul.f32 %v194, %v417
    %s420 = sld [smem:[#allocation2 + $0x1]]
    %v421 = vstv %s420
    %v422 = vmul.f32 %v264, %v421
    %v423 = vmul.f32 %v267, %v421
    %v424 = vadd.f32 %v418, %v422
    %v425 = vadd.f32 %v419, %v423
    %s426 = sld [smem:[#allocation2 + $0x2]]
    %v427 = vstv %s426
    %v428 = vmul.f32 %v337, %v427
    %v429 = vmul.f32 %v340, %v427
    %v430 = vadd.f32 %v424, %v428
    %v431 = vadd.f32 %v425, %v429
    %s432 = sld [smem:[#allocation2 + $0x3]]
    %v433 = vstv %s432
    %v434 = vmul.f32 %v410, %v433
    %v435 = vmul.f32 %v413, %v433
    %v436 = vadd.f32 %v430, %v434
    %v437 = vadd.f32 %v431, %v435
    %s438 = sld [smem:[#allocation5]]
    %v439 = vstv %s438
    %v440 = vadd.f32 %v436, %v439
    %v441 = vadd.f32 %v437, %v439
    %v444 = vcombine.high %v440, %v440
    %v446 = vunpack.c.l.s4 1966171168
    %v447 = vunpack.c.0.s8 %v446
    %v448 = vlaneseq
    %v449 = vshrl.u32 %v448, 7
    %v450 = vsub.s32 %v447, %v449
    %v451 = vrot.slane %v440, %v450
    %v453 = vunpack.c.l.s4 1966171168
    %v454 = vunpack.c.0.s8 %v453
    %v455 = vlaneseq
    %v456 = vshrl.u32 %v455, 7
    %v457 = vsub.s32 %v454, %v456
    %v458 = vrot.slane %v444, %v457
    %v459 = vcombine.high %v451, %v451
    %v460 = vcombine.high %v458, %v458
    %v462 = vunpack.c.l.s4 1966171168
    %v463 = vunpack.c.0.s8 %v462
    %v464 = vlaneseq
    %v465 = vshrl.u32 %v464, 7
    %v466 = vsub.s32 %v463, %v465
    %v467 = vrot.slane %v451, %v466
    %v469 = vunpack.c.l.s4 1966171168
    %v470 = vunpack.c.0.s8 %v469
    %v471 = vlaneseq
    %v472 = vshrl.u32 %v471, 7
    %v473 = vsub.s32 %v470, %v472
    %v474 = vrot.slane %v458, %v473
    %v476 = vunpack.c.l.s4 1966171168
    %v477 = vunpack.c.0.s8 %v476
    %v478 = vlaneseq
    %v479 = vshrl.u32 %v478, 7
    %v480 = vsub.s32 %v477, %v479
    %v481 = vrot.slane %v459, %v480
    %v483 = vunpack.c.l.s4 1966171168
    %v484 = vunpack.c.0.s8 %v483
    %v485 = vlaneseq
    %v486 = vshrl.u32 %v485, 7
    %v487 = vsub.s32 %v484, %v486
    %v488 = vrot.slane %v460, %v487
    %v489 = vcombine.high %v467, %v467
    %v490 = vcombine.high %v474, %v474
    %v491 = vcombine.high %v481, %v481
    %v492 = vcombine.high %v488, %v488
    %v493 = vcombine.high %v441, %v441
    %v495 = vunpack.c.l.s4 1966171168
    %v496 = vunpack.c.0.s8 %v495
    %v497 = vlaneseq
    %v498 = vshrl.u32 %v497, 7
    %v499 = vsub.s32 %v496, %v498
    %v500 = vrot.slane %v441, %v499
    %v502 = vunpack.c.l.s4 1966171168
    %v503 = vunpack.c.0.s8 %v502
    %v504 = vlaneseq
    %v505 = vshrl.u32 %v504, 7
    %v506 = vsub.s32 %v503, %v505
    %v507 = vrot.slane %v493, %v506
    %v508 = vcombine.high %v500, %v500
    %v509 = vcombine.high %v507, %v507
    %v511 = vunpack.c.l.s4 1966171168
    %v512 = vunpack.c.0.s8 %v511
    %v513 = vlaneseq
    %v514 = vshrl.u32 %v513, 7
    %v515 = vsub.s32 %v512, %v514
    %v516 = vrot.slane %v500, %v515
    %v518 = vunpack.c.l.s4 1966171168
    %v519 = vunpack.c.0.s8 %v518
    %v520 = vlaneseq
    %v521 = vshrl.u32 %v520, 7
    %v522 = vsub.s32 %v519, %v521
    %v523 = vrot.slane %v507, %v522
    %v525 = vunpack.c.l.s4 1966171168
    %v526 = vunpack.c.0.s8 %v525
    %v527 = vlaneseq
    %v528 = vshrl.u32 %v527, 7
    %v529 = vsub.s32 %v526, %v528
    %v530 = vrot.slane %v508, %v529
    %v532 = vunpack.c.l.s4 1966171168
    %v533 = vunpack.c.0.s8 %v532
    %v534 = vlaneseq
    %v535 = vshrl.u32 %v534, 7
    %v536 = vsub.s32 %v533, %v535
    %v537 = vrot.slane %v509, %v536
    %v538 = vcombine.high %v516, %v516
    %v539 = vcombine.high %v523, %v523
    %v540 = vcombine.high %v530, %v530
    %v541 = vcombine.high %v537, %v537
    %vm558 = vcmask 90112
    %559 = vst.msk [vmem:[#allocation7] sm:$0x1] %vm558, %v467
    %560 = vst.msk [vmem:[#allocation7 + $0x8] sm:$0x1] %vm558, %v481
    %561 = vst.msk [vmem:[#allocation7 + $0x10] sm:$0x1] %vm558, %v489
    %562 = vst.msk [vmem:[#allocation7 + $0x18] sm:$0x1] %vm558, %v491
    %563 = vst.msk [vmem:[#allocation7 + $0x20] sm:$0x1] %vm558, %v474
    %564 = vst.msk [vmem:[#allocation7 + $0x28] sm:$0x1] %vm558, %v488
    %565 = vst.msk [vmem:[#allocation7 + $0x30] sm:$0x1] %vm558, %v490
    %566 = vst.msk [vmem:[#allocation7 + $0x38] sm:$0x1] %vm558, %v492
    %567 = vst.msk [vmem:[#allocation7 + $0x40] sm:$0x1] %vm558, %v516
    %568 = vst.msk [vmem:[#allocation7 + $0x48] sm:$0x1] %vm558, %v530
    %569 = vst.msk [vmem:[#allocation7 + $0x50] sm:$0x1] %vm558, %v538
    %570 = vst.msk [vmem:[#allocation7 + $0x58] sm:$0x1] %vm558, %v540
    %571 = vst.msk [vmem:[#allocation7 + $0x60] sm:$0x1] %vm558, %v523
    %572 = vst.msk [vmem:[#allocation7 + $0x68] sm:$0x1] %vm558, %v537
    %573 = vst.msk [vmem:[#allocation7 + $0x70] sm:$0x1] %vm558, %v539
    %574 = vst.msk [vmem:[#allocation7 + $0x78] sm:$0x1] %vm558, %v541
    %s575 = sld [smem:[#allocation2 + $0x80]]
    %v576 = vstv %s575
    %v577 = vmul.f32 %v191, %v576
    %v578 = vmul.f32 %v194, %v576
    %s579 = sld [smem:[#allocation2 + $0x81]]
    %v580 = vstv %s579
    %v581 = vmul.f32 %v264, %v580
    %v582 = vmul.f32 %v267, %v580
    %v583 = vadd.f32 %v577, %v581
    %v584 = vadd.f32 %v578, %v582
    %s585 = sld [smem:[#allocation2 + $0x82]]
    %v586 = vstv %s585
    %v587 = vmul.f32 %v337, %v586
    %v588 = vmul.f32 %v340, %v586
    %v589 = vadd.f32 %v583, %v587
    %v590 = vadd.f32 %v584, %v588
    %s591 = sld [smem:[#allocation2 + $0x83]]
    %v592 = vstv %s591
    %v593 = vmul.f32 %v410, %v592
    %v594 = vmul.f32 %v413, %v592
    %v595 = vadd.f32 %v589, %v593
    %v596 = vadd.f32 %v590, %v594
    %s597 = sld [smem:[#allocation5 + $0x1]]
    %v598 = vstv %s597
    %v599 = vadd.f32 %v595, %v598
    %v600 = vadd.f32 %v596, %v598
    %v603 = vcombine.high %v599, %v599
    %v605 = vunpack.c.l.s4 1966171168
    %v606 = vunpack.c.0.s8 %v605
    %v607 = vlaneseq
    %v608 = vshrl.u32 %v607, 7
    %v609 = vsub.s32 %v606, %v608
    %v610 = vrot.slane %v599, %v609
    %v612 = vunpack.c.l.s4 1966171168
    %v613 = vunpack.c.0.s8 %v612
    %v614 = vlaneseq
    %v615 = vshrl.u32 %v614, 7
    %v616 = vsub.s32 %v613, %v615
    %v617 = vrot.slane %v603, %v616
    %v618 = vcombine.high %v610, %v610
    %v619 = vcombine.high %v617, %v617
    %v621 = vunpack.c.l.s4 1966171168
    %v622 = vunpack.c.0.s8 %v621
    %v623 = vlaneseq
    %v624 = vshrl.u32 %v623, 7
    %v625 = vsub.s32 %v622, %v624
    %v626 = vrot.slane %v610, %v625
    %v628 = vunpack.c.l.s4 1966171168
    %v629 = vunpack.c.0.s8 %v628
    %v630 = vlaneseq
    %v631 = vshrl.u32 %v630, 7
    %v632 = vsub.s32 %v629, %v631
    %v633 = vrot.slane %v617, %v632
    %v635 = vunpack.c.l.s4 1966171168
    %v636 = vunpack.c.0.s8 %v635
    %v637 = vlaneseq
    %v638 = vshrl.u32 %v637, 7
    %v639 = vsub.s32 %v636, %v638
    %v640 = vrot.slane %v618, %v639
    %v642 = vunpack.c.l.s4 1966171168
    %v643 = vunpack.c.0.s8 %v642
    %v644 = vlaneseq
    %v645 = vshrl.u32 %v644, 7
    %v646 = vsub.s32 %v643, %v645
    %v647 = vrot.slane %v619, %v646
    %v648 = vcombine.high %v626, %v626
    %v649 = vcombine.high %v633, %v633
    %v650 = vcombine.high %v640, %v640
    %v651 = vcombine.high %v647, %v647
    %v652 = vcombine.high %v600, %v600
    %v654 = vunpack.c.l.s4 1966171168
    %v655 = vunpack.c.0.s8 %v654
    %v656 = vlaneseq
    %v657 = vshrl.u32 %v656, 7
    %v658 = vsub.s32 %v655, %v657
    %v659 = vrot.slane %v600, %v658
    %v661 = vunpack.c.l.s4 1966171168
    %v662 = vunpack.c.0.s8 %v661
    %v663 = vlaneseq
    %v664 = vshrl.u32 %v663, 7
    %v665 = vsub.s32 %v662, %v664
    %v666 = vrot.slane %v652, %v665
    %v667 = vcombine.high %v659, %v659
    %v668 = vcombine.high %v666, %v666
    %v670 = vunpack.c.l.s4 1966171168
    %v671 = vunpack.c.0.s8 %v670
    %v672 = vlaneseq
    %v673 = vshrl.u32 %v672, 7
    %v674 = vsub.s32 %v671, %v673
    %v675 = vrot.slane %v659, %v674
    %v677 = vunpack.c.l.s4 1966171168
    %v678 = vunpack.c.0.s8 %v677
    %v679 = vlaneseq
    %v680 = vshrl.u32 %v679, 7
    %v681 = vsub.s32 %v678, %v680
    %v682 = vrot.slane %v666, %v681
    %v684 = vunpack.c.l.s4 1966171168
    %v685 = vunpack.c.0.s8 %v684
    %v686 = vlaneseq
    %v687 = vshrl.u32 %v686, 7
    %v688 = vsub.s32 %v685, %v687
    %v689 = vrot.slane %v667, %v688
    %v691 = vunpack.c.l.s4 1966171168
    %v692 = vunpack.c.0.s8 %v691
    %v693 = vlaneseq
    %v694 = vshrl.u32 %v693, 7
    %v695 = vsub.s32 %v692, %v694
    %v696 = vrot.slane %v668, %v695
    %v697 = vcombine.high %v675, %v675
    %v698 = vcombine.high %v682, %v682
    %v699 = vcombine.high %v689, %v689
    %v700 = vcombine.high %v696, %v696
    %717 = vst.msk [vmem:[#allocation7 + $0x1] sm:$0x1] %vm558, %v626
    %718 = vst.msk [vmem:[#allocation7 + $0x9] sm:$0x1] %vm558, %v640
    %719 = vst.msk [vmem:[#allocation7 + $0x11] sm:$0x1] %vm558, %v648
    %720 = vst.msk [vmem:[#allocation7 + $0x19] sm:$0x1] %vm558, %v650
    %721 = vst.msk [vmem:[#allocation7 + $0x21] sm:$0x1] %vm558, %v633
    %722 = vst.msk [vmem:[#allocation7 + $0x29] sm:$0x1] %vm558, %v647
    %723 = vst.msk [vmem:[#allocation7 + $0x31] sm:$0x1] %vm558, %v649
    %724 = vst.msk [vmem:[#allocation7 + $0x39] sm:$0x1] %vm558, %v651
    %725 = vst.msk [vmem:[#allocation7 + $0x41] sm:$0x1] %vm558, %v675
    %726 = vst.msk [vmem:[#allocation7 + $0x49] sm:$0x1] %vm558, %v689
    %727 = vst.msk [vmem:[#allocation7 + $0x51] sm:$0x1] %vm558, %v697
    %728 = vst.msk [vmem:[#allocation7 + $0x59] sm:$0x1] %vm558, %v699
    %729 = vst.msk [vmem:[#allocation7 + $0x61] sm:$0x1] %vm558, %v682
    %730 = vst.msk [vmem:[#allocation7 + $0x69] sm:$0x1] %vm558, %v696
    %731 = vst.msk [vmem:[#allocation7 + $0x71] sm:$0x1] %vm558, %v698
    %732 = vst.msk [vmem:[#allocation7 + $0x79] sm:$0x1] %vm558, %v700
    %s733 = sld [smem:[#allocation2 + $0x100]]
    %v734 = vstv %s733
    %v735 = vmul.f32 %v191, %v734
    %v736 = vmul.f32 %v194, %v734
    %s737 = sld [smem:[#allocation2 + $0x101]]
    %v738 = vstv %s737
    %v739 = vmul.f32 %v264, %v738
    %v740 = vmul.f32 %v267, %v738
    %v741 = vadd.f32 %v735, %v739
    %v742 = vadd.f32 %v736, %v740
    %s743 = sld [smem:[#allocation2 + $0x102]]
    %v744 = vstv %s743
    %v745 = vmul.f32 %v337, %v744
    %v746 = vmul.f32 %v340, %v744
    %v747 = vadd.f32 %v741, %v745
    %v748 = vadd.f32 %v742, %v746
    %s749 = sld [smem:[#allocation2 + $0x103]]
    %v750 = vstv %s749
    %v751 = vmul.f32 %v410, %v750
    %v752 = vmul.f32 %v413, %v750
    %v753 = vadd.f32 %v747, %v751
    %v754 = vadd.f32 %v748, %v752
    %s755 = sld [smem:[#allocation5 + $0x2]]
    %v756 = vstv %s755
    %v757 = vadd.f32 %v753, %v756
    %v758 = vadd.f32 %v754, %v756
    %v761 = vcombine.high %v757, %v757
    %v763 = vunpack.c.l.s4 1966171168
    %v764 = vunpack.c.0.s8 %v763
    %v765 = vlaneseq
    %v766 = vshrl.u32 %v765, 7
    %v767 = vsub.s32 %v764, %v766
    %v768 = vrot.slane %v757, %v767
    %v770 = vunpack.c.l.s4 1966171168
    %v771 = vunpack.c.0.s8 %v770
    %v772 = vlaneseq
    %v773 = vshrl.u32 %v772, 7
    %v774 = vsub.s32 %v771, %v773
    %v775 = vrot.slane %v761, %v774
    %v776 = vcombine.high %v768, %v768
    %v777 = vcombine.high %v775, %v775
    %v779 = vunpack.c.l.s4 1966171168
    %v780 = vunpack.c.0.s8 %v779
    %v781 = vlaneseq
    %v782 = vshrl.u32 %v781, 7
    %v783 = vsub.s32 %v780, %v782
    %v784 = vrot.slane %v768, %v783
    %v786 = vunpack.c.l.s4 1966171168
    %v787 = vunpack.c.0.s8 %v786
    %v788 = vlaneseq
    %v789 = vshrl.u32 %v788, 7
    %v790 = vsub.s32 %v787, %v789
    %v791 = vrot.slane %v775, %v790
    %v793 = vunpack.c.l.s4 1966171168
    %v794 = vunpack.c.0.s8 %v793
    %v795 = vlaneseq
    %v796 = vshrl.u32 %v795, 7
    %v797 = vsub.s32 %v794, %v796
    %v798 = vrot.slane %v776, %v797
    %v800 = vunpack.c.l.s4 1966171168
    %v801 = vunpack.c.0.s8 %v800
    %v802 = vlaneseq
    %v803 = vshrl.u32 %v802, 7
    %v804 = vsub.s32 %v801, %v803
    %v805 = vrot.slane %v777, %v804
    %v806 = vcombine.high %v784, %v784
    %v807 = vcombine.high %v791, %v791
    %v808 = vcombine.high %v798, %v798
    %v809 = vcombine.high %v805, %v805
    %v810 = vcombine.high %v758, %v758
    %v812 = vunpack.c.l.s4 1966171168
    %v813 = vunpack.c.0.s8 %v812
    %v814 = vlaneseq
    %v815 = vshrl.u32 %v814, 7
    %v816 = vsub.s32 %v813, %v815
    %v817 = vrot.slane %v758, %v816
    %v819 = vunpack.c.l.s4 1966171168
    %v820 = vunpack.c.0.s8 %v819
    %v821 = vlaneseq
    %v822 = vshrl.u32 %v821, 7
    %v823 = vsub.s32 %v820, %v822
    %v824 = vrot.slane %v810, %v823
    %v825 = vcombine.high %v817, %v817
    %v826 = vcombine.high %v824, %v824
    %v828 = vunpack.c.l.s4 1966171168
    %v829 = vunpack.c.0.s8 %v828
    %v830 = vlaneseq
    %v831 = vshrl.u32 %v830, 7
    %v832 = vsub.s32 %v829, %v831
    %v833 = vrot.slane %v817, %v832
    %v835 = vunpack.c.l.s4 1966171168
    %v836 = vunpack.c.0.s8 %v835
    %v837 = vlaneseq
    %v838 = vshrl.u32 %v837, 7
    %v839 = vsub.s32 %v836, %v838
    %v840 = vrot.slane %v824, %v839
    %v842 = vunpack.c.l.s4 1966171168
    %v843 = vunpack.c.0.s8 %v842
    %v844 = vlaneseq
    %v845 = vshrl.u32 %v844, 7
    %v846 = vsub.s32 %v843, %v845
    %v847 = vrot.slane %v825, %v846
    %v849 = vunpack.c.l.s4 1966171168
    %v850 = vunpack.c.0.s8 %v849
    %v851 = vlaneseq
    %v852 = vshrl.u32 %v851, 7
    %v853 = vsub.s32 %v850, %v852
    %v854 = vrot.slane %v826, %v853
    %v855 = vcombine.high %v833, %v833
    %v856 = vcombine.high %v840, %v840
    %v857 = vcombine.high %v847, %v847
    %v858 = vcombine.high %v854, %v854
    %875 = vst.msk [vmem:[#allocation7 + $0x2] sm:$0x1] %vm558, %v784
    %876 = vst.msk [vmem:[#allocation7 + $0xa] sm:$0x1] %vm558, %v798
    %877 = vst.msk [vmem:[#allocation7 + $0x12] sm:$0x1] %vm558, %v806
    %878 = vst.msk [vmem:[#allocation7 + $0x1a] sm:$0x1] %vm558, %v808
    %879 = vst.msk [vmem:[#allocation7 + $0x22] sm:$0x1] %vm558, %v791
    %880 = vst.msk [vmem:[#allocation7 + $0x2a] sm:$0x1] %vm558, %v805
    %881 = vst.msk [vmem:[#allocation7 + $0x32] sm:$0x1] %vm558, %v807
    %882 = vst.msk [vmem:[#allocation7 + $0x3a] sm:$0x1] %vm558, %v809
    %883 = vst.msk [vmem:[#allocation7 + $0x42] sm:$0x1] %vm558, %v833
    %884 = vst.msk [vmem:[#allocation7 + $0x4a] sm:$0x1] %vm558, %v847
    %885 = vst.msk [vmem:[#allocation7 + $0x52] sm:$0x1] %vm558, %v855
    %886 = vst.msk [vmem:[#allocation7 + $0x5a] sm:$0x1] %vm558, %v857
    %887 = vst.msk [vmem:[#allocation7 + $0x62] sm:$0x1] %vm558, %v840
    %888 = vst.msk [vmem:[#allocation7 + $0x6a] sm:$0x1] %vm558, %v854
    %889 = vst.msk [vmem:[#allocation7 + $0x72] sm:$0x1] %vm558, %v856
    %890 = vst.msk [vmem:[#allocation7 + $0x7a] sm:$0x1] %vm558, %v858
    %s891 = sld [smem:[#allocation2 + $0x180]]
    %v892 = vstv %s891
    %v893 = vmul.f32 %v191, %v892
    %v894 = vmul.f32 %v194, %v892
    %s895 = sld [smem:[#allocation2 + $0x181]]
    %v896 = vstv %s895
    %v897 = vmul.f32 %v264, %v896
    %v898 = vmul.f32 %v267, %v896
    %v899 = vadd.f32 %v893, %v897
    %v900 = vadd.f32 %v894, %v898
    %s901 = sld [smem:[#allocation2 + $0x182]]
    %v902 = vstv %s901
    %v903 = vmul.f32 %v337, %v902
    %v904 = vmul.f32 %v340, %v902
    %v905 = vadd.f32 %v899, %v903
    %v906 = vadd.f32 %v900, %v904
    %s907 = sld [smem:[#allocation2 + $0x183]]
    %v908 = vstv %s907
    %v909 = vmul.f32 %v410, %v908
    %v910 = vmul.f32 %v413, %v908
    %v911 = vadd.f32 %v905, %v909
    %v912 = vadd.f32 %v906, %v910
    %s913 = sld [smem:[#allocation5 + $0x3]]
    %v914 = vstv %s913
    %v915 = vadd.f32 %v911, %v914
    %v916 = vadd.f32 %v912, %v914
    %v919 = vcombine.high %v915, %v915
    %v921 = vunpack.c.l.s4 1966171168
    %v922 = vunpack.c.0.s8 %v921
    %v923 = vlaneseq
    %v924 = vshrl.u32 %v923, 7
    %v925 = vsub.s32 %v922, %v924
    %v926 = vrot.slane %v915, %v925
    %v928 = vunpack.c.l.s4 1966171168
    %v929 = vunpack.c.0.s8 %v928
    %v930 = vlaneseq
    %v931 = vshrl.u32 %v930, 7
    %v932 = vsub.s32 %v929, %v931
    %v933 = vrot.slane %v919, %v932
    %v934 = vcombine.high %v926, %v926
    %v935 = vcombine.high %v933, %v933
    %v937 = vunpack.c.l.s4 1966171168
    %v938 = vunpack.c.0.s8 %v937
    %v939 = vlaneseq
    %v940 = vshrl.u32 %v939, 7
    %v941 = vsub.s32 %v938, %v940
    %v942 = vrot.slane %v926, %v941
    %v944 = vunpack.c.l.s4 1966171168
    %v945 = vunpack.c.0.s8 %v944
    %v946 = vlaneseq
    %v947 = vshrl.u32 %v946, 7
    %v948 = vsub.s32 %v945, %v947
    %v949 = vrot.slane %v933, %v948
    %v951 = vunpack.c.l.s4 1966171168
    %v952 = vunpack.c.0.s8 %v951
    %v953 = vlaneseq
    %v954 = vshrl.u32 %v953, 7
    %v955 = vsub.s32 %v952, %v954
    %v956 = vrot.slane %v934, %v955
    %v958 = vunpack.c.l.s4 1966171168
    %v959 = vunpack.c.0.s8 %v958
    %v960 = vlaneseq
    %v961 = vshrl.u32 %v960, 7
    %v962 = vsub.s32 %v959, %v961
    %v963 = vrot.slane %v935, %v962
    %v964 = vcombine.high %v942, %v942
    %v965 = vcombine.high %v949, %v949
    %v966 = vcombine.high %v956, %v956
    %v967 = vcombine.high %v963, %v963
    %v968 = vcombine.high %v916, %v916
    %v970 = vunpack.c.l.s4 1966171168
    %v971 = vunpack.c.0.s8 %v970
    %v972 = vlaneseq
    %v973 = vshrl.u32 %v972, 7
    %v974 = vsub.s32 %v971, %v973
    %v975 = vrot.slane %v916, %v974
    %v977 = vunpack.c.l.s4 1966171168
    %v978 = vunpack.c.0.s8 %v977
    %v979 = vlaneseq
    %v980 = vshrl.u32 %v979, 7
    %v981 = vsub.s32 %v978, %v980
    %v982 = vrot.slane %v968, %v981
    %v983 = vcombine.high %v975, %v975
    %v984 = vcombine.high %v982, %v982
    %v986 = vunpack.c.l.s4 1966171168
    %v987 = vunpack.c.0.s8 %v986
    %v988 = vlaneseq
    %v989 = vshrl.u32 %v988, 7
    %v990 = vsub.s32 %v987, %v989
    %v991 = vrot.slane %v975, %v990
    %v993 = vunpack.c.l.s4 1966171168
    %v994 = vunpack.c.0.s8 %v993
    %v995 = vlaneseq
    %v996 = vshrl.u32 %v995, 7
    %v997 = vsub.s32 %v994, %v996
    %v998 = vrot.slane %v982, %v997
    %v1000 = vunpack.c.l.s4 1966171168
    %v1001 = vunpack.c.0.s8 %v1000
    %v1002 = vlaneseq
    %v1003 = vshrl.u32 %v1002, 7
    %v1004 = vsub.s32 %v1001, %v1003
    %v1005 = vrot.slane %v983, %v1004
    %v1007 = vunpack.c.l.s4 1966171168
    %v1008 = vunpack.c.0.s8 %v1007
    %v1009 = vlaneseq
    %v1010 = vshrl.u32 %v1009, 7
    %v1011 = vsub.s32 %v1008, %v1010
    %v1012 = vrot.slane %v984, %v1011
    %v1013 = vcombine.high %v991, %v991
    %v1014 = vcombine.high %v998, %v998
    %v1015 = vcombine.high %v1005, %v1005
    %v1016 = vcombine.high %v1012, %v1012
    %1033 = vst.msk [vmem:[#allocation7 + $0x3] sm:$0x1] %vm558, %v942
    %1034 = vst.msk [vmem:[#allocation7 + $0xb] sm:$0x1] %vm558, %v956
    %1035 = vst.msk [vmem:[#allocation7 + $0x13] sm:$0x1] %vm558, %v964
    %1036 = vst.msk [vmem:[#allocation7 + $0x1b] sm:$0x1] %vm558, %v966
    %1037 = vst.msk [vmem:[#allocation7 + $0x23] sm:$0x1] %vm558, %v949
    %1038 = vst.msk [vmem:[#allocation7 + $0x2b] sm:$0x1] %vm558, %v963
    %1039 = vst.msk [vmem:[#allocation7 + $0x33] sm:$0x1] %vm558, %v965
    %1040 = vst.msk [vmem:[#allocation7 + $0x3b] sm:$0x1] %vm558, %v967
    %1041 = vst.msk [vmem:[#allocation7 + $0x43] sm:$0x1] %vm558, %v991
    %1042 = vst.msk [vmem:[#allocation7 + $0x4b] sm:$0x1] %vm558, %v1005
    %1043 = vst.msk [vmem:[#allocation7 + $0x53] sm:$0x1] %vm558, %v1013
    %1044 = vst.msk [vmem:[#allocation7 + $0x5b] sm:$0x1] %vm558, %v1015
    %1045 = vst.msk [vmem:[#allocation7 + $0x63] sm:$0x1] %vm558, %v998
    %1046 = vst.msk [vmem:[#allocation7 + $0x6b] sm:$0x1] %vm558, %v1012
    %1047 = vst.msk [vmem:[#allocation7 + $0x73] sm:$0x1] %vm558, %v1014
    %1048 = vst.msk [vmem:[#allocation7 + $0x7b] sm:$0x1] %vm558, %v1016
    %s1049 = sld [smem:[#allocation2 + $0x200]]
    %v1050 = vstv %s1049
    %v1051 = vmul.f32 %v191, %v1050
    %v1052 = vmul.f32 %v194, %v1050
    %s1053 = sld [smem:[#allocation2 + $0x201]]
    %v1054 = vstv %s1053
    %v1055 = vmul.f32 %v264, %v1054
    %v1056 = vmul.f32 %v267, %v1054
    %v1057 = vadd.f32 %v1051, %v1055
    %v1058 = vadd.f32 %v1052, %v1056
    %s1059 = sld [smem:[#allocation2 + $0x202]]
    %v1060 = vstv %s1059
    %v1061 = vmul.f32 %v337, %v1060
    %v1062 = vmul.f32 %v340, %v1060
    %v1063 = vadd.f32 %v1057, %v1061
    %v1064 = vadd.f32 %v1058, %v1062
    %s1065 = sld [smem:[#allocation2 + $0x203]]
    %v1066 = vstv %s1065
    %v1067 = vmul.f32 %v410, %v1066
    %v1068 = vmul.f32 %v413, %v1066
    %v1069 = vadd.f32 %v1063, %v1067
    %v1070 = vadd.f32 %v1064, %v1068
    %s1071 = sld [smem:[#allocation5 + $0x4]]
    %v1072 = vstv %s1071
    %v1073 = vadd.f32 %v1069, %v1072
    %v1074 = vadd.f32 %v1070, %v1072
    %v1077 = vcombine.high %v1073, %v1073
    %v1079 = vunpack.c.l.s4 1966171168
    %v1080 = vunpack.c.0.s8 %v1079
    %v1081 = vlaneseq
    %v1082 = vshrl.u32 %v1081, 7
    %v1083 = vsub.s32 %v1080, %v1082
    %v1084 = vrot.slane %v1073, %v1083
    %v1086 = vunpack.c.l.s4 1966171168
    %v1087 = vunpack.c.0.s8 %v1086
    %v1088 = vlaneseq
    %v1089 = vshrl.u32 %v1088, 7
    %v1090 = vsub.s32 %v1087, %v1089
    %v1091 = vrot.slane %v1077, %v1090
    %v1092 = vcombine.high %v1084, %v1084
    %v1093 = vcombine.high %v1091, %v1091
    %v1095 = vunpack.c.l.s4 1966171168
    %v1096 = vunpack.c.0.s8 %v1095
    %v1097 = vlaneseq
    %v1098 = vshrl.u32 %v1097, 7
    %v1099 = vsub.s32 %v1096, %v1098
    %v1100 = vrot.slane %v1084, %v1099
    %v1102 = vunpack.c.l.s4 1966171168
    %v1103 = vunpack.c.0.s8 %v1102
    %v1104 = vlaneseq
    %v1105 = vshrl.u32 %v1104, 7
    %v1106 = vsub.s32 %v1103, %v1105
    %v1107 = vrot.slane %v1091, %v1106
    %v1109 = vunpack.c.l.s4 1966171168
    %v1110 = vunpack.c.0.s8 %v1109
    %v1111 = vlaneseq
    %v1112 = vshrl.u32 %v1111, 7
    %v1113 = vsub.s32 %v1110, %v1112
    %v1114 = vrot.slane %v1092, %v1113
    %v1116 = vunpack.c.l.s4 1966171168
    %v1117 = vunpack.c.0.s8 %v1116
    %v1118 = vlaneseq
    %v1119 = vshrl.u32 %v1118, 7
    %v1120 = vsub.s32 %v1117, %v1119
    %v1121 = vrot.slane %v1093, %v1120
    %v1122 = vcombine.high %v1100, %v1100
    %v1123 = vcombine.high %v1107, %v1107
    %v1124 = vcombine.high %v1114, %v1114
    %v1125 = vcombine.high %v1121, %v1121
    %v1126 = vcombine.high %v1074, %v1074
    %v1128 = vunpack.c.l.s4 1966171168
    %v1129 = vunpack.c.0.s8 %v1128
    %v1130 = vlaneseq
    %v1131 = vshrl.u32 %v1130, 7
    %v1132 = vsub.s32 %v1129, %v1131
    %v1133 = vrot.slane %v1074, %v1132
    %v1135 = vunpack.c.l.s4 1966171168
    %v1136 = vunpack.c.0.s8 %v1135
    %v1137 = vlaneseq
    %v1138 = vshrl.u32 %v1137, 7
    %v1139 = vsub.s32 %v1136, %v1138
    %v1140 = vrot.slane %v1126, %v1139
    %v1141 = vcombine.high %v1133, %v1133
    %v1142 = vcombine.high %v1140, %v1140
    %v1144 = vunpack.c.l.s4 1966171168
    %v1145 = vunpack.c.0.s8 %v1144
    %v1146 = vlaneseq
    %v1147 = vshrl.u32 %v1146, 7
    %v1148 = vsub.s32 %v1145, %v1147
    %v1149 = vrot.slane %v1133, %v1148
    %v1151 = vunpack.c.l.s4 1966171168
    %v1152 = vunpack.c.0.s8 %v1151
    %v1153 = vlaneseq
    %v1154 = vshrl.u32 %v1153, 7
    %v1155 = vsub.s32 %v1152, %v1154
    %v1156 = vrot.slane %v1140, %v1155
    %v1158 = vunpack.c.l.s4 1966171168
    %v1159 = vunpack.c.0.s8 %v1158
    %v1160 = vlaneseq
    %v1161 = vshrl.u32 %v1160, 7
    %v1162 = vsub.s32 %v1159, %v1161
    %v1163 = vrot.slane %v1141, %v1162
    %v1165 = vunpack.c.l.s4 1966171168
    %v1166 = vunpack.c.0.s8 %v1165
    %v1167 = vlaneseq
    %v1168 = vshrl.u32 %v1167, 7
    %v1169 = vsub.s32 %v1166, %v1168
    %v1170 = vrot.slane %v1142, %v1169
    %v1171 = vcombine.high %v1149, %v1149
    %v1172 = vcombine.high %v1156, %v1156
    %v1173 = vcombine.high %v1163, %v1163
    %v1174 = vcombine.high %v1170, %v1170
    %1191 = vst.msk [vmem:[#allocation7 + $0x4] sm:$0x1] %vm558, %v1100
    %1192 = vst.msk [vmem:[#allocation7 + $0xc] sm:$0x1] %vm558, %v1114
    %1193 = vst.msk [vmem:[#allocation7 + $0x14] sm:$0x1] %vm558, %v1122
    %1194 = vst.msk [vmem:[#allocation7 + $0x1c] sm:$0x1] %vm558, %v1124
    %1195 = vst.msk [vmem:[#allocation7 + $0x24] sm:$0x1] %vm558, %v1107
    %1196 = vst.msk [vmem:[#allocation7 + $0x2c] sm:$0x1] %vm558, %v1121
    %1197 = vst.msk [vmem:[#allocation7 + $0x34] sm:$0x1] %vm558, %v1123
    %1198 = vst.msk [vmem:[#allocation7 + $0x3c] sm:$0x1] %vm558, %v1125
    %1199 = vst.msk [vmem:[#allocation7 + $0x44] sm:$0x1] %vm558, %v1149
    %1200 = vst.msk [vmem:[#allocation7 + $0x4c] sm:$0x1] %vm558, %v1163
    %1201 = vst.msk [vmem:[#allocation7 + $0x54] sm:$0x1] %vm558, %v1171
    %1202 = vst.msk [vmem:[#allocation7 + $0x5c] sm:$0x1] %vm558, %v1173
    %1203 = vst.msk [vmem:[#allocation7 + $0x64] sm:$0x1] %vm558, %v1156
    %1204 = vst.msk [vmem:[#allocation7 + $0x6c] sm:$0x1] %vm558, %v1170
    %1205 = vst.msk [vmem:[#allocation7 + $0x74] sm:$0x1] %vm558, %v1172
    %1206 = vst.msk [vmem:[#allocation7 + $0x7c] sm:$0x1] %vm558, %v1174
    %s1207 = sld [smem:[#allocation2 + $0x280]]
    %v1208 = vstv %s1207
    %v1209 = vmul.f32 %v191, %v1208
    %v1210 = vmul.f32 %v194, %v1208
    %s1211 = sld [smem:[#allocation2 + $0x281]]
    %v1212 = vstv %s1211
    %v1213 = vmul.f32 %v264, %v1212
    %v1214 = vmul.f32 %v267, %v1212
    %v1215 = vadd.f32 %v1209, %v1213
    %v1216 = vadd.f32 %v1210, %v1214
    %s1217 = sld [smem:[#allocation2 + $0x282]]
    %v1218 = vstv %s1217
    %v1219 = vmul.f32 %v337, %v1218
    %v1220 = vmul.f32 %v340, %v1218
    %v1221 = vadd.f32 %v1215, %v1219
    %v1222 = vadd.f32 %v1216, %v1220
    %s1223 = sld [smem:[#allocation2 + $0x283]]
    %v1224 = vstv %s1223
    %v1225 = vmul.f32 %v410, %v1224
    %v1226 = vmul.f32 %v413, %v1224
    %v1227 = vadd.f32 %v1221, %v1225
    %v1228 = vadd.f32 %v1222, %v1226
    %s1229 = sld [smem:[#allocation5 + $0x5]]
    %v1230 = vstv %s1229
    %v1231 = vadd.f32 %v1227, %v1230
    %v1232 = vadd.f32 %v1228, %v1230
    %v1235 = vcombine.high %v1231, %v1231
    %v1237 = vunpack.c.l.s4 1966171168
    %v1238 = vunpack.c.0.s8 %v1237
    %v1239 = vlaneseq
    %v1240 = vshrl.u32 %v1239, 7
    %v1241 = vsub.s32 %v1238, %v1240
    %v1242 = vrot.slane %v1231, %v1241
    %v1244 = vunpack.c.l.s4 1966171168
    %v1245 = vunpack.c.0.s8 %v1244
    %v1246 = vlaneseq
    %v1247 = vshrl.u32 %v1246, 7
    %v1248 = vsub.s32 %v1245, %v1247
    %v1249 = vrot.slane %v1235, %v1248
    %v1250 = vcombine.high %v1242, %v1242
    %v1251 = vcombine.high %v1249, %v1249
    %v1253 = vunpack.c.l.s4 1966171168
    %v1254 = vunpack.c.0.s8 %v1253
    %v1255 = vlaneseq
    %v1256 = vshrl.u32 %v1255, 7
    %v1257 = vsub.s32 %v1254, %v1256
    %v1258 = vrot.slane %v1242, %v1257
    %v1260 = vunpack.c.l.s4 1966171168
    %v1261 = vunpack.c.0.s8 %v1260
    %v1262 = vlaneseq
    %v1263 = vshrl.u32 %v1262, 7
    %v1264 = vsub.s32 %v1261, %v1263
    %v1265 = vrot.slane %v1249, %v1264
    %v1267 = vunpack.c.l.s4 1966171168
    %v1268 = vunpack.c.0.s8 %v1267
    %v1269 = vlaneseq
    %v1270 = vshrl.u32 %v1269, 7
    %v1271 = vsub.s32 %v1268, %v1270
    %v1272 = vrot.slane %v1250, %v1271
    %v1274 = vunpack.c.l.s4 1966171168
    %v1275 = vunpack.c.0.s8 %v1274
    %v1276 = vlaneseq
    %v1277 = vshrl.u32 %v1276, 7
    %v1278 = vsub.s32 %v1275, %v1277
    %v1279 = vrot.slane %v1251, %v1278
    %v1280 = vcombine.high %v1258, %v1258
    %v1281 = vcombine.high %v1265, %v1265
    %v1282 = vcombine.high %v1272, %v1272
    %v1283 = vcombine.high %v1279, %v1279
    %v1284 = vcombine.high %v1232, %v1232
    %v1286 = vunpack.c.l.s4 1966171168
    %v1287 = vunpack.c.0.s8 %v1286
    %v1288 = vlaneseq
    %v1289 = vshrl.u32 %v1288, 7
    %v1290 = vsub.s32 %v1287, %v1289
    %v1291 = vrot.slane %v1232, %v1290
    %v1293 = vunpack.c.l.s4 1966171168
    %v1294 = vunpack.c.0.s8 %v1293
    %v1295 = vlaneseq
    %v1296 = vshrl.u32 %v1295, 7
    %v1297 = vsub.s32 %v1294, %v1296
    %v1298 = vrot.slane %v1284, %v1297
    %v1299 = vcombine.high %v1291, %v1291
    %v1300 = vcombine.high %v1298, %v1298
    %v1302 = vunpack.c.l.s4 1966171168
    %v1303 = vunpack.c.0.s8 %v1302
    %v1304 = vlaneseq
    %v1305 = vshrl.u32 %v1304, 7
    %v1306 = vsub.s32 %v1303, %v1305
    %v1307 = vrot.slane %v1291, %v1306
    %v1309 = vunpack.c.l.s4 1966171168
    %v1310 = vunpack.c.0.s8 %v1309
    %v1311 = vlaneseq
    %v1312 = vshrl.u32 %v1311, 7
    %v1313 = vsub.s32 %v1310, %v1312
    %v1314 = vrot.slane %v1298, %v1313
    %v1316 = vunpack.c.l.s4 1966171168
    %v1317 = vunpack.c.0.s8 %v1316
    %v1318 = vlaneseq
    %v1319 = vshrl.u32 %v1318, 7
    %v1320 = vsub.s32 %v1317, %v1319
    %v1321 = vrot.slane %v1299, %v1320
    %v1323 = vunpack.c.l.s4 1966171168
    %v1324 = vunpack.c.0.s8 %v1323
    %v1325 = vlaneseq
    %v1326 = vshrl.u32 %v1325, 7
    %v1327 = vsub.s32 %v1324, %v1326
    %v1328 = vrot.slane %v1300, %v1327
    %v1329 = vcombine.high %v1307, %v1307
    %v1330 = vcombine.high %v1314, %v1314
    %v1331 = vcombine.high %v1321, %v1321
    %v1332 = vcombine.high %v1328, %v1328
    %1349 = vst.msk [vmem:[#allocation7 + $0x5] sm:$0x1] %vm558, %v1258
    %1350 = vst.msk [vmem:[#allocation7 + $0xd] sm:$0x1] %vm558, %v1272
    %1351 = vst.msk [vmem:[#allocation7 + $0x15] sm:$0x1] %vm558, %v1280
    %1352 = vst.msk [vmem:[#allocation7 + $0x1d] sm:$0x1] %vm558, %v1282
    %1353 = vst.msk [vmem:[#allocation7 + $0x25] sm:$0x1] %vm558, %v1265
    %1354 = vst.msk [vmem:[#allocation7 + $0x2d] sm:$0x1] %vm558, %v1279
    %1355 = vst.msk [vmem:[#allocation7 + $0x35] sm:$0x1] %vm558, %v1281
    %1356 = vst.msk [vmem:[#allocation7 + $0x3d] sm:$0x1] %vm558, %v1283
    %1357 = vst.msk [vmem:[#allocation7 + $0x45] sm:$0x1] %vm558, %v1307
    %1358 = vst.msk [vmem:[#allocation7 + $0x4d] sm:$0x1] %vm558, %v1321
    %1359 = vst.msk [vmem:[#allocation7 + $0x55] sm:$0x1] %vm558, %v1329
    %1360 = vst.msk [vmem:[#allocation7 + $0x5d] sm:$0x1] %vm558, %v1331
    %1361 = vst.msk [vmem:[#allocation7 + $0x65] sm:$0x1] %vm558, %v1314
    %1362 = vst.msk [vmem:[#allocation7 + $0x6d] sm:$0x1] %vm558, %v1328
    %1363 = vst.msk [vmem:[#allocation7 + $0x75] sm:$0x1] %vm558, %v1330
    %1364 = vst.msk [vmem:[#allocation7 + $0x7d] sm:$0x1] %vm558, %v1332
    %s1365 = sld [smem:[#allocation2 + $0x300]]
    %v1366 = vstv %s1365
    %v1367 = vmul.f32 %v191, %v1366
    %v1368 = vmul.f32 %v194, %v1366
    %s1369 = sld [smem:[#allocation2 + $0x301]]
    %v1370 = vstv %s1369
    %v1371 = vmul.f32 %v264, %v1370
    %v1372 = vmul.f32 %v267, %v1370
    %v1373 = vadd.f32 %v1367, %v1371
    %v1374 = vadd.f32 %v1368, %v1372
    %s1375 = sld [smem:[#allocation2 + $0x302]]
    %v1376 = vstv %s1375
    %v1377 = vmul.f32 %v337, %v1376
    %v1378 = vmul.f32 %v340, %v1376
    %v1379 = vadd.f32 %v1373, %v1377
    %v1380 = vadd.f32 %v1374, %v1378
    %s1381 = sld [smem:[#allocation2 + $0x303]]
    %v1382 = vstv %s1381
    %v1383 = vmul.f32 %v410, %v1382
    %v1384 = vmul.f32 %v413, %v1382
    %v1385 = vadd.f32 %v1379, %v1383
    %v1386 = vadd.f32 %v1380, %v1384
    %s1387 = sld [smem:[#allocation5 + $0x6]]
    %v1388 = vstv %s1387
    %v1389 = vadd.f32 %v1385, %v1388
    %v1390 = vadd.f32 %v1386, %v1388
    %v1393 = vcombine.high %v1389, %v1389
    %v1395 = vunpack.c.l.s4 1966171168
    %v1396 = vunpack.c.0.s8 %v1395
    %v1397 = vlaneseq
    %v1398 = vshrl.u32 %v1397, 7
    %v1399 = vsub.s32 %v1396, %v1398
    %v1400 = vrot.slane %v1389, %v1399
    %v1402 = vunpack.c.l.s4 1966171168
    %v1403 = vunpack.c.0.s8 %v1402
    %v1404 = vlaneseq
    %v1405 = vshrl.u32 %v1404, 7
    %v1406 = vsub.s32 %v1403, %v1405
    %v1407 = vrot.slane %v1393, %v1406
    %v1408 = vcombine.high %v1400, %v1400
    %v1409 = vcombine.high %v1407, %v1407
    %v1411 = vunpack.c.l.s4 1966171168
    %v1412 = vunpack.c.0.s8 %v1411
    %v1413 = vlaneseq
    %v1414 = vshrl.u32 %v1413, 7
    %v1415 = vsub.s32 %v1412, %v1414
    %v1416 = vrot.slane %v1400, %v1415
    %v1418 = vunpack.c.l.s4 1966171168
    %v1419 = vunpack.c.0.s8 %v1418
    %v1420 = vlaneseq
    %v1421 = vshrl.u32 %v1420, 7
    %v1422 = vsub.s32 %v1419, %v1421
    %v1423 = vrot.slane %v1407, %v1422
    %v1425 = vunpack.c.l.s4 1966171168
    %v1426 = vunpack.c.0.s8 %v1425
    %v1427 = vlaneseq
    %v1428 = vshrl.u32 %v1427, 7
    %v1429 = vsub.s32 %v1426, %v1428
    %v1430 = vrot.slane %v1408, %v1429
    %v1432 = vunpack.c.l.s4 1966171168
    %v1433 = vunpack.c.0.s8 %v1432
    %v1434 = vlaneseq
    %v1435 = vshrl.u32 %v1434, 7
    %v1436 = vsub.s32 %v1433, %v1435
    %v1437 = vrot.slane %v1409, %v1436
    %v1438 = vcombine.high %v1416, %v1416
    %v1439 = vcombine.high %v1423, %v1423
    %v1440 = vcombine.high %v1430, %v1430
    %v1441 = vcombine.high %v1437, %v1437
    %v1442 = vcombine.high %v1390, %v1390
    %v1444 = vunpack.c.l.s4 1966171168
    %v1445 = vunpack.c.0.s8 %v1444
    %v1446 = vlaneseq
    %v1447 = vshrl.u32 %v1446, 7
    %v1448 = vsub.s32 %v1445, %v1447
    %v1449 = vrot.slane %v1390, %v1448
    %v1451 = vunpack.c.l.s4 1966171168
    %v1452 = vunpack.c.0.s8 %v1451
    %v1453 = vlaneseq
    %v1454 = vshrl.u32 %v1453, 7
    %v1455 = vsub.s32 %v1452, %v1454
    %v1456 = vrot.slane %v1442, %v1455
    %v1457 = vcombine.high %v1449, %v1449
    %v1458 = vcombine.high %v1456, %v1456
    %v1460 = vunpack.c.l.s4 1966171168
    %v1461 = vunpack.c.0.s8 %v1460
    %v1462 = vlaneseq
    %v1463 = vshrl.u32 %v1462, 7
    %v1464 = vsub.s32 %v1461, %v1463
    %v1465 = vrot.slane %v1449, %v1464
    %v1467 = vunpack.c.l.s4 1966171168
    %v1468 = vunpack.c.0.s8 %v1467
    %v1469 = vlaneseq
    %v1470 = vshrl.u32 %v1469, 7
    %v1471 = vsub.s32 %v1468, %v1470
    %v1472 = vrot.slane %v1456, %v1471
    %v1474 = vunpack.c.l.s4 1966171168
    %v1475 = vunpack.c.0.s8 %v1474
    %v1476 = vlaneseq
    %v1477 = vshrl.u32 %v1476, 7
    %v1478 = vsub.s32 %v1475, %v1477
    %v1479 = vrot.slane %v1457, %v1478
    %v1481 = vunpack.c.l.s4 1966171168
    %v1482 = vunpack.c.0.s8 %v1481
    %v1483 = vlaneseq
    %v1484 = vshrl.u32 %v1483, 7
    %v1485 = vsub.s32 %v1482, %v1484
    %v1486 = vrot.slane %v1458, %v1485
    %v1487 = vcombine.high %v1465, %v1465
    %v1488 = vcombine.high %v1472, %v1472
    %v1489 = vcombine.high %v1479, %v1479
    %v1490 = vcombine.high %v1486, %v1486
    %1507 = vst.msk [vmem:[#allocation7 + $0x6] sm:$0x1] %vm558, %v1416
    %1508 = vst.msk [vmem:[#allocation7 + $0xe] sm:$0x1] %vm558, %v1430
    %1509 = vst.msk [vmem:[#allocation7 + $0x16] sm:$0x1] %vm558, %v1438
    %1510 = vst.msk [vmem:[#allocation7 + $0x1e] sm:$0x1] %vm558, %v1440
    %1511 = vst.msk [vmem:[#allocation7 + $0x26] sm:$0x1] %vm558, %v1423
    %1512 = vst.msk [vmem:[#allocation7 + $0x2e] sm:$0x1] %vm558, %v1437
    %1513 = vst.msk [vmem:[#allocation7 + $0x36] sm:$0x1] %vm558, %v1439
    %1514 = vst.msk [vmem:[#allocation7 + $0x3e] sm:$0x1] %vm558, %v1441
    %1515 = vst.msk [vmem:[#allocation7 + $0x46] sm:$0x1] %vm558, %v1465
    %1516 = vst.msk [vmem:[#allocation7 + $0x4e] sm:$0x1] %vm558, %v1479
    %1517 = vst.msk [vmem:[#allocation7 + $0x56] sm:$0x1] %vm558, %v1487
    %1518 = vst.msk [vmem:[#allocation7 + $0x5e] sm:$0x1] %vm558, %v1489
    %1519 = vst.msk [vmem:[#allocation7 + $0x66] sm:$0x1] %vm558, %v1472
    %1520 = vst.msk [vmem:[#allocation7 + $0x6e] sm:$0x1] %vm558, %v1486
    %1521 = vst.msk [vmem:[#allocation7 + $0x76] sm:$0x1] %vm558, %v1488
    %1522 = vst.msk [vmem:[#allocation7 + $0x7e] sm:$0x1] %vm558, %v1490
    %s1523 = sld [smem:[#allocation2 + $0x380]]
    %v1524 = vstv %s1523
    %v1525 = vmul.f32 %v191, %v1524
    %v1526 = vmul.f32 %v194, %v1524
    %s1527 = sld [smem:[#allocation2 + $0x381]]
    %v1528 = vstv %s1527
    %v1529 = vmul.f32 %v264, %v1528
    %v1530 = vmul.f32 %v267, %v1528
    %v1531 = vadd.f32 %v1525, %v1529
    %v1532 = vadd.f32 %v1526, %v1530
    %s1533 = sld [smem:[#allocation2 + $0x382]]
    %v1534 = vstv %s1533
    %v1535 = vmul.f32 %v337, %v1534
    %v1536 = vmul.f32 %v340, %v1534
    %v1537 = vadd.f32 %v1531, %v1535
    %v1538 = vadd.f32 %v1532, %v1536
    %s1539 = sld [smem:[#allocation2 + $0x383]]
    %v1540 = vstv %s1539
    %v1541 = vmul.f32 %v410, %v1540
    %v1542 = vmul.f32 %v413, %v1540
    %v1543 = vadd.f32 %v1537, %v1541
    %v1544 = vadd.f32 %v1538, %v1542
    %s1545 = sld [smem:[#allocation5 + $0x7]]
    %v1546 = vstv %s1545
    %v1547 = vadd.f32 %v1543, %v1546
    %v1548 = vadd.f32 %v1544, %v1546
    %v1551 = vcombine.high %v1547, %v1547
    %v1553 = vunpack.c.l.s4 1966171168
    %v1554 = vunpack.c.0.s8 %v1553
    %v1555 = vlaneseq
    %v1556 = vshrl.u32 %v1555, 7
    %v1557 = vsub.s32 %v1554, %v1556
    %v1558 = vrot.slane %v1547, %v1557
    %v1560 = vunpack.c.l.s4 1966171168
    %v1561 = vunpack.c.0.s8 %v1560
    %v1562 = vlaneseq
    %v1563 = vshrl.u32 %v1562, 7
    %v1564 = vsub.s32 %v1561, %v1563
    %v1565 = vrot.slane %v1551, %v1564
    %v1566 = vcombine.high %v1558, %v1558
    %v1567 = vcombine.high %v1565, %v1565
    %v1569 = vunpack.c.l.s4 1966171168
    %v1570 = vunpack.c.0.s8 %v1569
    %v1571 = vlaneseq
    %v1572 = vshrl.u32 %v1571, 7
    %v1573 = vsub.s32 %v1570, %v1572
    %v1574 = vrot.slane %v1558, %v1573
    %v1576 = vunpack.c.l.s4 1966171168
    %v1577 = vunpack.c.0.s8 %v1576
    %v1578 = vlaneseq
    %v1579 = vshrl.u32 %v1578, 7
    %v1580 = vsub.s32 %v1577, %v1579
    %v1581 = vrot.slane %v1565, %v1580
    %v1583 = vunpack.c.l.s4 1966171168
    %v1584 = vunpack.c.0.s8 %v1583
    %v1585 = vlaneseq
    %v1586 = vshrl.u32 %v1585, 7
    %v1587 = vsub.s32 %v1584, %v1586
    %v1588 = vrot.slane %v1566, %v1587
    %v1590 = vunpack.c.l.s4 1966171168
    %v1591 = vunpack.c.0.s8 %v1590
    %v1592 = vlaneseq
    %v1593 = vshrl.u32 %v1592, 7
    %v1594 = vsub.s32 %v1591, %v1593
    %v1595 = vrot.slane %v1567, %v1594
    %v1596 = vcombine.high %v1574, %v1574
    %v1597 = vcombine.high %v1581, %v1581
    %v1598 = vcombine.high %v1588, %v1588
    %v1599 = vcombine.high %v1595, %v1595
    %v1600 = vcombine.high %v1548, %v1548
    %v1602 = vunpack.c.l.s4 1966171168
    %v1603 = vunpack.c.0.s8 %v1602
    %v1604 = vlaneseq
    %v1605 = vshrl.u32 %v1604, 7
    %v1606 = vsub.s32 %v1603, %v1605
    %v1607 = vrot.slane %v1548, %v1606
    %v1609 = vunpack.c.l.s4 1966171168
    %v1610 = vunpack.c.0.s8 %v1609
    %v1611 = vlaneseq
    %v1612 = vshrl.u32 %v1611, 7
    %v1613 = vsub.s32 %v1610, %v1612
    %v1614 = vrot.slane %v1600, %v1613
    %v1615 = vcombine.high %v1607, %v1607
    %v1616 = vcombine.high %v1614, %v1614
    %v1618 = vunpack.c.l.s4 1966171168
    %v1619 = vunpack.c.0.s8 %v1618
    %v1620 = vlaneseq
    %v1621 = vshrl.u32 %v1620, 7
    %v1622 = vsub.s32 %v1619, %v1621
    %v1623 = vrot.slane %v1607, %v1622
    %v1625 = vunpack.c.l.s4 1966171168
    %v1626 = vunpack.c.0.s8 %v1625
    %v1627 = vlaneseq
    %v1628 = vshrl.u32 %v1627, 7
    %v1629 = vsub.s32 %v1626, %v1628
    %v1630 = vrot.slane %v1614, %v1629
    %v1632 = vunpack.c.l.s4 1966171168
    %v1633 = vunpack.c.0.s8 %v1632
    %v1634 = vlaneseq
    %v1635 = vshrl.u32 %v1634, 7
    %v1636 = vsub.s32 %v1633, %v1635
    %v1637 = vrot.slane %v1615, %v1636
    %v1639 = vunpack.c.l.s4 1966171168
    %v1640 = vunpack.c.0.s8 %v1639
    %v1641 = vlaneseq
    %v1642 = vshrl.u32 %v1641, 7
    %v1643 = vsub.s32 %v1640, %v1642
    %v1644 = vrot.slane %v1616, %v1643
    %v1645 = vcombine.high %v1623, %v1623
    %v1646 = vcombine.high %v1630, %v1630
    %v1647 = vcombine.high %v1637, %v1637
    %v1648 = vcombine.high %v1644, %v1644
    %1665 = vst.msk [vmem:[#allocation7 + $0x7] sm:$0x1] %vm558, %v1574
    %1666 = vst.msk [vmem:[#allocation7 + $0xf] sm:$0x1] %vm558, %v1588
    %1667 = vst.msk [vmem:[#allocation7 + $0x17] sm:$0x1] %vm558, %v1596
    %1668 = vst.msk [vmem:[#allocation7 + $0x1f] sm:$0x1] %vm558, %v1598
    %1669 = vst.msk [vmem:[#allocation7 + $0x27] sm:$0x1] %vm558, %v1581
    %1670 = vst.msk [vmem:[#allocation7 + $0x2f] sm:$0x1] %vm558, %v1595
    %1671 = vst.msk [vmem:[#allocation7 + $0x37] sm:$0x1] %vm558, %v1597
    %1672 = vst.msk [vmem:[#allocation7 + $0x3f] sm:$0x1] %vm558, %v1599
    %1673 = vst.msk [vmem:[#allocation7 + $0x47] sm:$0x1] %vm558, %v1623
    %1674 = vst.msk [vmem:[#allocation7 + $0x4f] sm:$0x1] %vm558, %v1637
    %1675 = vst.msk [vmem:[#allocation7 + $0x57] sm:$0x1] %vm558, %v1645
    %1676 = vst.msk [vmem:[#allocation7 + $0x5f] sm:$0x1] %vm558, %v1647
    %1677 = vst.msk [vmem:[#allocation7 + $0x67] sm:$0x1] %vm558, %v1630
    %1678 = vst.msk [vmem:[#allocation7 + $0x6f] sm:$0x1] %vm558, %v1644
    %1679 = vst.msk [vmem:[#allocation7 + $0x77] sm:$0x1] %vm558, %v1646
    %1680 = vst.msk [vmem:[#allocation7 + $0x7f] sm:$0x1] %vm558, %v1648
    // Predicated region
    $region26: #{tpu_custom_call.1} parent=1 // pred_check
      _
    $region27: #{tpu_custom_call.1} parent=1 // pred_check_branch
      %1682 = sbr.rel (0) target = $region29
    $region28: #{tpu_custom_call.1} parent=1 // pred_region
      %s1684 = ssub.s32 2048, 256
      %1685 = vsyncadd [#allocation3], %s1684
      %s1686 = sshll.u32 [#allocation7], 4
      %s1687 = int_to_ptr.vmem [resolvable:$true] %s1686
      %1692 = dma.vmem_to_hbm [thread:$0]  %s1687, 256, %s4, [#allocation3], 128, 128, 8
    $region29: #{tpu_custom_call.1} parent=1 // pred_fallthru
      _
    // Predicated region
    $region30: #{tpu_custom_call.1} parent=1 // pred_check
      _
    $region31: #{tpu_custom_call.1} parent=1 // pred_check_branch
      %1694 = sbr.rel (0) target = $region33
    $region32: #{tpu_custom_call.1} parent=1 // pred_region
      %1695 = dma.done [#allocation3], 2048
    $region33: #{tpu_custom_call.1} parent=1 // pred_fallthru
      _
    %1696 = vsyncpa [#allocation3], 1
    %1697 = vsyncpa [#allocation4], 1
    %1698 = vsyncpa [#allocation6], 1

</llo_original>
